<compile_context>
chip_gen: v7x
topology: tpu7x:2x2x1
jax: 0.10.0
libtpu: 0.0.40
codegen_flags: <defaults>
</compile_context>

<pallas_src>
import jax
import jax.numpy as jnp
import numpy as np
from jax.experimental import pallas as pl
from jax.experimental.pallas import tpu as pltpu

D_MODEL = 8
FFN = 2048          # nn.TransformerEncoderLayer default dim_feedforward
LN_EPS = 1e-5       # default layer_norm_eps


def _layer_norm(x, gamma, beta):
    mean = jnp.mean(x, axis=-1, keepdims=True)
    var = jnp.mean((x - mean) ** 2, axis=-1, keepdims=True)
    return (x - mean) * jax.lax.rsqrt(var + LN_EPS) * gamma + beta


# ---------------------------------------------------------------------------
# Fused kernel: whole (dead-code-eliminated) forward pass in one invocation
# ---------------------------------------------------------------------------
def fused_forward_kernel(*refs):
    (x_ref, wqkv_ref, bqkv_ref, wo_ref, bo_ref,
     ln1w_ref, ln1b_ref,
     ff1w_ref, ff1b_ref, ff2w_ref, ff2b_ref,
     ln2w_ref, ln2b_ref) = refs[:13]
    pred_refs = refs[13:-1]          # (w1, b1, ..., w7, b7); weights bf16, pre-transposed (in, out)
    out_ref = refs[-1]

    f32 = jnp.float32
    x = x_ref[...]                   # (B, E) == inp[:, 0, :]  (only rows that reach the output)
    E = x.shape[-1]

    # ---- single-head self-attention over the caller's batch axis (B x B), fused QKV ----
    qkv = jnp.dot(x, wqkv_ref[...], preferred_element_type=f32) + bqkv_ref[...]   # (B, 3E)
    q = qkv[:, 0:E]
    k = qkv[:, E:2 * E]
    v = qkv[:, 2 * E:3 * E]
    scale = 1.0 / (E ** 0.5)
    scores = jax.lax.dot_general(q * scale, k, (((1,), (1,)), ((), ())),
                                 preferred_element_type=f32)                      # (B, B)
    scores = scores - jnp.max(scores, axis=-1, keepdims=True)
    p = jnp.exp(scores)
    attn = p * pl.reciprocal(jnp.sum(p, axis=-1, keepdims=True), approx=True)
    ctx = jnp.dot(attn, v, preferred_element_type=f32)                            # (B, E)
    sa = jnp.dot(ctx, wo_ref[...], preferred_element_type=f32) + bo_ref[...]

    # ---- residual + layernorm 1 (post-norm) ----
    h = _layer_norm(x + sa, ln1w_ref[...], ln1b_ref[...])

    # ---- feed-forward 8 -> 2048 -> 8 ; bf16 weights upcast in-kernel, f32 accumulation;
    #      ff2 weight kept lane-dense in torch layout (E, FFN), contracted over the 2048 axis ----
    ff = jnp.maximum(
        jnp.dot(h, ff1w_ref[...].astype(f32), preferred_element_type=f32) + ff1b_ref[...], 0.0)
    f2 = jax.lax.dot_general(ff, ff2w_ref[...].astype(f32), (((1,), (1,)), ((), ())),
                             preferred_element_type=f32) + ff2b_ref[...]

    # ---- residual + layernorm 2 ----
    d = _layer_norm(h + f2, ln2w_ref[...], ln2b_ref[...])                         # (B, E)

    # ---- FC predictor (bf16 weights, f32 accumulation; ReLU on all but the last layer) ----
    n_layers = len(pred_refs) // 2
    for li in range(n_layers):
        w = pred_refs[2 * li][...].astype(f32)
        d = jnp.dot(d, w, preferred_element_type=f32) + pred_refs[2 * li + 1][...]
        if li < n_layers - 1:
            d = jnp.maximum(d, 0.0)
    out_ref[...] = d.astype(out_ref.dtype)


# ---------------------------------------------------------------------------
# Wrapper
# ---------------------------------------------------------------------------
def linear_network_forward(params, inp, beta):
    # With batch_first=False semantics (original module's default), the output is provably
    # independent of beta / the time embedding and of every sequence position except 0, so only
    # inp[:, 0, :] is fed to the kernel.  beta is accepted to preserve the module interface.
    del beta
    B, _, E = inp.shape
    x0 = inp[:, 0, :].astype(jnp.float32)            # (B, E)

    enc = params["enc"]
    pred_args = []
    for w_t, b in params["pred"]:
        pred_args += [w_t, b]

    args = (x0, enc["wqkv_t"], enc["bqkv"], enc["wo_t"], enc["bo"],
            enc["ln1_w"], enc["ln1_b"],
            enc["ff1_w_t"], enc["ff1_b"], enc["ff2_w"], enc["ff2_b"],
            enc["ln2_w"], enc["ln2_b"], *pred_args)

    vmem = pl.BlockSpec(memory_space=pltpu.MemorySpace.VMEM)
    return pl.pallas_call(
        fused_forward_kernel,
        out_shape=jax.ShapeDtypeStruct((B, E), jnp.float32),
        in_specs=[vmem] * len(args),
        out_specs=vmem,
    )(*args)


# ---------------------------------------------------------------------------
# Deterministic parameter init (synthetic; torch-style U(-1/sqrt(fan_in), +))
# ---------------------------------------------------------------------------
def _linear_params(key, fan_in, fan_out):
    kw, kb = jax.random.split(key)
    bound = float(fan_in) ** -0.5
    w = jax.random.uniform(kw, (fan_out, fan_in), jnp.float32, -bound, bound)   # torch layout
    b = jax.random.uniform(kb, (fan_out,), jnp.float32, -bound, bound)
    return w, b


def init_params(key):
    keys = jax.random.split(key, 16)
    te_w, te_b = _linear_params(keys[0], 1, D_MODEL)
    wq, bq = _linear_params(keys[1], D_MODEL, D_MODEL)
    wk, bk = _linear_params(keys[2], D_MODEL, D_MODEL)
    wv, bv = _linear_params(keys[3], D_MODEL, D_MODEL)
    wo, bo = _linear_params(keys[4], D_MODEL, D_MODEL)
    w1, b1 = _linear_params(keys[5], D_MODEL, FFN)
    w2, b2 = _linear_params(keys[6], FFN, D_MODEL)
    bf16 = jnp.bfloat16
    enc = dict(
        # separate q/k/v kept in f32 for the independent reference formulation
        wq_t=wq.T, bq=bq.reshape(1, -1), wk_t=wk.T, bk=bk.reshape(1, -1),
        wv_t=wv.T, bv=bv.reshape(1, -1),
        # fused qkv for the kernel: one (8, 24) MXU push + one bias add
        wqkv_t=jnp.concatenate([wq.T, wk.T, wv.T], axis=1),
        bqkv=jnp.concatenate([bq, bk, bv]).reshape(1, -1),
        wo_t=wo.T, bo=bo.reshape(1, -1),
        ln1_w=jnp.ones((1, D_MODEL), jnp.float32), ln1_b=jnp.zeros((1, D_MODEL), jnp.float32),
        ff1_w_t=w1.T.astype(bf16), ff1_b=b1.reshape(1, -1),
        ff2_w=w2.astype(bf16), ff2_b=b2.reshape(1, -1),   # lane-dense torch layout (8, 2048)
        ln2_w=jnp.ones((1, D_MODEL), jnp.float32), ln2_b=jnp.zeros((1, D_MODEL), jnp.float32),
    )
    dims = [(8, 128), (128, 256), (256, 512), (512, 256), (256, 128), (128, 64), (64, 8)]
    pred = []
    for i, (fi, fo) in enumerate(dims):
        w, b = _linear_params(keys[7 + i], fi, fo)
        pred.append((w.T.astype(bf16), b.reshape(1, -1)))   # bf16 storage, f32 math in-kernel
    return dict(te_w_t=te_w.T, te_b=te_b.reshape(1, -1), enc=enc, pred=pred)


# ---------------------------------------------------------------------------
# Pure-JAX reference: full forward path of the original module (independent
# formulation, including the time embedding) for numerical verification.
# ---------------------------------------------------------------------------
def reference_forward(params, inp, beta):
    f32 = jnp.float32
    te = beta[:, None] * params["te_w_t"] + params["te_b"]              # (B, 8)
    x = jnp.concatenate([inp, te[:, None, :]], axis=1)                  # (B, L, 8)
    p = params["enc"]
    q = x @ p["wq_t"] + p["bq"][0]
    k = x @ p["wk_t"] + p["bk"][0]
    v = x @ p["wv_t"] + p["bv"][0]
    scale = 1.0 / (D_MODEL ** 0.5)
    # batch_first=False: attend over axis 0 (caller batch), independently per position (axis 1)
    scores = jnp.einsum("snd,tnd->nst", q * scale, k)
    attn = jax.nn.softmax(scores, axis=-1)
    ctx = jnp.einsum("nst,tnd->snd", attn, v)
    sa = ctx @ p["wo_t"] + p["bo"][0]

    def ln(z, g, b_):
        mu = jnp.mean(z, -1, keepdims=True)
        var = jnp.mean((z - mu) ** 2, -1, keepdims=True)
        return (z - mu) * jax.lax.rsqrt(var + LN_EPS) * g[0] + b_[0]

    h = ln(x + sa, p["ln1_w"], p["ln1_b"])
    f = (jax.nn.relu(h @ p["ff1_w_t"].astype(f32) + p["ff1_b"][0])
         @ p["ff2_w"].astype(f32).T + p["ff2_b"][0])
    y = ln(h + f, p["ln2_w"], p["ln2_b"])
    d = y[:, 0, :]
    for w_t, b in params["pred"][:-1]:
        d = jax.nn.relu(d @ w_t.astype(f32) + b[0])
    w_t, b = params["pred"][-1]
    return d @ w_t.astype(f32) + b[0]


if __name__ == "__main__":
    B, INTERVAL = 2, 8
    key = jax.random.PRNGKey(0)
    k_inp, k_beta, k_par = jax.random.split(key, 3)
    inp = jax.random.normal(k_inp, (B, INTERVAL, D_MODEL), jnp.float32)  # (x,y,w,h,dx,dy,dw,dh)
    beta = jax.random.uniform(k_beta, (B,), jnp.float32)
    params = init_params(k_par)

    fwd = jax.jit(linear_network_forward)
    out = jax.block_until_ready(fwd(params, inp, beta))
    ref = jax.block_until_ready(reference_forward(params, inp, beta))

    assert out.shape == (B, D_MODEL)
    np.testing.assert_allclose(np.asarray(out), np.asarray(ref), rtol=2e-3, atol=2e-3)
    print("KERNEL_OK")
</pallas_src>

<mosaic_0001>
module attributes {stable_mosaic.version = 11 : i64} {
  func.func @fused_forward_kernel(%arg0: memref<2x8xf32, #tpu.memory_space<vmem>>, %arg1: memref<8x24xf32, #tpu.memory_space<vmem>>, %arg2: memref<1x24xf32, #tpu.memory_space<vmem>>, %arg3: memref<8x8xf32, #tpu.memory_space<vmem>>, %arg4: memref<1x8xf32, #tpu.memory_space<vmem>>, %arg5: memref<1x8xf32, #tpu.memory_space<vmem>>, %arg6: memref<1x8xf32, #tpu.memory_space<vmem>>, %arg7: memref<8x2048xbf16, #tpu.memory_space<vmem>>, %arg8: memref<1x2048xf32, #tpu.memory_space<vmem>>, %arg9: memref<8x2048xbf16, #tpu.memory_space<vmem>>, %arg10: memref<1x8xf32, #tpu.memory_space<vmem>>, %arg11: memref<1x8xf32, #tpu.memory_space<vmem>>, %arg12: memref<1x8xf32, #tpu.memory_space<vmem>>, %arg13: memref<8x128xbf16, #tpu.memory_space<vmem>>, %arg14: memref<1x128xf32, #tpu.memory_space<vmem>>, %arg15: memref<128x256xbf16, #tpu.memory_space<vmem>>, %arg16: memref<1x256xf32, #tpu.memory_space<vmem>>, %arg17: memref<256x512xbf16, #tpu.memory_space<vmem>>, %arg18: memref<1x512xf32, #tpu.memory_space<vmem>>, %arg19: memref<512x256xbf16, #tpu.memory_space<vmem>>, %arg20: memref<1x256xf32, #tpu.memory_space<vmem>>, %arg21: memref<256x128xbf16, #tpu.memory_space<vmem>>, %arg22: memref<1x128xf32, #tpu.memory_space<vmem>>, %arg23: memref<128x64xbf16, #tpu.memory_space<vmem>>, %arg24: memref<1x64xf32, #tpu.memory_space<vmem>>, %arg25: memref<64x8xbf16, #tpu.memory_space<vmem>>, %arg26: memref<1x8xf32, #tpu.memory_space<vmem>>, %arg27: memref<2x8xf32, #tpu.memory_space<vmem>>) attributes {dimension_semantics = [], scalar_prefetch = 0 : i64, scratch_operands = 0 : i64, tpu.core_type = #tpu.core_type<tc>} {
    %c0 = arith.constant 0 : index
    %c0_0 = arith.constant 0 : index
    %0 = vector.load %arg0[%c0, %c0_0] : memref<2x8xf32, #tpu.memory_space<vmem>>, vector<2x8xf32>
    %c0_1 = arith.constant 0 : index
    %c0_2 = arith.constant 0 : index
    %1 = vector.load %arg1[%c0_1, %c0_2] : memref<8x24xf32, #tpu.memory_space<vmem>>, vector<8x24xf32>
    %cst = arith.constant dense<0.000000e+00> : vector<2x24xf32>
    %2 = tpu.matmul %0, %1, %cst {dimension_numbers = #tpu.dot_dimension_numbers<[1], [0], [0], [1], [0, 0, 1, 1], [], []>} : vector<2x8xf32>, vector<8x24xf32>, vector<2x24xf32> -> vector<2x24xf32>
    %c0_3 = arith.constant 0 : index
    %c0_4 = arith.constant 0 : index
    %3 = vector.load %arg2[%c0_3, %c0_4] : memref<1x24xf32, #tpu.memory_space<vmem>>, vector<1x24xf32>
    %4 = vector.broadcast %3 : vector<1x24xf32> to vector<2x24xf32>
    %5 = arith.addf %2, %4 : vector<2x24xf32>
    %6 = vector.extract_strided_slice %5 {offsets = [0, 0], sizes = [2, 8], strides = [1, 1]} : vector<2x24xf32> to vector<2x8xf32>
    %7 = vector.extract_strided_slice %5 {offsets = [0, 8], sizes = [2, 8], strides = [1, 1]} : vector<2x24xf32> to vector<2x8xf32>
    %8 = vector.extract_strided_slice %5 {offsets = [0, 16], sizes = [2, 8], strides = [1, 1]} : vector<2x24xf32> to vector<2x8xf32>
    %cst_5 = arith.constant 0.353553385 : f32
    %9 = vector.broadcast %cst_5 : f32 to vector<2x8xf32>
    %10 = arith.mulf %6, %9 : vector<2x8xf32>
    %cst_6 = arith.constant dense<0.000000e+00> : vector<2x2xf32>
    %11 = tpu.matmul %10, %7, %cst_6 {dimension_numbers = #tpu.dot_dimension_numbers<[1], [1], [0], [0], [0, 0, 1, 0], [], []>} : vector<2x8xf32>, vector<2x8xf32>, vector<2x2xf32> -> vector<2x2xf32>
    %cst_7 = arith.constant dense<0xFF800000> : vector<2xf32>
    %12 = vector.multi_reduction <maximumf>, %11, %cst_7 [1] : vector<2x2xf32> to vector<2xf32>
    %13 = vector.shape_cast %12 : vector<2xf32> to vector<2x1xf32>
    %14 = vector.broadcast %13 : vector<2x1xf32> to vector<2x2xf32>
    %15 = arith.subf %11, %14 : vector<2x2xf32>
    %16 = math.exp %15 : vector<2x2xf32>
    %cst_8 = arith.constant dense<0.000000e+00> : vector<2xf32>
    %17 = vector.multi_reduction <add>, %16, %cst_8 [1] : vector<2x2xf32> to vector<2xf32>
    %18 = vector.shape_cast %17 : vector<2xf32> to vector<2x1xf32>
    %19 = tpu.reciprocal %18 {approx = true} : vector<2x1xf32> -> vector<2x1xf32>
    %20 = vector.broadcast %19 : vector<2x1xf32> to vector<2x2xf32>
    %21 = arith.mulf %16, %20 : vector<2x2xf32>
    %cst_9 = arith.constant dense<0.000000e+00> : vector<2x8xf32>
    %22 = tpu.matmul %21, %8, %cst_9 {dimension_numbers = #tpu.dot_dimension_numbers<[1], [0], [0], [1], [0, 0, 1, 1], [], []>} : vector<2x2xf32>, vector<2x8xf32>, vector<2x8xf32> -> vector<2x8xf32>
    %c0_10 = arith.constant 0 : index
    %c0_11 = arith.constant 0 : index
    %23 = vector.load %arg3[%c0_10, %c0_11] : memref<8x8xf32, #tpu.memory_space<vmem>>, vector<8x8xf32>
    %cst_12 = arith.constant dense<0.000000e+00> : vector<2x8xf32>
    %24 = tpu.matmul %22, %23, %cst_12 {dimension_numbers = #tpu.dot_dimension_numbers<[1], [0], [0], [1], [0, 0, 1, 1], [], []>} : vector<2x8xf32>, vector<8x8xf32>, vector<2x8xf32> -> vector<2x8xf32>
    %c0_13 = arith.constant 0 : index
    %c0_14 = arith.constant 0 : index
    %25 = vector.load %arg4[%c0_13, %c0_14] : memref<1x8xf32, #tpu.memory_space<vmem>>, vector<1x8xf32>
    %26 = vector.broadcast %25 : vector<1x8xf32> to vector<2x8xf32>
    %27 = arith.addf %24, %26 : vector<2x8xf32>
    %28 = arith.addf %0, %27 : vector<2x8xf32>
    %c0_15 = arith.constant 0 : index
    %c0_16 = arith.constant 0 : index
    %29 = vector.load %arg5[%c0_15, %c0_16] : memref<1x8xf32, #tpu.memory_space<vmem>>, vector<1x8xf32>
    %c0_17 = arith.constant 0 : index
    %c0_18 = arith.constant 0 : index
    %30 = vector.load %arg6[%c0_17, %c0_18] : memref<1x8xf32, #tpu.memory_space<vmem>>, vector<1x8xf32>
    %cst_19 = arith.constant dense<0.000000e+00> : vector<2xf32>
    %31 = vector.multi_reduction <add>, %28, %cst_19 [1] : vector<2x8xf32> to vector<2xf32>
    %32 = vector.shape_cast %31 : vector<2xf32> to vector<2x1xf32>
    %cst_20 = arith.constant 8.000000e+00 : f32
    %33 = vector.broadcast %cst_20 : f32 to vector<2x1xf32>
    %34 = arith.divf %32, %33 : vector<2x1xf32>
    %35 = vector.broadcast %34 : vector<2x1xf32> to vector<2x8xf32>
    %36 = arith.subf %28, %35 : vector<2x8xf32>
    %37 = arith.mulf %36, %36 : vector<2x8xf32>
    %cst_21 = arith.constant dense<0.000000e+00> : vector<2xf32>
    %38 = vector.multi_reduction <add>, %37, %cst_21 [1] : vector<2x8xf32> to vector<2xf32>
    %39 = vector.shape_cast %38 : vector<2xf32> to vector<2x1xf32>
    %cst_22 = arith.constant 8.000000e+00 : f32
    %40 = vector.broadcast %cst_22 : f32 to vector<2x1xf32>
    %41 = arith.divf %39, %40 : vector<2x1xf32>
    %42 = vector.broadcast %34 : vector<2x1xf32> to vector<2x8xf32>
    %43 = arith.subf %28, %42 : vector<2x8xf32>
    %cst_23 = arith.constant 9.99999974E-6 : f32
    %44 = vector.broadcast %cst_23 : f32 to vector<2x1xf32>
    %45 = arith.addf %41, %44 : vector<2x1xf32>
    %46 = math.rsqrt %45 : vector<2x1xf32>
    %47 = vector.broadcast %46 : vector<2x1xf32> to vector<2x8xf32>
    %48 = arith.mulf %43, %47 : vector<2x8xf32>
    %49 = vector.broadcast %29 : vector<1x8xf32> to vector<2x8xf32>
    %50 = arith.mulf %48, %49 : vector<2x8xf32>
    %51 = vector.broadcast %30 : vector<1x8xf32> to vector<2x8xf32>
    %52 = arith.addf %50, %51 : vector<2x8xf32>
    %c0_24 = arith.constant 0 : index
    %c0_25 = arith.constant 0 : index
    %53 = vector.load %arg7[%c0_24, %c0_25] : memref<8x2048xbf16, #tpu.memory_space<vmem>>, vector<8x2048xbf16>
    %54 = arith.extf %53 : vector<8x2048xbf16> to vector<8x2048xf32>
    %cst_26 = arith.constant dense<0.000000e+00> : vector<2x2048xf32>
    %55 = tpu.matmul %52, %54, %cst_26 {dimension_numbers = #tpu.dot_dimension_numbers<[1], [0], [0], [1], [0, 0, 1, 1], [], []>} : vector<2x8xf32>, vector<8x2048xf32>, vector<2x2048xf32> -> vector<2x2048xf32>
    %c0_27 = arith.constant 0 : index
    %c0_28 = arith.constant 0 : index
    %56 = vector.load %arg8[%c0_27, %c0_28] : memref<1x2048xf32, #tpu.memory_space<vmem>>, vector<1x2048xf32>
    %57 = vector.broadcast %56 : vector<1x2048xf32> to vector<2x2048xf32>
    %58 = arith.addf %55, %57 : vector<2x2048xf32>
    %cst_29 = arith.constant 0.000000e+00 : f32
    %59 = vector.broadcast %cst_29 : f32 to vector<2x2048xf32>
    %60 = arith.maximumf %58, %59 : vector<2x2048xf32>
    %c0_30 = arith.constant 0 : index
    %c0_31 = arith.constant 0 : index
    %61 = vector.load %arg9[%c0_30, %c0_31] : memref<8x2048xbf16, #tpu.memory_space<vmem>>, vector<8x2048xbf16>
    %62 = arith.extf %61 : vector<8x2048xbf16> to vector<8x2048xf32>
    %cst_32 = arith.constant dense<0.000000e+00> : vector<2x8xf32>
    %63 = tpu.matmul %60, %62, %cst_32 {dimension_numbers = #tpu.dot_dimension_numbers<[1], [1], [0], [0], [0, 0, 1, 0], [], []>} : vector<2x2048xf32>, vector<8x2048xf32>, vector<2x8xf32> -> vector<2x8xf32>
    %c0_33 = arith.constant 0 : index
    %c0_34 = arith.constant 0 : index
    %64 = vector.load %arg10[%c0_33, %c0_34] : memref<1x8xf32, #tpu.memory_space<vmem>>, vector<1x8xf32>
    %65 = vector.broadcast %64 : vector<1x8xf32> to vector<2x8xf32>
    %66 = arith.addf %63, %65 : vector<2x8xf32>
    %67 = arith.addf %52, %66 : vector<2x8xf32>
    %c0_35 = arith.constant 0 : index
    %c0_36 = arith.constant 0 : index
    %68 = vector.load %arg11[%c0_35, %c0_36] : memref<1x8xf32, #tpu.memory_space<vmem>>, vector<1x8xf32>
    %c0_37 = arith.constant 0 : index
    %c0_38 = arith.constant 0 : index
    %69 = vector.load %arg12[%c0_37, %c0_38] : memref<1x8xf32, #tpu.memory_space<vmem>>, vector<1x8xf32>
    %cst_39 = arith.constant dense<0.000000e+00> : vector<2xf32>
    %70 = vector.multi_reduction <add>, %67, %cst_39 [1] : vector<2x8xf32> to vector<2xf32>
    %71 = vector.shape_cast %70 : vector<2xf32> to vector<2x1xf32>
    %cst_40 = arith.constant 8.000000e+00 : f32
    %72 = vector.broadcast %cst_40 : f32 to vector<2x1xf32>
    %73 = arith.divf %71, %72 : vector<2x1xf32>
    %74 = vector.broadcast %73 : vector<2x1xf32> to vector<2x8xf32>
    %75 = arith.subf %67, %74 : vector<2x8xf32>
    %76 = arith.mulf %75, %75 : vector<2x8xf32>
    %cst_41 = arith.constant dense<0.000000e+00> : vector<2xf32>
    %77 = vector.multi_reduction <add>, %76, %cst_41 [1] : vector<2x8xf32> to vector<2xf32>
    %78 = vector.shape_cast %77 : vector<2xf32> to vector<2x1xf32>
    %cst_42 = arith.constant 8.000000e+00 : f32
    %79 = vector.broadcast %cst_42 : f32 to vector<2x1xf32>
    %80 = arith.divf %78, %79 : vector<2x1xf32>
    %81 = vector.broadcast %73 : vector<2x1xf32> to vector<2x8xf32>
    %82 = arith.subf %67, %81 : vector<2x8xf32>
    %cst_43 = arith.constant 9.99999974E-6 : f32
    %83 = vector.broadcast %cst_43 : f32 to vector<2x1xf32>
    %84 = arith.addf %80, %83 : vector<2x1xf32>
    %85 = math.rsqrt %84 : vector<2x1xf32>
    %86 = vector.broadcast %85 : vector<2x1xf32> to vector<2x8xf32>
    %87 = arith.mulf %82, %86 : vector<2x8xf32>
    %88 = vector.broadcast %68 : vector<1x8xf32> to vector<2x8xf32>
    %89 = arith.mulf %87, %88 : vector<2x8xf32>
    %90 = vector.broadcast %69 : vector<1x8xf32> to vector<2x8xf32>
    %91 = arith.addf %89, %90 : vector<2x8xf32>
    %c0_44 = arith.constant 0 : index
    %c0_45 = arith.constant 0 : index
    %92 = vector.load %arg13[%c0_44, %c0_45] : memref<8x128xbf16, #tpu.memory_space<vmem>>, vector<8x128xbf16>
    %93 = arith.extf %92 : vector<8x128xbf16> to vector<8x128xf32>
    %cst_46 = arith.constant dense<0.000000e+00> : vector<2x128xf32>
    %94 = tpu.matmul %91, %93, %cst_46 {dimension_numbers = #tpu.dot_dimension_numbers<[1], [0], [0], [1], [0, 0, 1, 1], [], []>} : vector<2x8xf32>, vector<8x128xf32>, vector<2x128xf32> -> vector<2x128xf32>
    %c0_47 = arith.constant 0 : index
    %c0_48 = arith.constant 0 : index
    %95 = vector.load %arg14[%c0_47, %c0_48] : memref<1x128xf32, #tpu.memory_space<vmem>>, vector<1x128xf32>
    %96 = vector.broadcast %95 : vector<1x128xf32> to vector<2x128xf32>
    %97 = arith.addf %94, %96 : vector<2x128xf32>
    %cst_49 = arith.constant 0.000000e+00 : f32
    %98 = vector.broadcast %cst_49 : f32 to vector<2x128xf32>
    %99 = arith.maximumf %97, %98 : vector<2x128xf32>
    %c0_50 = arith.constant 0 : index
    %c0_51 = arith.constant 0 : index
    %100 = vector.load %arg15[%c0_50, %c0_51] : memref<128x256xbf16, #tpu.memory_space<vmem>>, vector<128x256xbf16>
    %101 = arith.extf %100 : vector<128x256xbf16> to vector<128x256xf32>
    %cst_52 = arith.constant dense<0.000000e+00> : vector<2x256xf32>
    %102 = tpu.matmul %99, %101, %cst_52 {dimension_numbers = #tpu.dot_dimension_numbers<[1], [0], [0], [1], [0, 0, 1, 1], [], []>} : vector<2x128xf32>, vector<128x256xf32>, vector<2x256xf32> -> vector<2x256xf32>
    %c0_53 = arith.constant 0 : index
    %c0_54 = arith.constant 0 : index
    %103 = vector.load %arg16[%c0_53, %c0_54] : memref<1x256xf32, #tpu.memory_space<vmem>>, vector<1x256xf32>
    %104 = vector.broadcast %103 : vector<1x256xf32> to vector<2x256xf32>
    %105 = arith.addf %102, %104 : vector<2x256xf32>
    %cst_55 = arith.constant 0.000000e+00 : f32
    %106 = vector.broadcast %cst_55 : f32 to vector<2x256xf32>
    %107 = arith.maximumf %105, %106 : vector<2x256xf32>
    %c0_56 = arith.constant 0 : index
    %c0_57 = arith.constant 0 : index
    %108 = vector.load %arg17[%c0_56, %c0_57] : memref<256x512xbf16, #tpu.memory_space<vmem>>, vector<256x512xbf16>
    %109 = arith.extf %108 : vector<256x512xbf16> to vector<256x512xf32>
    %cst_58 = arith.constant dense<0.000000e+00> : vector<2x512xf32>
    %110 = tpu.matmul %107, %109, %cst_58 {dimension_numbers = #tpu.dot_dimension_numbers<[1], [0], [0], [1], [0, 0, 1, 1], [], []>} : vector<2x256xf32>, vector<256x512xf32>, vector<2x512xf32> -> vector<2x512xf32>
    %c0_59 = arith.constant 0 : index
    %c0_60 = arith.constant 0 : index
    %111 = vector.load %arg18[%c0_59, %c0_60] : memref<1x512xf32, #tpu.memory_space<vmem>>, vector<1x512xf32>
    %112 = vector.broadcast %111 : vector<1x512xf32> to vector<2x512xf32>
    %113 = arith.addf %110, %112 : vector<2x512xf32>
    %cst_61 = arith.constant 0.000000e+00 : f32
    %114 = vector.broadcast %cst_61 : f32 to vector<2x512xf32>
    %115 = arith.maximumf %113, %114 : vector<2x512xf32>
    %c0_62 = arith.constant 0 : index
    %c0_63 = arith.constant 0 : index
    %116 = vector.load %arg19[%c0_62, %c0_63] : memref<512x256xbf16, #tpu.memory_space<vmem>>, vector<512x256xbf16>
    %117 = arith.extf %116 : vector<512x256xbf16> to vector<512x256xf32>
    %cst_64 = arith.constant dense<0.000000e+00> : vector<2x256xf32>
    %118 = tpu.matmul %115, %117, %cst_64 {dimension_numbers = #tpu.dot_dimension_numbers<[1], [0], [0], [1], [0, 0, 1, 1], [], []>} : vector<2x512xf32>, vector<512x256xf32>, vector<2x256xf32> -> vector<2x256xf32>
    %c0_65 = arith.constant 0 : index
    %c0_66 = arith.constant 0 : index
    %119 = vector.load %arg20[%c0_65, %c0_66] : memref<1x256xf32, #tpu.memory_space<vmem>>, vector<1x256xf32>
    %120 = vector.broadcast %119 : vector<1x256xf32> to vector<2x256xf32>
    %121 = arith.addf %118, %120 : vector<2x256xf32>
    %cst_67 = arith.constant 0.000000e+00 : f32
    %122 = vector.broadcast %cst_67 : f32 to vector<2x256xf32>
    %123 = arith.maximumf %121, %122 : vector<2x256xf32>
    %c0_68 = arith.constant 0 : index
    %c0_69 = arith.constant 0 : index
    %124 = vector.load %arg21[%c0_68, %c0_69] : memref<256x128xbf16, #tpu.memory_space<vmem>>, vector<256x128xbf16>
    %125 = arith.extf %124 : vector<256x128xbf16> to vector<256x128xf32>
    %cst_70 = arith.constant dense<0.000000e+00> : vector<2x128xf32>
    %126 = tpu.matmul %123, %125, %cst_70 {dimension_numbers = #tpu.dot_dimension_numbers<[1], [0], [0], [1], [0, 0, 1, 1], [], []>} : vector<2x256xf32>, vector<256x128xf32>, vector<2x128xf32> -> vector<2x128xf32>
    %c0_71 = arith.constant 0 : index
    %c0_72 = arith.constant 0 : index
    %127 = vector.load %arg22[%c0_71, %c0_72] : memref<1x128xf32, #tpu.memory_space<vmem>>, vector<1x128xf32>
    %128 = vector.broadcast %127 : vector<1x128xf32> to vector<2x128xf32>
    %129 = arith.addf %126, %128 : vector<2x128xf32>
    %cst_73 = arith.constant 0.000000e+00 : f32
    %130 = vector.broadcast %cst_73 : f32 to vector<2x128xf32>
    %131 = arith.maximumf %129, %130 : vector<2x128xf32>
    %c0_74 = arith.constant 0 : index
    %c0_75 = arith.constant 0 : index
    %132 = vector.load %arg23[%c0_74, %c0_75] : memref<128x64xbf16, #tpu.memory_space<vmem>>, vector<128x64xbf16>
    %133 = arith.extf %132 : vector<128x64xbf16> to vector<128x64xf32>
    %cst_76 = arith.constant dense<0.000000e+00> : vector<2x64xf32>
    %134 = tpu.matmul %131, %133, %cst_76 {dimension_numbers = #tpu.dot_dimension_numbers<[1], [0], [0], [1], [0, 0, 1, 1], [], []>} : vector<2x128xf32>, vector<128x64xf32>, vector<2x64xf32> -> vector<2x64xf32>
    %c0_77 = arith.constant 0 : index
    %c0_78 = arith.constant 0 : index
    %135 = vector.load %arg24[%c0_77, %c0_78] : memref<1x64xf32, #tpu.memory_space<vmem>>, vector<1x64xf32>
    %136 = vector.broadcast %135 : vector<1x64xf32> to vector<2x64xf32>
    %137 = arith.addf %134, %136 : vector<2x64xf32>
    %cst_79 = arith.constant 0.000000e+00 : f32
    %138 = vector.broadcast %cst_79 : f32 to vector<2x64xf32>
    %139 = arith.maximumf %137, %138 : vector<2x64xf32>
    %c0_80 = arith.constant 0 : index
    %c0_81 = arith.constant 0 : index
    %140 = vector.load %arg25[%c0_80, %c0_81] : memref<64x8xbf16, #tpu.memory_space<vmem>>, vector<64x8xbf16>
    %141 = arith.extf %140 : vector<64x8xbf16> to vector<64x8xf32>
    %cst_82 = arith.constant dense<0.000000e+00> : vector<2x8xf32>
    %142 = tpu.matmul %139, %141, %cst_82 {dimension_numbers = #tpu.dot_dimension_numbers<[1], [0], [0], [1], [0, 0, 1, 1], [], []>} : vector<2x64xf32>, vector<64x8xf32>, vector<2x8xf32> -> vector<2x8xf32>
    %c0_83 = arith.constant 0 : index
    %c0_84 = arith.constant 0 : index
    %143 = vector.load %arg26[%c0_83, %c0_84] : memref<1x8xf32, #tpu.memory_space<vmem>>, vector<1x8xf32>
    %144 = vector.broadcast %143 : vector<1x8xf32> to vector<2x8xf32>
    %145 = arith.addf %142, %144 : vector<2x8xf32>
    %c0_85 = arith.constant 0 : index
    %c0_86 = arith.constant 0 : index
    %146 = vector.load %arg27[%c0_85, %c0_86] : memref<2x8xf32, #tpu.memory_space<vmem>>, vector<2x8xf32>
    tpu.vector_store %arg27[%c0_85, %c0_86], %145 {strides = array<i32>} : memref<2x8xf32, #tpu.memory_space<vmem>>, vector<2x8xf32>,
    return
  }
}

</mosaic_0001>

<llo_original>
// kernel: linear_network_forward.1
$region0: #{linear_network_forward.1}
  #allocation0 [shape = 'u32[]', space=smem, size = 0x4, offset = 0x4, fixed_abs, tag = 'smem constant byte address 0x4 - core index']
  #allocation1 [shape = 'u32[144,128]{1,0:T(1,128)}', space=vmem, size = 0x12000, scoped, tag = 'internal scratch']
  %s0 = inlined_call_operand.vmem [shape: f32[2,8], index: 0, kind: input, shape index: {}]
  %s1 = inlined_call_operand.hbm [shape: f32[8,24], index: 1, kind: input, shape index: {}]
  %s2 = inlined_call_operand.hbm [shape: f32[1,24], index: 2, kind: input, shape index: {}]
  %s3 = inlined_call_operand.hbm [shape: f32[8,8], index: 3, kind: input, shape index: {}]
  %s4 = inlined_call_operand.hbm [shape: f32[1,8], index: 4, kind: input, shape index: {}]
  %s5 = inlined_call_operand.hbm [shape: f32[1,8], index: 5, kind: input, shape index: {}]
  %s6 = inlined_call_operand.hbm [shape: f32[1,8], index: 6, kind: input, shape index: {}]
  %s7 = inlined_call_operand.vmem [shape: bf16[8,2048], index: 7, kind: input, shape index: {}]
  %s8 = inlined_call_operand.hbm [shape: f32[1,2048], index: 8, kind: input, shape index: {}]
  %s9 = inlined_call_operand.hbm [shape: bf16[8,2048], index: 9, kind: input, shape index: {}]
  %s10 = inlined_call_operand.hbm [shape: f32[1,8], index: 10, kind: input, shape index: {}]
  %s11 = inlined_call_operand.hbm [shape: f32[1,8], index: 11, kind: input, shape index: {}]
  %s12 = inlined_call_operand.hbm [shape: f32[1,8], index: 12, kind: input, shape index: {}]
  %s13 = inlined_call_operand.hbm [shape: bf16[8,128], index: 13, kind: input, shape index: {}]
  %s14 = inlined_call_operand.hbm [shape: f32[1,128], index: 14, kind: input, shape index: {}]
  %s15 = inlined_call_operand.vmem [shape: bf16[128,256], index: 15, kind: input, shape index: {}]
  %s16 = inlined_call_operand.vmem [shape: f32[1,256], index: 16, kind: input, shape index: {}]
  %s17 = inlined_call_operand.hbm [shape: bf16[256,512], index: 17, kind: input, shape index: {}]
  %s18 = inlined_call_operand.vmem [shape: f32[1,512], index: 18, kind: input, shape index: {}]
  %s19 = inlined_call_operand.hbm [shape: bf16[512,256], index: 19, kind: input, shape index: {}]
  %s20 = inlined_call_operand.vmem [shape: f32[1,256], index: 20, kind: input, shape index: {}]
  %s21 = inlined_call_operand.hbm [shape: bf16[256,128], index: 21, kind: input, shape index: {}]
  %s22 = inlined_call_operand.vmem [shape: f32[1,128], index: 22, kind: input, shape index: {}]
  %s23 = inlined_call_operand.vmem [shape: bf16[128,64], index: 23, kind: input, shape index: {}]
  %s24 = inlined_call_operand.vmem [shape: f32[1,64], index: 24, kind: input, shape index: {}]
  %s25 = inlined_call_operand.vmem [shape: bf16[64,8], index: 25, kind: input, shape index: {}]
  %s26 = inlined_call_operand.vmem [shape: f32[1,8], index: 26, kind: input, shape index: {}]
  %s27 = inlined_call_operand.hbm [shape: f32[2,8], index: 27, kind: output, shape index: {}]
  %s28 = sld [smem:[#allocation0]]
  $region182: #{linear_network_forward.1} parent=0
    _
  %s30 = ssub.s32 1, %s28
  %s31 = scalar_select 0, %s30, %s28
  $region1: #{linear_network_forward.1} parent=0
    #allocation2 [shape = 'u8[4096]{0}', space=vmem, size = 0x1000, scoped, tag = 'input window, operand 1, single buffered']
    #allocation3 [shape = 's32[1]{0}', space=sflag, size = 0x4, scoped, tag = 'scoped memory for linear_network_forward.1']
    #allocation4 [shape = 's32[1]{0}', space=sflag, size = 0x4, scoped, tag = 'scoped memory for linear_network_forward.1']
    #allocation5 [shape = 'u8[512]{0}', space=vmem, size = 0x400, scoped, tag = 'input window, operand 2, single buffered']
    #allocation6 [shape = 's32[1]{0}', space=sflag, size = 0x4, scoped, tag = 'scoped memory for linear_network_forward.1']
    #allocation7 [shape = 'u8[4096]{0}', space=vmem, size = 0x1000, scoped, tag = 'input window, operand 3, single buffered']
    #allocation8 [shape = 'u8[512]{0}', space=vmem, size = 0x400, scoped, tag = 'input window, operand 4, single buffered']
    #allocation9 [shape = 's32[1]{0}', space=sflag, size = 0x4, scoped, tag = 'scoped memory for linear_network_forward.1']
    #allocation10 [shape = 'u8[512]{0}', space=vmem, size = 0x400, scoped, tag = 'input window, operand 5, single buffered']
    #allocation11 [shape = 'u8[512]{0}', space=vmem, size = 0x400, scoped, tag = 'input window, operand 6, single buffered']
    #allocation12 [shape = 's32[1]{0}', space=sflag, size = 0x4, scoped, tag = 'scoped memory for linear_network_forward.1']
    #allocation13 [shape = 'u8[8192]{0}', space=vmem, size = 0x2000, scoped, tag = 'input window, operand 8, single buffered']
    #allocation14 [shape = 'u8[32768]{0}', space=vmem, size = 0x8000, scoped, tag = 'input window, operand 9, single buffered']
    #allocation15 [shape = 's32[1]{0}', space=sflag, size = 0x4, scoped, tag = 'scoped memory for linear_network_forward.1']
    #allocation16 [shape = 'u8[512]{0}', space=vmem, size = 0x400, scoped, tag = 'input window, operand 10, single buffered']
    #allocation17 [shape = 'u8[512]{0}', space=vmem, size = 0x400, scoped, tag = 'input window, operand 11, single buffered']
    #allocation18 [shape = 's32[1]{0}', space=sflag, size = 0x4, scoped, tag = 'scoped memory for linear_network_forward.1']
    #allocation19 [shape = 'u8[512]{0}', space=vmem, size = 0x400, scoped, tag = 'input window, operand 12, single buffered']
    #allocation20 [shape = 'u8[2048]{0}', space=vmem, size = 0x800, scoped, tag = 'input window, operand 13, single buffered']
    #allocation21 [shape = 's32[1]{0}', space=sflag, size = 0x4, scoped, tag = 'scoped memory for linear_network_forward.1']
    #allocation22 [shape = 'u8[512]{0}', space=vmem, size = 0x400, scoped, tag = 'input window, operand 14, single buffered']
    #allocation23 [shape = 'u8[262144]{0}', space=vmem, size = 0x40000, scoped, tag = 'input window, operand 17, single buffered']
    #allocation24 [shape = 's32[1]{0}', space=sflag, size = 0x4, scoped, tag = 'scoped memory for linear_network_forward.1']
    #allocation25 [shape = 'u8[262144]{0}', space=vmem, size = 0x40000, scoped, tag = 'input window, operand 19, single buffered']
    #allocation26 [shape = 'u8[65536]{0}', space=vmem, size = 0x10000, scoped, tag = 'input window, operand 21, single buffered']
    #allocation27 [shape = 's32[1]{0}', space=sflag, size = 0x4, scoped, tag = 'scoped memory for linear_network_forward.1']
    #allocation28 [shape = 'u8[1024]{0}', space=vmem, size = 0x400, scoped, tag = 'output window, operand 0, single buffered']
    %32 = vsyncpa [#allocation3], 0
    %33 = vsyncpa [#allocation6], 0
    %34 = vsyncpa [#allocation9], 0
    %35 = vsyncpa [#allocation12], 0
    %36 = vsyncpa [#allocation15], 0
    %37 = vsyncpa [#allocation18], 0
    %38 = vsyncpa [#allocation21], 0
    %39 = vsyncpa [#allocation24], 0
    %40 = vsyncpa [#allocation27], 0
    %41 = vsyncpa [#allocation4], 0
    // Predicated region
    $region2: #{linear_network_forward.1} parent=1 // pred_check
      _
    $region3: #{linear_network_forward.1} parent=1 // pred_check_branch
      %43 = sbr.rel (0) target = $region5
    $region4: #{linear_network_forward.1} parent=1 // pred_region
      _
    $region5: #{linear_network_forward.1} parent=1 // pred_fallthru
      _
    // Predicated region
    $region6: #{linear_network_forward.1} parent=1 // pred_check
      _
    $region7: #{linear_network_forward.1} parent=1 // pred_check_branch
      %45 = sbr.rel (0) target = $region9
    $region8: #{linear_network_forward.1} parent=1 // pred_region
      %s47 = ssub.s32 128, 128
      %48 = vsyncadd [#allocation3], %s47
      %s50 = sshll.u32 [#allocation2], 4
      %s51 = int_to_ptr.vmem [resolvable:$true] %s50
      %53 = dma.hbm_to_vmem [thread:$0]  %s1, 128, %s51, [#allocation3]
    $region9: #{linear_network_forward.1} parent=1 // pred_fallthru
      _
    // Predicated region
    $region10: #{linear_network_forward.1} parent=1 // pred_check
      _
    $region11: #{linear_network_forward.1} parent=1 // pred_check_branch
      %55 = sbr.rel (0) target = $region13
    $region12: #{linear_network_forward.1} parent=1 // pred_region
      %s57 = ssub.s32 16, 16
      %58 = vsyncadd [#allocation6], %s57
      %s60 = sshll.u32 [#allocation5], 4
      %s61 = int_to_ptr.vmem [resolvable:$true] %s60
      %63 = dma.hbm_to_vmem [thread:$0]  %s2, 16, %s61, [#allocation6]
    $region13: #{linear_network_forward.1} parent=1 // pred_fallthru
      _
    // Predicated region
    $region14: #{linear_network_forward.1} parent=1 // pred_check
      _
    $region15: #{linear_network_forward.1} parent=1 // pred_check_branch
      %65 = sbr.rel (0) target = $region17
    $region16: #{linear_network_forward.1} parent=1 // pred_region
      %s67 = ssub.s32 128, 128
      %68 = vsyncadd [#allocation6], %s67
      %s70 = sshll.u32 [#allocation7], 4
      %s71 = int_to_ptr.vmem [resolvable:$true] %s70
      %73 = dma.hbm_to_vmem [thread:$0]  %s3, 128, %s71, [#allocation6]
    $region17: #{linear_network_forward.1} parent=1 // pred_fallthru
      _
    // Predicated region
    $region18: #{linear_network_forward.1} parent=1 // pred_check
      _
    $region19: #{linear_network_forward.1} parent=1 // pred_check_branch
      %75 = sbr.rel (0) target = $region21
    $region20: #{linear_network_forward.1} parent=1 // pred_region
      %s77 = ssub.s32 16, 16
      %78 = vsyncadd [#allocation9], %s77
      %s80 = sshll.u32 [#allocation8], 4
      %s81 = int_to_ptr.vmem [resolvable:$true] %s80
      %83 = dma.hbm_to_vmem [thread:$0]  %s4, 16, %s81, [#allocation9]
    $region21: #{linear_network_forward.1} parent=1 // pred_fallthru
      _
    // Predicated region
    $region22: #{linear_network_forward.1} parent=1 // pred_check
      _
    $region23: #{linear_network_forward.1} parent=1 // pred_check_branch
      %85 = sbr.rel (0) target = $region25
    $region24: #{linear_network_forward.1} parent=1 // pred_region
      %s87 = ssub.s32 16, 16
      %88 = vsyncadd [#allocation9], %s87
      %s90 = sshll.u32 [#allocation10], 4
      %s91 = int_to_ptr.vmem [resolvable:$true] %s90
      %93 = dma.hbm_to_vmem [thread:$0]  %s5, 16, %s91, [#allocation9]
    $region25: #{linear_network_forward.1} parent=1 // pred_fallthru
      _
    // Predicated region
    $region26: #{linear_network_forward.1} parent=1 // pred_check
      _
    $region27: #{linear_network_forward.1} parent=1 // pred_check_branch
      %95 = sbr.rel (0) target = $region29
    $region28: #{linear_network_forward.1} parent=1 // pred_region
      %s97 = ssub.s32 16, 16
      %98 = vsyncadd [#allocation12], %s97
      %s100 = sshll.u32 [#allocation11], 4
      %s101 = int_to_ptr.vmem [resolvable:$true] %s100
      %103 = dma.hbm_to_vmem [thread:$0]  %s6, 16, %s101, [#allocation12]
    $region29: #{linear_network_forward.1} parent=1 // pred_fallthru
      _
    // Predicated region
    $region30: #{linear_network_forward.1} parent=1 // pred_check
      _
    $region31: #{linear_network_forward.1} parent=1 // pred_check_branch
      %105 = sbr.rel (0) target = $region33
    $region32: #{linear_network_forward.1} parent=1 // pred_region
      _
    $region33: #{linear_network_forward.1} parent=1 // pred_fallthru
      _
    // Predicated region
    $region34: #{linear_network_forward.1} parent=1 // pred_check
      _
    $region35: #{linear_network_forward.1} parent=1 // pred_check_branch
      %107 = sbr.rel (0) target = $region37
    $region36: #{linear_network_forward.1} parent=1 // pred_region
      %s109 = ssub.s32 256, 256
      %110 = vsyncadd [#allocation12], %s109
      %s112 = sshll.u32 [#allocation13], 4
      %s113 = int_to_ptr.vmem [resolvable:$true] %s112
      %115 = dma.hbm_to_vmem [thread:$0]  %s8, 256, %s113, [#allocation12]
    $region37: #{linear_network_forward.1} parent=1 // pred_fallthru
      _
    // Predicated region
    $region38: #{linear_network_forward.1} parent=1 // pred_check
      _
    $region39: #{linear_network_forward.1} parent=1 // pred_check_branch
      %117 = sbr.rel (0) target = $region41
    $region40: #{linear_network_forward.1} parent=1 // pred_region
      %s119 = ssub.s32 1024, 1024
      %120 = vsyncadd [#allocation15], %s119
      %s122 = sshll.u32 [#allocation14], 4
      %s123 = int_to_ptr.vmem [resolvable:$true] %s122
      %125 = dma.hbm_to_vmem [thread:$0]  %s9, 1024, %s123, [#allocation15]
    $region41: #{linear_network_forward.1} parent=1 // pred_fallthru
      _
    // Predicated region
    $region42: #{linear_network_forward.1} parent=1 // pred_check
      _
    $region43: #{linear_network_forward.1} parent=1 // pred_check_branch
      %127 = sbr.rel (0) target = $region45
    $region44: #{linear_network_forward.1} parent=1 // pred_region
      %s129 = ssub.s32 16, 16
      %130 = vsyncadd [#allocation15], %s129
      %s132 = sshll.u32 [#allocation16], 4
      %s133 = int_to_ptr.vmem [resolvable:$true] %s132
      %135 = dma.hbm_to_vmem [thread:$0]  %s10, 16, %s133, [#allocation15]
    $region45: #{linear_network_forward.1} parent=1 // pred_fallthru
      _
    // Predicated region
    $region46: #{linear_network_forward.1} parent=1 // pred_check
      _
    $region47: #{linear_network_forward.1} parent=1 // pred_check_branch
      %137 = sbr.rel (0) target = $region49
    $region48: #{linear_network_forward.1} parent=1 // pred_region
      %s139 = ssub.s32 16, 16
      %140 = vsyncadd [#allocation18], %s139
      %s142 = sshll.u32 [#allocation17], 4
      %s143 = int_to_ptr.vmem [resolvable:$true] %s142
      %145 = dma.hbm_to_vmem [thread:$0]  %s11, 16, %s143, [#allocation18]
    $region49: #{linear_network_forward.1} parent=1 // pred_fallthru
      _
    // Predicated region
    $region50: #{linear_network_forward.1} parent=1 // pred_check
      _
    $region51: #{linear_network_forward.1} parent=1 // pred_check_branch
      %147 = sbr.rel (0) target = $region53
    $region52: #{linear_network_forward.1} parent=1 // pred_region
      %s149 = ssub.s32 16, 16
      %150 = vsyncadd [#allocation18], %s149
      %s152 = sshll.u32 [#allocation19], 4
      %s153 = int_to_ptr.vmem [resolvable:$true] %s152
      %155 = dma.hbm_to_vmem [thread:$0]  %s12, 16, %s153, [#allocation18]
    $region53: #{linear_network_forward.1} parent=1 // pred_fallthru
      _
    // Predicated region
    $region54: #{linear_network_forward.1} parent=1 // pred_check
      _
    $region55: #{linear_network_forward.1} parent=1 // pred_check_branch
      %157 = sbr.rel (0) target = $region57
    $region56: #{linear_network_forward.1} parent=1 // pred_region
      %s159 = ssub.s32 64, 64
      %160 = vsyncadd [#allocation21], %s159
      %s162 = sshll.u32 [#allocation20], 4
      %s163 = int_to_ptr.vmem [resolvable:$true] %s162
      %165 = dma.hbm_to_vmem [thread:$0]  %s13, 64, %s163, [#allocation21]
    $region57: #{linear_network_forward.1} parent=1 // pred_fallthru
      _
    // Predicated region
    $region58: #{linear_network_forward.1} parent=1 // pred_check
      _
    $region59: #{linear_network_forward.1} parent=1 // pred_check_branch
      %167 = sbr.rel (0) target = $region61
    $region60: #{linear_network_forward.1} parent=1 // pred_region
      %s169 = ssub.s32 16, 16
      %170 = vsyncadd [#allocation21], %s169
      %s172 = sshll.u32 [#allocation22], 4
      %s173 = int_to_ptr.vmem [resolvable:$true] %s172
      %175 = dma.hbm_to_vmem [thread:$0]  %s14, 16, %s173, [#allocation21]
    $region61: #{linear_network_forward.1} parent=1 // pred_fallthru
      _
    // Predicated region
    $region62: #{linear_network_forward.1} parent=1 // pred_check
      _
    $region63: #{linear_network_forward.1} parent=1 // pred_check_branch
      %177 = sbr.rel (0) target = $region65
    $region64: #{linear_network_forward.1} parent=1 // pred_region
      _
    $region65: #{linear_network_forward.1} parent=1 // pred_fallthru
      _
    // Predicated region
    $region66: #{linear_network_forward.1} parent=1 // pred_check
      _
    $region67: #{linear_network_forward.1} parent=1 // pred_check_branch
      %179 = sbr.rel (0) target = $region69
    $region68: #{linear_network_forward.1} parent=1 // pred_region
      _
    $region69: #{linear_network_forward.1} parent=1 // pred_fallthru
      _
    // Predicated region
    $region70: #{linear_network_forward.1} parent=1 // pred_check
      _
    $region71: #{linear_network_forward.1} parent=1 // pred_check_branch
      %181 = sbr.rel (0) target = $region73
    $region72: #{linear_network_forward.1} parent=1 // pred_region
      %s183 = ssub.s32 8192, 8192
      %184 = vsyncadd [#allocation24], %s183
      %s185 = sshll.u32 [#allocation23], 4
      %s186 = int_to_ptr.vmem [resolvable:$true] %s185
      %191 = dma.hbm_to_vmem [thread:$0]  %s17, 8192, %s186, [#allocation24], 256, 256, 16
    $region73: #{linear_network_forward.1} parent=1 // pred_fallthru
      _
    // Predicated region
    $region74: #{linear_network_forward.1} parent=1 // pred_check
      _
    $region75: #{linear_network_forward.1} parent=1 // pred_check_branch
      %193 = sbr.rel (0) target = $region77
    $region76: #{linear_network_forward.1} parent=1 // pred_region
      _
    $region77: #{linear_network_forward.1} parent=1 // pred_fallthru
      _
    // Predicated region
    $region78: #{linear_network_forward.1} parent=1 // pred_check
      _
    $region79: #{linear_network_forward.1} parent=1 // pred_check_branch
      %195 = sbr.rel (0) target = $region81
    $region80: #{linear_network_forward.1} parent=1 // pred_region
      %s197 = ssub.s32 8192, 8192
      %198 = vsyncadd [#allocation24], %s197
      %s199 = sshll.u32 [#allocation25], 4
      %s200 = int_to_ptr.vmem [resolvable:$true] %s199
      %205 = dma.hbm_to_vmem [thread:$0]  %s19, 8192, %s200, [#allocation24], 128, 128, 8
    $region81: #{linear_network_forward.1} parent=1 // pred_fallthru
      _
    // Predicated region
    $region82: #{linear_network_forward.1} parent=1 // pred_check
      _
    $region83: #{linear_network_forward.1} parent=1 // pred_check_branch
      %207 = sbr.rel (0) target = $region85
    $region84: #{linear_network_forward.1} parent=1 // pred_region
      _
    $region85: #{linear_network_forward.1} parent=1 // pred_fallthru
      _
    // Predicated region
    $region86: #{linear_network_forward.1} parent=1 // pred_check
      _
    $region87: #{linear_network_forward.1} parent=1 // pred_check_branch
      %209 = sbr.rel (0) target = $region89
    $region88: #{linear_network_forward.1} parent=1 // pred_region
      %s211 = ssub.s32 2048, 2048
      %212 = vsyncadd [#allocation27], %s211
      %s213 = sshll.u32 [#allocation26], 4
      %s214 = int_to_ptr.vmem [resolvable:$true] %s213
      %219 = dma.hbm_to_vmem [thread:$0]  %s21, 2048, %s214, [#allocation27], 64, 64, 4
    $region89: #{linear_network_forward.1} parent=1 // pred_fallthru
      _
    // Predicated region
    $region90: #{linear_network_forward.1} parent=1 // pred_check
      _
    $region91: #{linear_network_forward.1} parent=1 // pred_check_branch
      %221 = sbr.rel (0) target = $region93
    $region92: #{linear_network_forward.1} parent=1 // pred_region
      _
    $region93: #{linear_network_forward.1} parent=1 // pred_fallthru
      _
    // Predicated region
    $region94: #{linear_network_forward.1} parent=1 // pred_check
      _
    $region95: #{linear_network_forward.1} parent=1 // pred_check_branch
      %223 = sbr.rel (0) target = $region97
    $region96: #{linear_network_forward.1} parent=1 // pred_region
      _
    $region97: #{linear_network_forward.1} parent=1 // pred_fallthru
      _
    // Predicated region
    $region98: #{linear_network_forward.1} parent=1 // pred_check
      _
    $region99: #{linear_network_forward.1} parent=1 // pred_check_branch
      %225 = sbr.rel (0) target = $region101
    $region100: #{linear_network_forward.1} parent=1 // pred_region
      _
    $region101: #{linear_network_forward.1} parent=1 // pred_fallthru
      _
    // Predicated region
    $region102: #{linear_network_forward.1} parent=1 // pred_check
      _
    $region103: #{linear_network_forward.1} parent=1 // pred_check_branch
      %227 = sbr.rel (0) target = $region105
    $region104: #{linear_network_forward.1} parent=1 // pred_region
      _
    $region105: #{linear_network_forward.1} parent=1 // pred_fallthru
      _
    // Predicated region
    $region106: #{linear_network_forward.1} parent=1 // pred_check
      _
    $region107: #{linear_network_forward.1} parent=1 // pred_check_branch
      %229 = sbr.rel (0) target = $region109
    $region108: #{linear_network_forward.1} parent=1 // pred_region
      _
    $region109: #{linear_network_forward.1} parent=1 // pred_fallthru
      _
    // Predicated region
    $region110: #{linear_network_forward.1} parent=1 // pred_check
      _
    $region111: #{linear_network_forward.1} parent=1 // pred_check_branch
      %231 = sbr.rel (0) target = $region113
    $region112: #{linear_network_forward.1} parent=1 // pred_region
      %232 = dma.done [#allocation3], 128
    $region113: #{linear_network_forward.1} parent=1 // pred_fallthru
      _
    // Predicated region
    $region114: #{linear_network_forward.1} parent=1 // pred_check
      _
    $region115: #{linear_network_forward.1} parent=1 // pred_check_branch
      %234 = sbr.rel (0) target = $region117
    $region116: #{linear_network_forward.1} parent=1 // pred_region
      %235 = dma.done [#allocation6], 16
    $region117: #{linear_network_forward.1} parent=1 // pred_fallthru
      _
    // Predicated region
    $region118: #{linear_network_forward.1} parent=1 // pred_check
      _
    $region119: #{linear_network_forward.1} parent=1 // pred_check_branch
      %237 = sbr.rel (0) target = $region121
    $region120: #{linear_network_forward.1} parent=1 // pred_region
      %238 = dma.done [#allocation6], 128
    $region121: #{linear_network_forward.1} parent=1 // pred_fallthru
      _
    // Predicated region
    $region122: #{linear_network_forward.1} parent=1 // pred_check
      _
    $region123: #{linear_network_forward.1} parent=1 // pred_check_branch
      %240 = sbr.rel (0) target = $region125
    $region124: #{linear_network_forward.1} parent=1 // pred_region
      %241 = dma.done [#allocation9], 16
    $region125: #{linear_network_forward.1} parent=1 // pred_fallthru
      _
    // Predicated region
    $region126: #{linear_network_forward.1} parent=1 // pred_check
      _
    $region127: #{linear_network_forward.1} parent=1 // pred_check_branch
      %243 = sbr.rel (0) target = $region129
    $region128: #{linear_network_forward.1} parent=1 // pred_region
      %244 = dma.done [#allocation9], 16
    $region129: #{linear_network_forward.1} parent=1 // pred_fallthru
      _
    // Predicated region
    $region130: #{linear_network_forward.1} parent=1 // pred_check
      _
    $region131: #{linear_network_forward.1} parent=1 // pred_check_branch
      %246 = sbr.rel (0) target = $region133
    $region132: #{linear_network_forward.1} parent=1 // pred_region
      %247 = dma.done [#allocation12], 16
    $region133: #{linear_network_forward.1} parent=1 // pred_fallthru
      _
    // Predicated region
    $region134: #{linear_network_forward.1} parent=1 // pred_check
      _
    $region135: #{linear_network_forward.1} parent=1 // pred_check_branch
      %249 = sbr.rel (0) target = $region137
    $region136: #{linear_network_forward.1} parent=1 // pred_region
      %250 = dma.done [#allocation12], 256
    $region137: #{linear_network_forward.1} parent=1 // pred_fallthru
      _
    // Predicated region
    $region138: #{linear_network_forward.1} parent=1 // pred_check
      _
    $region139: #{linear_network_forward.1} parent=1 // pred_check_branch
      %252 = sbr.rel (0) target = $region141
    $region140: #{linear_network_forward.1} parent=1 // pred_region
      %253 = dma.done [#allocation15], 1024
    $region141: #{linear_network_forward.1} parent=1 // pred_fallthru
      _
    // Predicated region
    $region142: #{linear_network_forward.1} parent=1 // pred_check
      _
    $region143: #{linear_network_forward.1} parent=1 // pred_check_branch
      %255 = sbr.rel (0) target = $region145
    $region144: #{linear_network_forward.1} parent=1 // pred_region
      %256 = dma.done [#allocation15], 16
    $region145: #{linear_network_forward.1} parent=1 // pred_fallthru
      _
    // Predicated region
    $region146: #{linear_network_forward.1} parent=1 // pred_check
      _
    $region147: #{linear_network_forward.1} parent=1 // pred_check_branch
      %258 = sbr.rel (0) target = $region149
    $region148: #{linear_network_forward.1} parent=1 // pred_region
      %259 = dma.done [#allocation18], 16
    $region149: #{linear_network_forward.1} parent=1 // pred_fallthru
      _
    // Predicated region
    $region150: #{linear_network_forward.1} parent=1 // pred_check
      _
    $region151: #{linear_network_forward.1} parent=1 // pred_check_branch
      %261 = sbr.rel (0) target = $region153
    $region152: #{linear_network_forward.1} parent=1 // pred_region
      %262 = dma.done [#allocation18], 16
    $region153: #{linear_network_forward.1} parent=1 // pred_fallthru
      _
    // Predicated region
    $region154: #{linear_network_forward.1} parent=1 // pred_check
      _
    $region155: #{linear_network_forward.1} parent=1 // pred_check_branch
      %264 = sbr.rel (0) target = $region157
    $region156: #{linear_network_forward.1} parent=1 // pred_region
      %265 = dma.done [#allocation21], 64
    $region157: #{linear_network_forward.1} parent=1 // pred_fallthru
      _
    // Predicated region
    $region158: #{linear_network_forward.1} parent=1 // pred_check
      _
    $region159: #{linear_network_forward.1} parent=1 // pred_check_branch
      %267 = sbr.rel (0) target = $region161
    $region160: #{linear_network_forward.1} parent=1 // pred_region
      %268 = dma.done [#allocation21], 16
    $region161: #{linear_network_forward.1} parent=1 // pred_fallthru
      _
    // Predicated region
    $region162: #{linear_network_forward.1} parent=1 // pred_check
      _
    $region163: #{linear_network_forward.1} parent=1 // pred_check_branch
      %270 = sbr.rel (0) target = $region165
    $region164: #{linear_network_forward.1} parent=1 // pred_region
      %271 = dma.done [#allocation24], 8192
    $region165: #{linear_network_forward.1} parent=1 // pred_fallthru
      _
    // Predicated region
    $region166: #{linear_network_forward.1} parent=1 // pred_check
      _
    $region167: #{linear_network_forward.1} parent=1 // pred_check_branch
      %273 = sbr.rel (0) target = $region169
    $region168: #{linear_network_forward.1} parent=1 // pred_region
      %274 = dma.done [#allocation24], 8192
    $region169: #{linear_network_forward.1} parent=1 // pred_fallthru
      _
    // Predicated region
    $region170: #{linear_network_forward.1} parent=1 // pred_check
      _
    $region171: #{linear_network_forward.1} parent=1 // pred_check_branch
      %276 = sbr.rel (0) target = $region173
    $region172: #{linear_network_forward.1} parent=1 // pred_region
      %277 = dma.done [#allocation27], 2048
    $region173: #{linear_network_forward.1} parent=1 // pred_fallthru
      _
    %v278 = vld [vmem:[%s0] sm:$0x3]
    %v279 = vld [vmem:[#allocation2] sm:$0xff]
    %v280 = vld [vmem:[#allocation5] sm:$0x1]
    %v282 = vlaneseq
    %v283 = vshrl.u32 %v282, 7
    %v284 = vsub.s32 0, %v283
    %v285 = vrot.slane %v280, %v284
    %vm287 = vcmask 64512
    %v289 = vsel %vm287, %v278, 0
    %291 = vmatprep.subr.mxu0 0.0
    %292 = vmatpush1.msra.mxu0 %v279
    %293 = vmatprep.subr.mxu0 0.0
    %294 = vmatpush1.msra.mxu0 0.0
    %295 = vmatprep.subr.mxu0 0.0
    %296 = vmatpush1.msra.mxu0 0.0
    %297 = vmatprep.subr.mxu0 0.0
    %298 = vmatpush1.msra.mxu0 0.0
    %299 = vmatprep.subr.mxu0 0.0
    %300 = vmatpush1.msra.mxu0 0.0
    %301 = vmatprep.subr.mxu0 0.0
    %302 = vmatpush1.msra.mxu0 0.0
    %303 = vmatprep.subr.mxu0 0.0
    %304 = vmatpush1.msra.mxu0 0.0
    %305 = vmatprep.subr.mxu0 0.0
    %306 = vmatpush1.msra.mxu0 0.0
    %307 = vmatprep.subr.mxu0 0.0
    %308 = vmatpush1.msra.mxu0 0.0
    %309 = vmatprep.subr.mxu0 0.0
    %310 = vmatpush1.msra.mxu0 0.0
    %311 = vmatprep.subr.mxu0 0.0
    %312 = vmatpush1.msra.mxu0 0.0
    %313 = vmatprep.subr.mxu0 0.0
    %314 = vmatpush1.msra.mxu0 0.0
    %315 = vmatprep.subr.mxu0 0.0
    %316 = vmatpush1.msra.mxu0 0.0
    %317 = vmatprep.subr.mxu0 0.0
    %318 = vmatpush1.msra.mxu0 0.0
    %319 = vmatprep.subr.mxu0 0.0
    %320 = vmatpush1.msra.mxu0 0.0
    %321 = vmatprep.subr.mxu0 0.0
    %322 = vmatpush1.msra.mxu0 0.0
    %323 = vmatprep.subr.mxu0 0.0
    %324 = vmatpush1.msra.mxu0 0.0
    %325 = vmatprep.subr.mxu0 0.0
    %326 = vmatpush1.msra.mxu0 0.0
    %327 = vmatprep.subr.mxu0 0.0
    %328 = vmatpush1.msra.mxu0 0.0
    %329 = vmatprep.subr.mxu0 0.0
    %330 = vmatpush1.msra.mxu0 0.0
    %331 = vmatprep.subr.mxu0 0.0
    %332 = vmatpush1.msra.mxu0 0.0
    %333 = vmatprep.subr.mxu0 0.0
    %334 = vmatpush1.msra.mxu0 0.0
    %335 = vmatprep.subr.mxu0 0.0
    %336 = vmatpush1.msra.mxu0 0.0
    %337 = vmatprep.subr.mxu0 0.0
    %338 = vmatpush1.msra.mxu0 0.0
    %339 = vmatprep.subr.mxu0 0.0
    %340 = vmatpush1.msra.mxu0 0.0
    %341 = vmatprep.subr.mxu0 0.0
    %342 = vmatpush1.msra.mxu0 0.0
    %343 = vmatprep.subr.mxu0 0.0
    %344 = vmatpush1.msra.mxu0 0.0
    %345 = vmatprep.subr.mxu0 0.0
    %346 = vmatpush1.msra.mxu0 0.0
    %347 = vmatprep.subr.mxu0 0.0
    %348 = vmatpush1.msra.mxu0 0.0
    %349 = vmatprep.subr.mxu0 0.0
    %350 = vmatpush1.msra.mxu0 0.0
    %351 = vmatprep.subr.mxu0 0.0
    %352 = vmatpush1.msra.mxu0 0.0
    %353 = vmatprep.subr.mxu0 0.0
    %354 = vmatpush1.msra.mxu0 0.0
    %355 = vmatprep.mubr.f32.mxu0 0.0
    %356 = vmatmul.mubr.f32.gmra.mrb[0].mxu0 %v289
    %v357 = vpop.f32.mrb[0].mxu0
    %v358 = vadd.f32 %v285, %v357
    %v359 = vpop.f32.mrb[0].mxu0
    %360 = vdwg.mxu0
    %v361 = vmul.f32 %v358, 0.35355338
    %363 = vrot.lane.b32.xlu0 %v358, 120
    %v364 = vpop.permute.xlu0 %363
    %v366 = vsel %vm287, %v361, 0
    %v368 = vsel %vm287, %v364, 0
    %370 = vmatprep.subr.mxu0 0.0
    %371 = vmatpush1.xpose.msra.mxu0 %v368
    %372 = vmatprep.subr.mxu0 0.0
    %373 = vmatpush1.xpose.msra.mxu0 0.0
    %374 = vmatprep.subr.mxu0 0.0
    %375 = vmatpush1.xpose.msra.mxu0 0.0
    %376 = vmatprep.subr.mxu0 0.0
    %377 = vmatpush1.xpose.msra.mxu0 0.0
    %378 = vmatprep.subr.mxu0 0.0
    %379 = vmatpush1.xpose.msra.mxu0 0.0
    %380 = vmatprep.subr.mxu0 0.0
    %381 = vmatpush1.xpose.msra.mxu0 0.0
    %382 = vmatprep.subr.mxu0 0.0
    %383 = vmatpush1.xpose.msra.mxu0 0.0
    %384 = vmatprep.subr.mxu0 0.0
    %385 = vmatpush1.xpose.msra.mxu0 0.0
    %386 = vmatprep.subr.mxu0 0.0
    %387 = vmatpush1.xpose.msra.mxu0 0.0
    %388 = vmatprep.subr.mxu0 0.0
    %389 = vmatpush1.xpose.msra.mxu0 0.0
    %390 = vmatprep.subr.mxu0 0.0
    %391 = vmatpush1.xpose.msra.mxu0 0.0
    %392 = vmatprep.subr.mxu0 0.0
    %393 = vmatpush1.xpose.msra.mxu0 0.0
    %394 = vmatprep.subr.mxu0 0.0
    %395 = vmatpush1.xpose.msra.mxu0 0.0
    %396 = vmatprep.subr.mxu0 0.0
    %397 = vmatpush1.xpose.msra.mxu0 0.0
    %398 = vmatprep.subr.mxu0 0.0
    %399 = vmatpush1.xpose.msra.mxu0 0.0
    %400 = vmatprep.subr.mxu0 0.0
    %401 = vmatpush1.xpose.msra.mxu0 0.0
    %402 = vmatprep.subr.mxu0 0.0
    %403 = vmatpush1.xpose.msra.mxu0 0.0
    %404 = vmatprep.subr.mxu0 0.0
    %405 = vmatpush1.xpose.msra.mxu0 0.0
    %406 = vmatprep.subr.mxu0 0.0
    %407 = vmatpush1.xpose.msra.mxu0 0.0
    %408 = vmatprep.subr.mxu0 0.0
    %409 = vmatpush1.xpose.msra.mxu0 0.0
    %410 = vmatprep.subr.mxu0 0.0
    %411 = vmatpush1.xpose.msra.mxu0 0.0
    %412 = vmatprep.subr.mxu0 0.0
    %413 = vmatpush1.xpose.msra.mxu0 0.0
    %414 = vmatprep.subr.mxu0 0.0
    %415 = vmatpush1.xpose.msra.mxu0 0.0
    %416 = vmatprep.subr.mxu0 0.0
    %417 = vmatpush1.xpose.msra.mxu0 0.0
    %418 = vmatprep.subr.mxu0 0.0
    %419 = vmatpush1.xpose.msra.mxu0 0.0
    %420 = vmatprep.subr.mxu0 0.0
    %421 = vmatpush1.xpose.msra.mxu0 0.0
    %422 = vmatprep.subr.mxu0 0.0
    %423 = vmatpush1.xpose.msra.mxu0 0.0
    %424 = vmatprep.subr.mxu0 0.0
    %425 = vmatpush1.xpose.msra.mxu0 0.0
    %426 = vmatprep.subr.mxu0 0.0
    %427 = vmatpush1.xpose.msra.mxu0 0.0
    %428 = vmatprep.subr.mxu0 0.0
    %429 = vmatpush1.xpose.msra.mxu0 0.0
    %430 = vmatprep.subr.mxu0 0.0
    %431 = vmatpush1.xpose.msra.mxu0 0.0
    %432 = vmatprep.subr.mxu0 0.0
    %433 = vmatpush1.xpose.msra.mxu0 0.0
    %434 = vmatprep.mubr.f32.mxu0 0.0
    %435 = vmatmul.mubr.f32.gmra.mrb[0].mxu0 %v366
    %v436 = vpop.f32.mrb[0].mxu0
    %v437 = vadd.f32 0.0, %v436
    %v438 = vpop.f32.mrb[0].mxu0
    %439 = vdwg.mxu0
    %vm440 = vcmask 9216
    %v441 = vsel %vm440, %v437, -inf
    %442 = vmax.xlane.f32.xlu0 %v441
    %v443 = vpop.xlane.xlu0 %442
    %v444 = vsub.f32 %v437, %v443
    %v445 = vmul.f32 %v444, 1.442695
    %v446 = vpow.pop %v445
    %v447 = vsel %vm440, %v446, 0.0
    %448 = vadd.xlane.f32.xlu0 %v447
    %v449 = vpop.xlane.xlu0 %448
    %v450 = vrcp.pop %v449
    %v451 = vmul.f32 %v446, %v450
    %452 = vrot.lane.b32.xlu0 %v358, 112
    %v453 = vpop.permute.xlu0 %452
    %vm454 = vcmask 15360
    %v456 = vsel %vm454, %v451, 0
    %vm458 = vcmask 1041408
    %v459 = vsel %vm458, %v453, 0
    %461 = vmatprep.subr.mxu0 0.0
    %462 = vmatpush1.msra.mxu0 %v459
    %463 = vmatprep.subr.mxu0 0.0
    %464 = vmatpush1.msra.mxu0 0.0
    %465 = vmatprep.subr.mxu0 0.0
    %466 = vmatpush1.msra.mxu0 0.0
    %467 = vmatprep.subr.mxu0 0.0
    %468 = vmatpush1.msra.mxu0 0.0
    %469 = vmatprep.subr.mxu0 0.0
    %470 = vmatpush1.msra.mxu0 0.0
    %471 = vmatprep.subr.mxu0 0.0
    %472 = vmatpush1.msra.mxu0 0.0
    %473 = vmatprep.subr.mxu0 0.0
    %474 = vmatpush1.msra.mxu0 0.0
    %475 = vmatprep.subr.mxu0 0.0
    %476 = vmatpush1.msra.mxu0 0.0
    %477 = vmatprep.subr.mxu0 0.0
    %478 = vmatpush1.msra.mxu0 0.0
    %479 = vmatprep.subr.mxu0 0.0
    %480 = vmatpush1.msra.mxu0 0.0
    %481 = vmatprep.subr.mxu0 0.0
    %482 = vmatpush1.msra.mxu0 0.0
    %483 = vmatprep.subr.mxu0 0.0
    %484 = vmatpush1.msra.mxu0 0.0
    %485 = vmatprep.subr.mxu0 0.0
    %486 = vmatpush1.msra.mxu0 0.0
    %487 = vmatprep.subr.mxu0 0.0
    %488 = vmatpush1.msra.mxu0 0.0
    %489 = vmatprep.subr.mxu0 0.0
    %490 = vmatpush1.msra.mxu0 0.0
    %491 = vmatprep.subr.mxu0 0.0
    %492 = vmatpush1.msra.mxu0 0.0
    %493 = vmatprep.subr.mxu0 0.0
    %494 = vmatpush1.msra.mxu0 0.0
    %495 = vmatprep.subr.mxu0 0.0
    %496 = vmatpush1.msra.mxu0 0.0
    %497 = vmatprep.subr.mxu0 0.0
    %498 = vmatpush1.msra.mxu0 0.0
    %499 = vmatprep.subr.mxu0 0.0
    %500 = vmatpush1.msra.mxu0 0.0
    %501 = vmatprep.subr.mxu0 0.0
    %502 = vmatpush1.msra.mxu0 0.0
    %503 = vmatprep.subr.mxu0 0.0
    %504 = vmatpush1.msra.mxu0 0.0
    %505 = vmatprep.subr.mxu0 0.0
    %506 = vmatpush1.msra.mxu0 0.0
    %507 = vmatprep.subr.mxu0 0.0
    %508 = vmatpush1.msra.mxu0 0.0
    %509 = vmatprep.subr.mxu0 0.0
    %510 = vmatpush1.msra.mxu0 0.0
    %511 = vmatprep.subr.mxu0 0.0
    %512 = vmatpush1.msra.mxu0 0.0
    %513 = vmatprep.subr.mxu0 0.0
    %514 = vmatpush1.msra.mxu0 0.0
    %515 = vmatprep.subr.mxu0 0.0
    %516 = vmatpush1.msra.mxu0 0.0
    %517 = vmatprep.subr.mxu0 0.0
    %518 = vmatpush1.msra.mxu0 0.0
    %519 = vmatprep.subr.mxu0 0.0
    %520 = vmatpush1.msra.mxu0 0.0
    %521 = vmatprep.subr.mxu0 0.0
    %522 = vmatpush1.msra.mxu0 0.0
    %523 = vmatprep.subr.mxu0 0.0
    %524 = vmatpush1.msra.mxu0 0.0
    %525 = vmatprep.mubr.f32.mxu0 0.0
    %526 = vmatmul.mubr.f32.gmra.mrb[0].mxu0 %v456
    %v527 = vpop.f32.mrb[0].mxu0
    %v528 = vadd.f32 0.0, %v527
    %v529 = vpop.f32.mrb[0].mxu0
    %530 = vdwg.mxu0
    %v531 = vld [vmem:[#allocation7] sm:$0xff]
    %v532 = vld [vmem:[#allocation8] sm:$0x1]
    %v534 = vlaneseq
    %v535 = vshrl.u32 %v534, 7
    %v536 = vsub.s32 0, %v535
    %v537 = vrot.slane %v532, %v536
    %v540 = vsel %vm287, %v528, 0
    %542 = vmatprep.subr.mxu0 0.0
    %543 = vmatpush1.msra.mxu0 %v531
    %544 = vmatprep.subr.mxu0 0.0
    %545 = vmatpush1.msra.mxu0 0.0
    %546 = vmatprep.subr.mxu0 0.0
    %547 = vmatpush1.msra.mxu0 0.0
    %548 = vmatprep.subr.mxu0 0.0
    %549 = vmatpush1.msra.mxu0 0.0
    %550 = vmatprep.subr.mxu0 0.0
    %551 = vmatpush1.msra.mxu0 0.0
    %552 = vmatprep.subr.mxu0 0.0
    %553 = vmatpush1.msra.mxu0 0.0
    %554 = vmatprep.subr.mxu0 0.0
    %555 = vmatpush1.msra.mxu0 0.0
    %556 = vmatprep.subr.mxu0 0.0
    %557 = vmatpush1.msra.mxu0 0.0
    %558 = vmatprep.subr.mxu0 0.0
    %559 = vmatpush1.msra.mxu0 0.0
    %560 = vmatprep.subr.mxu0 0.0
    %561 = vmatpush1.msra.mxu0 0.0
    %562 = vmatprep.subr.mxu0 0.0
    %563 = vmatpush1.msra.mxu0 0.0
    %564 = vmatprep.subr.mxu0 0.0
    %565 = vmatpush1.msra.mxu0 0.0
    %566 = vmatprep.subr.mxu0 0.0
    %567 = vmatpush1.msra.mxu0 0.0
    %568 = vmatprep.subr.mxu0 0.0
    %569 = vmatpush1.msra.mxu0 0.0
    %570 = vmatprep.subr.mxu0 0.0
    %571 = vmatpush1.msra.mxu0 0.0
    %572 = vmatprep.subr.mxu0 0.0
    %573 = vmatpush1.msra.mxu0 0.0
    %574 = vmatprep.subr.mxu0 0.0
    %575 = vmatpush1.msra.mxu0 0.0
    %576 = vmatprep.subr.mxu0 0.0
    %577 = vmatpush1.msra.mxu0 0.0
    %578 = vmatprep.subr.mxu0 0.0
    %579 = vmatpush1.msra.mxu0 0.0
    %580 = vmatprep.subr.mxu0 0.0
    %581 = vmatpush1.msra.mxu0 0.0
    %582 = vmatprep.subr.mxu0 0.0
    %583 = vmatpush1.msra.mxu0 0.0
    %584 = vmatprep.subr.mxu0 0.0
    %585 = vmatpush1.msra.mxu0 0.0
    %586 = vmatprep.subr.mxu0 0.0
    %587 = vmatpush1.msra.mxu0 0.0
    %588 = vmatprep.subr.mxu0 0.0
    %589 = vmatpush1.msra.mxu0 0.0
    %590 = vmatprep.subr.mxu0 0.0
    %591 = vmatpush1.msra.mxu0 0.0
    %592 = vmatprep.subr.mxu0 0.0
    %593 = vmatpush1.msra.mxu0 0.0
    %594 = vmatprep.subr.mxu0 0.0
    %595 = vmatpush1.msra.mxu0 0.0
    %596 = vmatprep.subr.mxu0 0.0
    %597 = vmatpush1.msra.mxu0 0.0
    %598 = vmatprep.subr.mxu0 0.0
    %599 = vmatpush1.msra.mxu0 0.0
    %600 = vmatprep.subr.mxu0 0.0
    %601 = vmatpush1.msra.mxu0 0.0
    %602 = vmatprep.subr.mxu0 0.0
    %603 = vmatpush1.msra.mxu0 0.0
    %604 = vmatprep.subr.mxu0 0.0
    %605 = vmatpush1.msra.mxu0 0.0
    %606 = vmatprep.mubr.f32.mxu0 0.0
    %607 = vmatmul.mubr.f32.gmra.mrb[0].mxu0 %v540
    %v608 = vpop.f32.mrb[0].mxu0
    %v609 = vadd.f32 %v537, %v608
    %v610 = vpop.f32.mrb[0].mxu0
    %611 = vdwg.mxu0
    %v612 = vadd.f32 %v278, %v609
    %v613 = vld [vmem:[#allocation10] sm:$0x1]
    %v614 = vld [vmem:[#allocation11] sm:$0x1]
    %vm615 = vcmask 58368
    %v616 = vsel %vm615, %v612, 0.0
    %617 = vadd.xlane.f32.xlu0 %v616
    %v618 = vpop.xlane.xlu0 %617
    %v619 = vrcp.pop 8.0
    %v620 = vmul.f32 %v618, %v619
    %v621 = vsub.f32 %v612, %v620
    %v622 = vmul.f32 %v621, %v621
    %v623 = vsel %vm615, %v622, 0.0
    %624 = vadd.xlane.f32.xlu0 %v623
    %v625 = vpop.xlane.xlu0 %624
    %v626 = vmul.f32 %v625, %v619
    %v627 = vadd.f32 %v626, 1e-05
    %v628 = vrsqrt.pop %v627
    %v629 = vmul.f32 %v621, %v628
    %v631 = vlaneseq
    %v632 = vshrl.u32 %v631, 7
    %v633 = vsub.s32 0, %v632
    %v634 = vrot.slane %v613, %v633
    %v636 = vmul.f32 %v629, %v634
    %v638 = vlaneseq
    %v639 = vshrl.u32 %v638, 7
    %v640 = vsub.s32 0, %v639
    %v641 = vrot.slane %v614, %v640
    %v643 = vadd.f32 %v636, %v641
    %v644 = vld [vmem:[%s7] sm:$0xff]
    %v645 = vld [vmem:[%s7 + $0x8] sm:$0xff]
    %v646 = vld [vmem:[%s7 + $0x10] sm:$0xff]
    %v647 = vld [vmem:[%s7 + $0x18] sm:$0xff]
    %v648 = vld [vmem:[%s7 + $0x20] sm:$0xff]
    %v649 = vld [vmem:[%s7 + $0x28] sm:$0xff]
    %v650 = vld [vmem:[%s7 + $0x30] sm:$0xff]
    %v651 = vld [vmem:[%s7 + $0x38] sm:$0xff]
    %v652 = vunpack.c.l.bf16 %v644
    %v653 = vunpack.c.h.bf16 %v644
    %v654 = vunpack.c.l.bf16 %v645
    %v655 = vunpack.c.h.bf16 %v645
    %v656 = vunpack.c.l.bf16 %v646
    %v657 = vunpack.c.h.bf16 %v646
    %v658 = vunpack.c.l.bf16 %v647
    %v659 = vunpack.c.h.bf16 %v647
    %v660 = vunpack.c.l.bf16 %v648
    %v661 = vunpack.c.h.bf16 %v648
    %v662 = vunpack.c.l.bf16 %v649
    %v663 = vunpack.c.h.bf16 %v649
    %v664 = vunpack.c.l.bf16 %v650
    %v665 = vunpack.c.h.bf16 %v650
    %v666 = vunpack.c.l.bf16 %v651
    %v667 = vunpack.c.h.bf16 %v651
    %v668 = vld [vmem:[#allocation13] sm:$0xff]
    %v669 = vld [vmem:[#allocation13 + $0x8] sm:$0xff]
    %v672 = vlaneseq
    %v673 = vshrl.u32 %v672, 7
    %v674 = vsub.s32 0, %v673
    %v675 = vrot.slane %v668, %v674
    %v676 = vlaneseq
    %v677 = vshrl.u32 %v676, 7
    %v678 = vsub.s32 1, %v677
    %v679 = vrot.slane %v668, %v678
    %v680 = vlaneseq
    %v681 = vshrl.u32 %v680, 7
    %v682 = vsub.s32 2, %v681
    %v683 = vrot.slane %v668, %v682
    %v684 = vlaneseq
    %v685 = vshrl.u32 %v684, 7
    %v686 = vsub.s32 3, %v685
    %v687 = vrot.slane %v668, %v686
    %v688 = vlaneseq
    %v689 = vshrl.u32 %v688, 7
    %v690 = vsub.s32 4, %v689
    %v691 = vrot.slane %v668, %v690
    %v692 = vlaneseq
    %v693 = vshrl.u32 %v692, 7
    %v694 = vsub.s32 5, %v693
    %v695 = vrot.slane %v668, %v694
    %v696 = vlaneseq
    %v697 = vshrl.u32 %v696, 7
    %v698 = vsub.s32 6, %v697
    %v699 = vrot.slane %v668, %v698
    %v700 = vlaneseq
    %v701 = vshrl.u32 %v700, 7
    %v702 = vsub.s32 7, %v701
    %v703 = vrot.slane %v668, %v702
    %v704 = vlaneseq
    %v705 = vshrl.u32 %v704, 7
    %v706 = vsub.s32 0, %v705
    %v707 = vrot.slane %v669, %v706
    %v708 = vlaneseq
    %v709 = vshrl.u32 %v708, 7
    %v710 = vsub.s32 1, %v709
    %v711 = vrot.slane %v669, %v710
    %v712 = vlaneseq
    %v713 = vshrl.u32 %v712, 7
    %v714 = vsub.s32 2, %v713
    %v715 = vrot.slane %v669, %v714
    %v716 = vlaneseq
    %v717 = vshrl.u32 %v716, 7
    %v718 = vsub.s32 3, %v717
    %v719 = vrot.slane %v669, %v718
    %v720 = vlaneseq
    %v721 = vshrl.u32 %v720, 7
    %v722 = vsub.s32 4, %v721
    %v723 = vrot.slane %v669, %v722
    %v724 = vlaneseq
    %v725 = vshrl.u32 %v724, 7
    %v726 = vsub.s32 5, %v725
    %v727 = vrot.slane %v669, %v726
    %v728 = vlaneseq
    %v729 = vshrl.u32 %v728, 7
    %v730 = vsub.s32 6, %v729
    %v731 = vrot.slane %v669, %v730
    %v732 = vlaneseq
    %v733 = vshrl.u32 %v732, 7
    %v734 = vsub.s32 7, %v733
    %v735 = vrot.slane %v669, %v734
    %v753 = vsel %vm287, %v643, 0
    %755 = vmatprep.subr.mxu0 %v653
    %756 = vmatpush1.msra.mxu0 %v652
    %757 = vmatprep.subr.mxu0 0.0
    %758 = vmatpush1.msra.mxu0 0.0
    %759 = vmatprep.subr.mxu0 0.0
    %760 = vmatpush1.msra.mxu0 0.0
    %761 = vmatprep.subr.mxu0 0.0
    %762 = vmatpush1.msra.mxu0 0.0
    %763 = vmatprep.subr.mxu0 0.0
    %764 = vmatpush1.msra.mxu0 0.0
    %765 = vmatprep.subr.mxu0 0.0
    %766 = vmatpush1.msra.mxu0 0.0
    %767 = vmatprep.subr.mxu0 0.0
    %768 = vmatpush1.msra.mxu0 0.0
    %769 = vmatprep.subr.mxu0 0.0
    %770 = vmatpush1.msra.mxu0 0.0
    %771 = vmatprep.subr.mxu0 0.0
    %772 = vmatpush1.msra.mxu0 0.0
    %773 = vmatprep.subr.mxu0 0.0
    %774 = vmatpush1.msra.mxu0 0.0
    %775 = vmatprep.subr.mxu0 0.0
    %776 = vmatpush1.msra.mxu0 0.0
    %777 = vmatprep.subr.mxu0 0.0
    %778 = vmatpush1.msra.mxu0 0.0
    %779 = vmatprep.subr.mxu0 0.0
    %780 = vmatpush1.msra.mxu0 0.0
    %781 = vmatprep.subr.mxu0 0.0
    %782 = vmatpush1.msra.mxu0 0.0
    %783 = vmatprep.subr.mxu0 0.0
    %784 = vmatpush1.msra.mxu0 0.0
    %785 = vmatprep.subr.mxu0 0.0
    %786 = vmatpush1.msra.mxu0 0.0
    %787 = vmatprep.subr.mxu0 0.0
    %788 = vmatpush1.msra.mxu0 0.0
    %789 = vmatprep.subr.mxu0 0.0
    %790 = vmatpush1.msra.mxu0 0.0
    %791 = vmatprep.subr.mxu0 0.0
    %792 = vmatpush1.msra.mxu0 0.0
    %793 = vmatprep.subr.mxu0 0.0
    %794 = vmatpush1.msra.mxu0 0.0
    %795 = vmatprep.subr.mxu0 0.0
    %796 = vmatpush1.msra.mxu0 0.0
    %797 = vmatprep.subr.mxu0 0.0
    %798 = vmatpush1.msra.mxu0 0.0
    %799 = vmatprep.subr.mxu0 0.0
    %800 = vmatpush1.msra.mxu0 0.0
    %801 = vmatprep.subr.mxu0 0.0
    %802 = vmatpush1.msra.mxu0 0.0
    %803 = vmatprep.subr.mxu0 0.0
    %804 = vmatpush1.msra.mxu0 0.0
    %805 = vmatprep.subr.mxu0 0.0
    %806 = vmatpush1.msra.mxu0 0.0
    %807 = vmatprep.subr.mxu0 0.0
    %808 = vmatpush1.msra.mxu0 0.0
    %809 = vmatprep.subr.mxu0 0.0
    %810 = vmatpush1.msra.mxu0 0.0
    %811 = vmatprep.subr.mxu0 0.0
    %812 = vmatpush1.msra.mxu0 0.0
    %813 = vmatprep.subr.mxu0 0.0
    %814 = vmatpush1.msra.mxu0 0.0
    %815 = vmatprep.subr.mxu0 0.0
    %816 = vmatpush1.msra.mxu0 0.0
    %817 = vmatprep.subr.mxu0 0.0
    %818 = vmatpush1.msra.mxu0 0.0
    %819 = vmatprep.mubr.f32.mxu0 0.0
    %820 = vmatmul.mubr.f32.gmra.mrb[0].mxu0 %v753
    %v821 = vpop.f32.mrb[0].mxu0
    %v822 = vadd.f32 %v675, %v821
    %v823 = vpop.f32.mrb[0].mxu0
    %v824 = vadd.f32 %v679, %v823
    %825 = vdwg.mxu0
    %826 = vmatprep.subr.mxu0 %v655
    %827 = vmatpush1.msra.mxu0 %v654
    %828 = vmatprep.subr.mxu0 0.0
    %829 = vmatpush1.msra.mxu0 0.0
    %830 = vmatprep.subr.mxu0 0.0
    %831 = vmatpush1.msra.mxu0 0.0
    %832 = vmatprep.subr.mxu0 0.0
    %833 = vmatpush1.msra.mxu0 0.0
    %834 = vmatprep.subr.mxu0 0.0
    %835 = vmatpush1.msra.mxu0 0.0
    %836 = vmatprep.subr.mxu0 0.0
    %837 = vmatpush1.msra.mxu0 0.0
    %838 = vmatprep.subr.mxu0 0.0
    %839 = vmatpush1.msra.mxu0 0.0
    %840 = vmatprep.subr.mxu0 0.0
    %841 = vmatpush1.msra.mxu0 0.0
    %842 = vmatprep.subr.mxu0 0.0
    %843 = vmatpush1.msra.mxu0 0.0
    %844 = vmatprep.subr.mxu0 0.0
    %845 = vmatpush1.msra.mxu0 0.0
    %846 = vmatprep.subr.mxu0 0.0
    %847 = vmatpush1.msra.mxu0 0.0
    %848 = vmatprep.subr.mxu0 0.0
    %849 = vmatpush1.msra.mxu0 0.0
    %850 = vmatprep.subr.mxu0 0.0
    %851 = vmatpush1.msra.mxu0 0.0
    %852 = vmatprep.subr.mxu0 0.0
    %853 = vmatpush1.msra.mxu0 0.0
    %854 = vmatprep.subr.mxu0 0.0
    %855 = vmatpush1.msra.mxu0 0.0
    %856 = vmatprep.subr.mxu0 0.0
    %857 = vmatpush1.msra.mxu0 0.0
    %858 = vmatprep.subr.mxu0 0.0
    %859 = vmatpush1.msra.mxu0 0.0
    %860 = vmatprep.subr.mxu0 0.0
    %861 = vmatpush1.msra.mxu0 0.0
    %862 = vmatprep.subr.mxu0 0.0
    %863 = vmatpush1.msra.mxu0 0.0
    %864 = vmatprep.subr.mxu0 0.0
    %865 = vmatpush1.msra.mxu0 0.0
    %866 = vmatprep.subr.mxu0 0.0
    %867 = vmatpush1.msra.mxu0 0.0
    %868 = vmatprep.subr.mxu0 0.0
    %869 = vmatpush1.msra.mxu0 0.0
    %870 = vmatprep.subr.mxu0 0.0
    %871 = vmatpush1.msra.mxu0 0.0
    %872 = vmatprep.subr.mxu0 0.0
    %873 = vmatpush1.msra.mxu0 0.0
    %874 = vmatprep.subr.mxu0 0.0
    %875 = vmatpush1.msra.mxu0 0.0
    %876 = vmatprep.subr.mxu0 0.0
    %877 = vmatpush1.msra.mxu0 0.0
    %878 = vmatprep.subr.mxu0 0.0
    %879 = vmatpush1.msra.mxu0 0.0
    %880 = vmatprep.subr.mxu0 0.0
    %881 = vmatpush1.msra.mxu0 0.0
    %882 = vmatprep.subr.mxu0 0.0
    %883 = vmatpush1.msra.mxu0 0.0
    %884 = vmatprep.subr.mxu0 0.0
    %885 = vmatpush1.msra.mxu0 0.0
    %886 = vmatprep.subr.mxu0 0.0
    %887 = vmatpush1.msra.mxu0 0.0
    %888 = vmatprep.subr.mxu0 0.0
    %889 = vmatpush1.msra.mxu0 0.0
    %890 = vmatprep.mubr.f32.mxu0 0.0
    %891 = vmatmul.mubr.f32.gmra.mrb[0].mxu0 %v753
    %v892 = vpop.f32.mrb[0].mxu0
    %v893 = vadd.f32 %v683, %v892
    %v894 = vpop.f32.mrb[0].mxu0
    %v895 = vadd.f32 %v687, %v894
    %896 = vdwg.mxu0
    %897 = vmatprep.subr.mxu0 %v657
    %898 = vmatpush1.msra.mxu0 %v656
    %899 = vmatprep.subr.mxu0 0.0
    %900 = vmatpush1.msra.mxu0 0.0
    %901 = vmatprep.subr.mxu0 0.0
    %902 = vmatpush1.msra.mxu0 0.0
    %903 = vmatprep.subr.mxu0 0.0
    %904 = vmatpush1.msra.mxu0 0.0
    %905 = vmatprep.subr.mxu0 0.0
    %906 = vmatpush1.msra.mxu0 0.0
    %907 = vmatprep.subr.mxu0 0.0
    %908 = vmatpush1.msra.mxu0 0.0
    %909 = vmatprep.subr.mxu0 0.0
    %910 = vmatpush1.msra.mxu0 0.0
    %911 = vmatprep.subr.mxu0 0.0
    %912 = vmatpush1.msra.mxu0 0.0
    %913 = vmatprep.subr.mxu0 0.0
    %914 = vmatpush1.msra.mxu0 0.0
    %915 = vmatprep.subr.mxu0 0.0
    %916 = vmatpush1.msra.mxu0 0.0
    %917 = vmatprep.subr.mxu0 0.0
    %918 = vmatpush1.msra.mxu0 0.0
    %919 = vmatprep.subr.mxu0 0.0
    %920 = vmatpush1.msra.mxu0 0.0
    %921 = vmatprep.subr.mxu0 0.0
    %922 = vmatpush1.msra.mxu0 0.0
    %923 = vmatprep.subr.mxu0 0.0
    %924 = vmatpush1.msra.mxu0 0.0
    %925 = vmatprep.subr.mxu0 0.0
    %926 = vmatpush1.msra.mxu0 0.0
    %927 = vmatprep.subr.mxu0 0.0
    %928 = vmatpush1.msra.mxu0 0.0
    %929 = vmatprep.subr.mxu0 0.0
    %930 = vmatpush1.msra.mxu0 0.0
    %931 = vmatprep.subr.mxu0 0.0
    %932 = vmatpush1.msra.mxu0 0.0
    %933 = vmatprep.subr.mxu0 0.0
    %934 = vmatpush1.msra.mxu0 0.0
    %935 = vmatprep.subr.mxu0 0.0
    %936 = vmatpush1.msra.mxu0 0.0
    %937 = vmatprep.subr.mxu0 0.0
    %938 = vmatpush1.msra.mxu0 0.0
    %939 = vmatprep.subr.mxu0 0.0
    %940 = vmatpush1.msra.mxu0 0.0
    %941 = vmatprep.subr.mxu0 0.0
    %942 = vmatpush1.msra.mxu0 0.0
    %943 = vmatprep.subr.mxu0 0.0
    %944 = vmatpush1.msra.mxu0 0.0
    %945 = vmatprep.subr.mxu0 0.0
    %946 = vmatpush1.msra.mxu0 0.0
    %947 = vmatprep.subr.mxu0 0.0
    %948 = vmatpush1.msra.mxu0 0.0
    %949 = vmatprep.subr.mxu0 0.0
    %950 = vmatpush1.msra.mxu0 0.0
    %951 = vmatprep.subr.mxu0 0.0
    %952 = vmatpush1.msra.mxu0 0.0
    %953 = vmatprep.subr.mxu0 0.0
    %954 = vmatpush1.msra.mxu0 0.0
    %955 = vmatprep.subr.mxu0 0.0
    %956 = vmatpush1.msra.mxu0 0.0
    %957 = vmatprep.subr.mxu0 0.0
    %958 = vmatpush1.msra.mxu0 0.0
    %959 = vmatprep.subr.mxu0 0.0
    %960 = vmatpush1.msra.mxu0 0.0
    %961 = vmatprep.mubr.f32.mxu0 0.0
    %962 = vmatmul.mubr.f32.gmra.mrb[0].mxu0 %v753
    %v963 = vpop.f32.mrb[0].mxu0
    %v964 = vadd.f32 %v691, %v963
    %v965 = vpop.f32.mrb[0].mxu0
    %v966 = vadd.f32 %v695, %v965
    %967 = vdwg.mxu0
    %968 = vmatprep.subr.mxu0 %v659
    %969 = vmatpush1.msra.mxu0 %v658
    %970 = vmatprep.subr.mxu0 0.0
    %971 = vmatpush1.msra.mxu0 0.0
    %972 = vmatprep.subr.mxu0 0.0
    %973 = vmatpush1.msra.mxu0 0.0
    %974 = vmatprep.subr.mxu0 0.0
    %975 = vmatpush1.msra.mxu0 0.0
    %976 = vmatprep.subr.mxu0 0.0
    %977 = vmatpush1.msra.mxu0 0.0
    %978 = vmatprep.subr.mxu0 0.0
    %979 = vmatpush1.msra.mxu0 0.0
    %980 = vmatprep.subr.mxu0 0.0
    %981 = vmatpush1.msra.mxu0 0.0
    %982 = vmatprep.subr.mxu0 0.0
    %983 = vmatpush1.msra.mxu0 0.0
    %984 = vmatprep.subr.mxu0 0.0
    %985 = vmatpush1.msra.mxu0 0.0
    %986 = vmatprep.subr.mxu0 0.0
    %987 = vmatpush1.msra.mxu0 0.0
    %988 = vmatprep.subr.mxu0 0.0
    %989 = vmatpush1.msra.mxu0 0.0
    %990 = vmatprep.subr.mxu0 0.0
    %991 = vmatpush1.msra.mxu0 0.0
    %992 = vmatprep.subr.mxu0 0.0
    %993 = vmatpush1.msra.mxu0 0.0
    %994 = vmatprep.subr.mxu0 0.0
    %995 = vmatpush1.msra.mxu0 0.0
    %996 = vmatprep.subr.mxu0 0.0
    %997 = vmatpush1.msra.mxu0 0.0
    %998 = vmatprep.subr.mxu0 0.0
    %999 = vmatpush1.msra.mxu0 0.0
    %1000 = vmatprep.subr.mxu0 0.0
    %1001 = vmatpush1.msra.mxu0 0.0
    %1002 = vmatprep.subr.mxu0 0.0
    %1003 = vmatpush1.msra.mxu0 0.0
    %1004 = vmatprep.subr.mxu0 0.0
    %1005 = vmatpush1.msra.mxu0 0.0
    %1006 = vmatprep.subr.mxu0 0.0
    %1007 = vmatpush1.msra.mxu0 0.0
    %1008 = vmatprep.subr.mxu0 0.0
    %1009 = vmatpush1.msra.mxu0 0.0
    %1010 = vmatprep.subr.mxu0 0.0
    %1011 = vmatpush1.msra.mxu0 0.0
    %1012 = vmatprep.subr.mxu0 0.0
    %1013 = vmatpush1.msra.mxu0 0.0
    %1014 = vmatprep.subr.mxu0 0.0
    %1015 = vmatpush1.msra.mxu0 0.0
    %1016 = vmatprep.subr.mxu0 0.0
    %1017 = vmatpush1.msra.mxu0 0.0
    %1018 = vmatprep.subr.mxu0 0.0
    %1019 = vmatpush1.msra.mxu0 0.0
    %1020 = vmatprep.subr.mxu0 0.0
    %1021 = vmatpush1.msra.mxu0 0.0
    %1022 = vmatprep.subr.mxu0 0.0
    %1023 = vmatpush1.msra.mxu0 0.0
    %1024 = vmatprep.subr.mxu0 0.0
    %1025 = vmatpush1.msra.mxu0 0.0
    %1026 = vmatprep.subr.mxu0 0.0
    %1027 = vmatpush1.msra.mxu0 0.0
    %1028 = vmatprep.subr.mxu0 0.0
    %1029 = vmatpush1.msra.mxu0 0.0
    %1030 = vmatprep.subr.mxu0 0.0
    %1031 = vmatpush1.msra.mxu0 0.0
    %1032 = vmatprep.mubr.f32.mxu0 0.0
    %1033 = vmatmul.mubr.f32.gmra.mrb[0].mxu0 %v753
    %v1034 = vpop.f32.mrb[0].mxu0
    %v1035 = vadd.f32 %v699, %v1034
    %v1036 = vpop.f32.mrb[0].mxu0
    %v1037 = vadd.f32 %v703, %v1036
    %1038 = vdwg.mxu0
    %1039 = vmatprep.subr.mxu0 %v661
    %1040 = vmatpush1.msra.mxu0 %v660
    %1041 = vmatprep.subr.mxu0 0.0
    %1042 = vmatpush1.msra.mxu0 0.0
    %1043 = vmatprep.subr.mxu0 0.0
    %1044 = vmatpush1.msra.mxu0 0.0
    %1045 = vmatprep.subr.mxu0 0.0
    %1046 = vmatpush1.msra.mxu0 0.0
    %1047 = vmatprep.subr.mxu0 0.0
    %1048 = vmatpush1.msra.mxu0 0.0
    %1049 = vmatprep.subr.mxu0 0.0
    %1050 = vmatpush1.msra.mxu0 0.0
    %1051 = vmatprep.subr.mxu0 0.0
    %1052 = vmatpush1.msra.mxu0 0.0
    %1053 = vmatprep.subr.mxu0 0.0
    %1054 = vmatpush1.msra.mxu0 0.0
    %1055 = vmatprep.subr.mxu0 0.0
    %1056 = vmatpush1.msra.mxu0 0.0
    %1057 = vmatprep.subr.mxu0 0.0
    %1058 = vmatpush1.msra.mxu0 0.0
    %1059 = vmatprep.subr.mxu0 0.0
    %1060 = vmatpush1.msra.mxu0 0.0
    %1061 = vmatprep.subr.mxu0 0.0
    %1062 = vmatpush1.msra.mxu0 0.0
    %1063 = vmatprep.subr.mxu0 0.0
    %1064 = vmatpush1.msra.mxu0 0.0
    %1065 = vmatprep.subr.mxu0 0.0
    %1066 = vmatpush1.msra.mxu0 0.0
    %1067 = vmatprep.subr.mxu0 0.0
    %1068 = vmatpush1.msra.mxu0 0.0
    %1069 = vmatprep.subr.mxu0 0.0
    %1070 = vmatpush1.msra.mxu0 0.0
    %1071 = vmatprep.subr.mxu0 0.0
    %1072 = vmatpush1.msra.mxu0 0.0
    %1073 = vmatprep.subr.mxu0 0.0
    %1074 = vmatpush1.msra.mxu0 0.0
    %1075 = vmatprep.subr.mxu0 0.0
    %1076 = vmatpush1.msra.mxu0 0.0
    %1077 = vmatprep.subr.mxu0 0.0
    %1078 = vmatpush1.msra.mxu0 0.0
    %1079 = vmatprep.subr.mxu0 0.0
    %1080 = vmatpush1.msra.mxu0 0.0
    %1081 = vmatprep.subr.mxu0 0.0
    %1082 = vmatpush1.msra.mxu0 0.0
    %1083 = vmatprep.subr.mxu0 0.0
    %1084 = vmatpush1.msra.mxu0 0.0
    %1085 = vmatprep.subr.mxu0 0.0
    %1086 = vmatpush1.msra.mxu0 0.0
    %1087 = vmatprep.subr.mxu0 0.0
    %1088 = vmatpush1.msra.mxu0 0.0
    %1089 = vmatprep.subr.mxu0 0.0
    %1090 = vmatpush1.msra.mxu0 0.0
    %1091 = vmatprep.subr.mxu0 0.0
    %1092 = vmatpush1.msra.mxu0 0.0
    %1093 = vmatprep.subr.mxu0 0.0
    %1094 = vmatpush1.msra.mxu0 0.0
    %1095 = vmatprep.subr.mxu0 0.0
    %1096 = vmatpush1.msra.mxu0 0.0
    %1097 = vmatprep.subr.mxu0 0.0
    %1098 = vmatpush1.msra.mxu0 0.0
    %1099 = vmatprep.subr.mxu0 0.0
    %1100 = vmatpush1.msra.mxu0 0.0
    %1101 = vmatprep.subr.mxu0 0.0
    %1102 = vmatpush1.msra.mxu0 0.0
    %1103 = vmatprep.mubr.f32.mxu0 0.0
    %1104 = vmatmul.mubr.f32.gmra.mrb[0].mxu0 %v753
    %v1105 = vpop.f32.mrb[0].mxu0
    %v1106 = vadd.f32 %v707, %v1105
    %v1107 = vpop.f32.mrb[0].mxu0
    %v1108 = vadd.f32 %v711, %v1107
    %1109 = vdwg.mxu0
    %1110 = vmatprep.subr.mxu0 %v663
    %1111 = vmatpush1.msra.mxu0 %v662
    %1112 = vmatprep.subr.mxu0 0.0
    %1113 = vmatpush1.msra.mxu0 0.0
    %1114 = vmatprep.subr.mxu0 0.0
    %1115 = vmatpush1.msra.mxu0 0.0
    %1116 = vmatprep.subr.mxu0 0.0
    %1117 = vmatpush1.msra.mxu0 0.0
    %1118 = vmatprep.subr.mxu0 0.0
    %1119 = vmatpush1.msra.mxu0 0.0
    %1120 = vmatprep.subr.mxu0 0.0
    %1121 = vmatpush1.msra.mxu0 0.0
    %1122 = vmatprep.subr.mxu0 0.0
    %1123 = vmatpush1.msra.mxu0 0.0
    %1124 = vmatprep.subr.mxu0 0.0
    %1125 = vmatpush1.msra.mxu0 0.0
    %1126 = vmatprep.subr.mxu0 0.0
    %1127 = vmatpush1.msra.mxu0 0.0
    %1128 = vmatprep.subr.mxu0 0.0
    %1129 = vmatpush1.msra.mxu0 0.0
    %1130 = vmatprep.subr.mxu0 0.0
    %1131 = vmatpush1.msra.mxu0 0.0
    %1132 = vmatprep.subr.mxu0 0.0
    %1133 = vmatpush1.msra.mxu0 0.0
    %1134 = vmatprep.subr.mxu0 0.0
    %1135 = vmatpush1.msra.mxu0 0.0
    %1136 = vmatprep.subr.mxu0 0.0
    %1137 = vmatpush1.msra.mxu0 0.0
    %1138 = vmatprep.subr.mxu0 0.0
    %1139 = vmatpush1.msra.mxu0 0.0
    %1140 = vmatprep.subr.mxu0 0.0
    %1141 = vmatpush1.msra.mxu0 0.0
    %1142 = vmatprep.subr.mxu0 0.0
    %1143 = vmatpush1.msra.mxu0 0.0
    %1144 = vmatprep.subr.mxu0 0.0
    %1145 = vmatpush1.msra.mxu0 0.0
    %1146 = vmatprep.subr.mxu0 0.0
    %1147 = vmatpush1.msra.mxu0 0.0
    %1148 = vmatprep.subr.mxu0 0.0
    %1149 = vmatpush1.msra.mxu0 0.0
    %1150 = vmatprep.subr.mxu0 0.0
    %1151 = vmatpush1.msra.mxu0 0.0
    %1152 = vmatprep.subr.mxu0 0.0
    %1153 = vmatpush1.msra.mxu0 0.0
    %1154 = vmatprep.subr.mxu0 0.0
    %1155 = vmatpush1.msra.mxu0 0.0
    %1156 = vmatprep.subr.mxu0 0.0
    %1157 = vmatpush1.msra.mxu0 0.0
    %1158 = vmatprep.subr.mxu0 0.0
    %1159 = vmatpush1.msra.mxu0 0.0
    %1160 = vmatprep.subr.mxu0 0.0
    %1161 = vmatpush1.msra.mxu0 0.0
    %1162 = vmatprep.subr.mxu0 0.0
    %1163 = vmatpush1.msra.mxu0 0.0
    %1164 = vmatprep.subr.mxu0 0.0
    %1165 = vmatpush1.msra.mxu0 0.0
    %1166 = vmatprep.subr.mxu0 0.0
    %1167 = vmatpush1.msra.mxu0 0.0
    %1168 = vmatprep.subr.mxu0 0.0
    %1169 = vmatpush1.msra.mxu0 0.0
    %1170 = vmatprep.subr.mxu0 0.0
    %1171 = vmatpush1.msra.mxu0 0.0
    %1172 = vmatprep.subr.mxu0 0.0
    %1173 = vmatpush1.msra.mxu0 0.0
    %1174 = vmatprep.mubr.f32.mxu0 0.0
    %1175 = vmatmul.mubr.f32.gmra.mrb[0].mxu0 %v753
    %v1176 = vpop.f32.mrb[0].mxu0
    %v1177 = vadd.f32 %v715, %v1176
    %v1178 = vpop.f32.mrb[0].mxu0
    %v1179 = vadd.f32 %v719, %v1178
    %1180 = vdwg.mxu0
    %1181 = vmatprep.subr.mxu0 %v665
    %1182 = vmatpush1.msra.mxu0 %v664
    %1183 = vmatprep.subr.mxu0 0.0
    %1184 = vmatpush1.msra.mxu0 0.0
    %1185 = vmatprep.subr.mxu0 0.0
    %1186 = vmatpush1.msra.mxu0 0.0
    %1187 = vmatprep.subr.mxu0 0.0
    %1188 = vmatpush1.msra.mxu0 0.0
    %1189 = vmatprep.subr.mxu0 0.0
    %1190 = vmatpush1.msra.mxu0 0.0
    %1191 = vmatprep.subr.mxu0 0.0
    %1192 = vmatpush1.msra.mxu0 0.0
    %1193 = vmatprep.subr.mxu0 0.0
    %1194 = vmatpush1.msra.mxu0 0.0
    %1195 = vmatprep.subr.mxu0 0.0
    %1196 = vmatpush1.msra.mxu0 0.0
    %1197 = vmatprep.subr.mxu0 0.0
    %1198 = vmatpush1.msra.mxu0 0.0
    %1199 = vmatprep.subr.mxu0 0.0
    %1200 = vmatpush1.msra.mxu0 0.0
    %1201 = vmatprep.subr.mxu0 0.0
    %1202 = vmatpush1.msra.mxu0 0.0
    %1203 = vmatprep.subr.mxu0 0.0
    %1204 = vmatpush1.msra.mxu0 0.0
    %1205 = vmatprep.subr.mxu0 0.0
    %1206 = vmatpush1.msra.mxu0 0.0
    %1207 = vmatprep.subr.mxu0 0.0
    %1208 = vmatpush1.msra.mxu0 0.0
    %1209 = vmatprep.subr.mxu0 0.0
    %1210 = vmatpush1.msra.mxu0 0.0
    %1211 = vmatprep.subr.mxu0 0.0
    %1212 = vmatpush1.msra.mxu0 0.0
    %1213 = vmatprep.subr.mxu0 0.0
    %1214 = vmatpush1.msra.mxu0 0.0
    %1215 = vmatprep.subr.mxu0 0.0
    %1216 = vmatpush1.msra.mxu0 0.0
    %1217 = vmatprep.subr.mxu0 0.0
    %1218 = vmatpush1.msra.mxu0 0.0
    %1219 = vmatprep.subr.mxu0 0.0
    %1220 = vmatpush1.msra.mxu0 0.0
    %1221 = vmatprep.subr.mxu0 0.0
    %1222 = vmatpush1.msra.mxu0 0.0
    %1223 = vmatprep.subr.mxu0 0.0
    %1224 = vmatpush1.msra.mxu0 0.0
    %1225 = vmatprep.subr.mxu0 0.0
    %1226 = vmatpush1.msra.mxu0 0.0
    %1227 = vmatprep.subr.mxu0 0.0
    %1228 = vmatpush1.msra.mxu0 0.0
    %1229 = vmatprep.subr.mxu0 0.0
    %1230 = vmatpush1.msra.mxu0 0.0
    %1231 = vmatprep.subr.mxu0 0.0
    %1232 = vmatpush1.msra.mxu0 0.0
    %1233 = vmatprep.subr.mxu0 0.0
    %1234 = vmatpush1.msra.mxu0 0.0
    %1235 = vmatprep.subr.mxu0 0.0
    %1236 = vmatpush1.msra.mxu0 0.0
    %1237 = vmatprep.subr.mxu0 0.0
    %1238 = vmatpush1.msra.mxu0 0.0
    %1239 = vmatprep.subr.mxu0 0.0
    %1240 = vmatpush1.msra.mxu0 0.0
    %1241 = vmatprep.subr.mxu0 0.0
    %1242 = vmatpush1.msra.mxu0 0.0
    %1243 = vmatprep.subr.mxu0 0.0
    %1244 = vmatpush1.msra.mxu0 0.0
    %1245 = vmatprep.mubr.f32.mxu0 0.0
    %1246 = vmatmul.mubr.f32.gmra.mrb[0].mxu0 %v753
    %v1247 = vpop.f32.mrb[0].mxu0
    %v1248 = vadd.f32 %v723, %v1247
    %v1249 = vpop.f32.mrb[0].mxu0
    %v1250 = vadd.f32 %v727, %v1249
    %1251 = vdwg.mxu0
    %1252 = vmatprep.subr.mxu0 %v667
    %1253 = vmatpush1.msra.mxu0 %v666
    %1254 = vmatprep.subr.mxu0 0.0
    %1255 = vmatpush1.msra.mxu0 0.0
    %1256 = vmatprep.subr.mxu0 0.0
    %1257 = vmatpush1.msra.mxu0 0.0
    %1258 = vmatprep.subr.mxu0 0.0
    %1259 = vmatpush1.msra.mxu0 0.0
    %1260 = vmatprep.subr.mxu0 0.0
    %1261 = vmatpush1.msra.mxu0 0.0
    %1262 = vmatprep.subr.mxu0 0.0
    %1263 = vmatpush1.msra.mxu0 0.0
    %1264 = vmatprep.subr.mxu0 0.0
    %1265 = vmatpush1.msra.mxu0 0.0
    %1266 = vmatprep.subr.mxu0 0.0
    %1267 = vmatpush1.msra.mxu0 0.0
    %1268 = vmatprep.subr.mxu0 0.0
    %1269 = vmatpush1.msra.mxu0 0.0
    %1270 = vmatprep.subr.mxu0 0.0
    %1271 = vmatpush1.msra.mxu0 0.0
    %1272 = vmatprep.subr.mxu0 0.0
    %1273 = vmatpush1.msra.mxu0 0.0
    %1274 = vmatprep.subr.mxu0 0.0
    %1275 = vmatpush1.msra.mxu0 0.0
    %1276 = vmatprep.subr.mxu0 0.0
    %1277 = vmatpush1.msra.mxu0 0.0
    %1278 = vmatprep.subr.mxu0 0.0
    %1279 = vmatpush1.msra.mxu0 0.0
    %1280 = vmatprep.subr.mxu0 0.0
    %1281 = vmatpush1.msra.mxu0 0.0
    %1282 = vmatprep.subr.mxu0 0.0
    %1283 = vmatpush1.msra.mxu0 0.0
    %1284 = vmatprep.subr.mxu0 0.0
    %1285 = vmatpush1.msra.mxu0 0.0
    %1286 = vmatprep.subr.mxu0 0.0
    %1287 = vmatpush1.msra.mxu0 0.0
    %1288 = vmatprep.subr.mxu0 0.0
    %1289 = vmatpush1.msra.mxu0 0.0
    %1290 = vmatprep.subr.mxu0 0.0
    %1291 = vmatpush1.msra.mxu0 0.0
    %1292 = vmatprep.subr.mxu0 0.0
    %1293 = vmatpush1.msra.mxu0 0.0
    %1294 = vmatprep.subr.mxu0 0.0
    %1295 = vmatpush1.msra.mxu0 0.0
    %1296 = vmatprep.subr.mxu0 0.0
    %1297 = vmatpush1.msra.mxu0 0.0
    %1298 = vmatprep.subr.mxu0 0.0
    %1299 = vmatpush1.msra.mxu0 0.0
    %1300 = vmatprep.subr.mxu0 0.0
    %1301 = vmatpush1.msra.mxu0 0.0
    %1302 = vmatprep.subr.mxu0 0.0
    %1303 = vmatpush1.msra.mxu0 0.0
    %1304 = vmatprep.subr.mxu0 0.0
    %1305 = vmatpush1.msra.mxu0 0.0
    %1306 = vmatprep.subr.mxu0 0.0
    %1307 = vmatpush1.msra.mxu0 0.0
    %1308 = vmatprep.subr.mxu0 0.0
    %1309 = vmatpush1.msra.mxu0 0.0
    %1310 = vmatprep.subr.mxu0 0.0
    %1311 = vmatpush1.msra.mxu0 0.0
    %1312 = vmatprep.subr.mxu0 0.0
    %1313 = vmatpush1.msra.mxu0 0.0
    %1314 = vmatprep.subr.mxu0 0.0
    %1315 = vmatpush1.msra.mxu0 0.0
    %1316 = vmatprep.mubr.f32.mxu0 0.0
    %1317 = vmatmul.mubr.f32.gmra.mrb[0].mxu0 %v753
    %v1318 = vpop.f32.mrb[0].mxu0
    %v1319 = vadd.f32 %v731, %v1318
    %v1320 = vpop.f32.mrb[0].mxu0
    %v1321 = vadd.f32 %v735, %v1320
    %1322 = vdwg.mxu0
    %v1323 = vmax.f32 %v822, 0.0
    %v1324 = vmax.f32 %v824, 0.0
    %v1325 = vmax.f32 %v893, 0.0
    %v1326 = vmax.f32 %v895, 0.0
    %v1327 = vmax.f32 %v964, 0.0
    %v1328 = vmax.f32 %v966, 0.0
    %v1329 = vmax.f32 %v1035, 0.0
    %v1330 = vmax.f32 %v1037, 0.0
    %v1331 = vmax.f32 %v1106, 0.0
    %v1332 = vmax.f32 %v1108, 0.0
    %v1333 = vmax.f32 %v1177, 0.0
    %v1334 = vmax.f32 %v1179, 0.0
    %v1335 = vmax.f32 %v1248, 0.0
    %v1336 = vmax.f32 %v1250, 0.0
    %v1337 = vmax.f32 %v1319, 0.0
    %v1338 = vmax.f32 %v1321, 0.0
    %v1339 = vld [vmem:[#allocation14] sm:$0xff]
    %v1340 = vld [vmem:[#allocation14 + $0x8] sm:$0xff]
    %v1341 = vld [vmem:[#allocation14 + $0x10] sm:$0xff]
    %v1342 = vld [vmem:[#allocation14 + $0x18] sm:$0xff]
    %v1343 = vld [vmem:[#allocation14 + $0x20] sm:$0xff]
    %v1344 = vld [vmem:[#allocation14 + $0x28] sm:$0xff]
    %v1345 = vld [vmem:[#allocation14 + $0x30] sm:$0xff]
    %v1346 = vld [vmem:[#allocation14 + $0x38] sm:$0xff]
    %v1347 = vunpack.c.l.bf16 %v1339
    %v1348 = vunpack.c.h.bf16 %v1339
    %v1349 = vunpack.c.l.bf16 %v1340
    %v1350 = vunpack.c.h.bf16 %v1340
    %v1351 = vunpack.c.l.bf16 %v1341
    %v1352 = vunpack.c.h.bf16 %v1341
    %v1353 = vunpack.c.l.bf16 %v1342
    %v1354 = vunpack.c.h.bf16 %v1342
    %v1355 = vunpack.c.l.bf16 %v1343
    %v1356 = vunpack.c.h.bf16 %v1343
    %v1357 = vunpack.c.l.bf16 %v1344
    %v1358 = vunpack.c.h.bf16 %v1344
    %v1359 = vunpack.c.l.bf16 %v1345
    %v1360 = vunpack.c.h.bf16 %v1345
    %v1361 = vunpack.c.l.bf16 %v1346
    %v1362 = vunpack.c.h.bf16 %v1346
    %v1363 = vld [vmem:[#allocation16] sm:$0x1]
    %v1365 = vlaneseq
    %v1366 = vshrl.u32 %v1365, 7
    %v1367 = vsub.s32 0, %v1366
    %v1368 = vrot.slane %v1363, %v1367
    %1370 = vmatprep.subr.mxu0 %v1348
    %1371 = vmatpush1.xpose.msra.mxu0 %v1347
    %1372 = vmatprep.subr.mxu0 0.0
    %1373 = vmatpush1.xpose.msra.mxu0 0.0
    %1374 = vmatprep.subr.mxu0 0.0
    %1375 = vmatpush1.xpose.msra.mxu0 0.0
    %1376 = vmatprep.subr.mxu0 0.0
    %1377 = vmatpush1.xpose.msra.mxu0 0.0
    %1378 = vmatprep.subr.mxu0 0.0
    %1379 = vmatpush1.xpose.msra.mxu0 0.0
    %1380 = vmatprep.subr.mxu0 0.0
    %1381 = vmatpush1.xpose.msra.mxu0 0.0
    %1382 = vmatprep.subr.mxu0 0.0
    %1383 = vmatpush1.xpose.msra.mxu0 0.0
    %1384 = vmatprep.subr.mxu0 0.0
    %1385 = vmatpush1.xpose.msra.mxu0 0.0
    %1386 = vmatprep.subr.mxu0 0.0
    %1387 = vmatpush1.xpose.msra.mxu0 0.0
    %1388 = vmatprep.subr.mxu0 0.0
    %1389 = vmatpush1.xpose.msra.mxu0 0.0
    %1390 = vmatprep.subr.mxu0 0.0
    %1391 = vmatpush1.xpose.msra.mxu0 0.0
    %1392 = vmatprep.subr.mxu0 0.0
    %1393 = vmatpush1.xpose.msra.mxu0 0.0
    %1394 = vmatprep.subr.mxu0 0.0
    %1395 = vmatpush1.xpose.msra.mxu0 0.0
    %1396 = vmatprep.subr.mxu0 0.0
    %1397 = vmatpush1.xpose.msra.mxu0 0.0
    %1398 = vmatprep.subr.mxu0 0.0
    %1399 = vmatpush1.xpose.msra.mxu0 0.0
    %1400 = vmatprep.subr.mxu0 0.0
    %1401 = vmatpush1.xpose.msra.mxu0 0.0
    %1402 = vmatprep.subr.mxu0 0.0
    %1403 = vmatpush1.xpose.msra.mxu0 0.0
    %1404 = vmatprep.subr.mxu0 0.0
    %1405 = vmatpush1.xpose.msra.mxu0 0.0
    %1406 = vmatprep.subr.mxu0 0.0
    %1407 = vmatpush1.xpose.msra.mxu0 0.0
    %1408 = vmatprep.subr.mxu0 0.0
    %1409 = vmatpush1.xpose.msra.mxu0 0.0
    %1410 = vmatprep.subr.mxu0 0.0
    %1411 = vmatpush1.xpose.msra.mxu0 0.0
    %1412 = vmatprep.subr.mxu0 0.0
    %1413 = vmatpush1.xpose.msra.mxu0 0.0
    %1414 = vmatprep.subr.mxu0 0.0
    %1415 = vmatpush1.xpose.msra.mxu0 0.0
    %1416 = vmatprep.subr.mxu0 0.0
    %1417 = vmatpush1.xpose.msra.mxu0 0.0
    %1418 = vmatprep.subr.mxu0 0.0
    %1419 = vmatpush1.xpose.msra.mxu0 0.0
    %1420 = vmatprep.subr.mxu0 0.0
    %1421 = vmatpush1.xpose.msra.mxu0 0.0
    %1422 = vmatprep.subr.mxu0 0.0
    %1423 = vmatpush1.xpose.msra.mxu0 0.0
    %1424 = vmatprep.subr.mxu0 0.0
    %1425 = vmatpush1.xpose.msra.mxu0 0.0
    %1426 = vmatprep.subr.mxu0 0.0
    %1427 = vmatpush1.xpose.msra.mxu0 0.0
    %1428 = vmatprep.subr.mxu0 0.0
    %1429 = vmatpush1.xpose.msra.mxu0 0.0
    %1430 = vmatprep.subr.mxu0 0.0
    %1431 = vmatpush1.xpose.msra.mxu0 0.0
    %1432 = vmatprep.subr.mxu0 0.0
    %1433 = vmatpush1.xpose.msra.mxu0 0.0
    %1434 = vmatprep.mubr.f32.mxu0 %v1324
    %1435 = vmatmul.mubr.f32.gmra.mrb[0].mxu0 %v1323
    %v1436 = vpop.f32.mrb[0].mxu0
    %v1437 = vadd.f32 %v1368, %v1436
    %v1438 = vpop.f32.mrb[0].mxu0
    %1439 = vdwg.mxu0
    %1440 = vmatprep.subr.mxu0 %v1350
    %1441 = vmatpush1.xpose.msra.mxu0 %v1349
    %1442 = vmatprep.subr.mxu0 0.0
    %1443 = vmatpush1.xpose.msra.mxu0 0.0
    %1444 = vmatprep.subr.mxu0 0.0
    %1445 = vmatpush1.xpose.msra.mxu0 0.0
    %1446 = vmatprep.subr.mxu0 0.0
    %1447 = vmatpush1.xpose.msra.mxu0 0.0
    %1448 = vmatprep.subr.mxu0 0.0
    %1449 = vmatpush1.xpose.msra.mxu0 0.0
    %1450 = vmatprep.subr.mxu0 0.0
    %1451 = vmatpush1.xpose.msra.mxu0 0.0
    %1452 = vmatprep.subr.mxu0 0.0
    %1453 = vmatpush1.xpose.msra.mxu0 0.0
    %1454 = vmatprep.subr.mxu0 0.0
    %1455 = vmatpush1.xpose.msra.mxu0 0.0
    %1456 = vmatprep.subr.mxu0 0.0
    %1457 = vmatpush1.xpose.msra.mxu0 0.0
    %1458 = vmatprep.subr.mxu0 0.0
    %1459 = vmatpush1.xpose.msra.mxu0 0.0
    %1460 = vmatprep.subr.mxu0 0.0
    %1461 = vmatpush1.xpose.msra.mxu0 0.0
    %1462 = vmatprep.subr.mxu0 0.0
    %1463 = vmatpush1.xpose.msra.mxu0 0.0
    %1464 = vmatprep.subr.mxu0 0.0
    %1465 = vmatpush1.xpose.msra.mxu0 0.0
    %1466 = vmatprep.subr.mxu0 0.0
    %1467 = vmatpush1.xpose.msra.mxu0 0.0
    %1468 = vmatprep.subr.mxu0 0.0
    %1469 = vmatpush1.xpose.msra.mxu0 0.0
    %1470 = vmatprep.subr.mxu0 0.0
    %1471 = vmatpush1.xpose.msra.mxu0 0.0
    %1472 = vmatprep.subr.mxu0 0.0
    %1473 = vmatpush1.xpose.msra.mxu0 0.0
    %1474 = vmatprep.subr.mxu0 0.0
    %1475 = vmatpush1.xpose.msra.mxu0 0.0
    %1476 = vmatprep.subr.mxu0 0.0
    %1477 = vmatpush1.xpose.msra.mxu0 0.0
    %1478 = vmatprep.subr.mxu0 0.0
    %1479 = vmatpush1.xpose.msra.mxu0 0.0
    %1480 = vmatprep.subr.mxu0 0.0
    %1481 = vmatpush1.xpose.msra.mxu0 0.0
    %1482 = vmatprep.subr.mxu0 0.0
    %1483 = vmatpush1.xpose.msra.mxu0 0.0
    %1484 = vmatprep.subr.mxu0 0.0
    %1485 = vmatpush1.xpose.msra.mxu0 0.0
    %1486 = vmatprep.subr.mxu0 0.0
    %1487 = vmatpush1.xpose.msra.mxu0 0.0
    %1488 = vmatprep.subr.mxu0 0.0
    %1489 = vmatpush1.xpose.msra.mxu0 0.0
    %1490 = vmatprep.subr.mxu0 0.0
    %1491 = vmatpush1.xpose.msra.mxu0 0.0
    %1492 = vmatprep.subr.mxu0 0.0
    %1493 = vmatpush1.xpose.msra.mxu0 0.0
    %1494 = vmatprep.subr.mxu0 0.0
    %1495 = vmatpush1.xpose.msra.mxu0 0.0
    %1496 = vmatprep.subr.mxu0 0.0
    %1497 = vmatpush1.xpose.msra.mxu0 0.0
    %1498 = vmatprep.subr.mxu0 0.0
    %1499 = vmatpush1.xpose.msra.mxu0 0.0
    %1500 = vmatprep.subr.mxu0 0.0
    %1501 = vmatpush1.xpose.msra.mxu0 0.0
    %1502 = vmatprep.subr.mxu0 0.0
    %1503 = vmatpush1.xpose.msra.mxu0 0.0
    %1504 = vmatprep.mubr.f32.mxu0 %v1326
    %1505 = vmatmul.mubr.f32.gmra.mrb[0].mxu0 %v1325
    %v1506 = vpop.f32.mrb[0].mxu0
    %v1507 = vadd.f32 %v1437, %v1506
    %v1508 = vpop.f32.mrb[0].mxu0
    %1509 = vdwg.mxu0
    %1510 = vmatprep.subr.mxu0 %v1352
    %1511 = vmatpush1.xpose.msra.mxu0 %v1351
    %1512 = vmatprep.subr.mxu0 0.0
    %1513 = vmatpush1.xpose.msra.mxu0 0.0
    %1514 = vmatprep.subr.mxu0 0.0
    %1515 = vmatpush1.xpose.msra.mxu0 0.0
    %1516 = vmatprep.subr.mxu0 0.0
    %1517 = vmatpush1.xpose.msra.mxu0 0.0
    %1518 = vmatprep.subr.mxu0 0.0
    %1519 = vmatpush1.xpose.msra.mxu0 0.0
    %1520 = vmatprep.subr.mxu0 0.0
    %1521 = vmatpush1.xpose.msra.mxu0 0.0
    %1522 = vmatprep.subr.mxu0 0.0
    %1523 = vmatpush1.xpose.msra.mxu0 0.0
    %1524 = vmatprep.subr.mxu0 0.0
    %1525 = vmatpush1.xpose.msra.mxu0 0.0
    %1526 = vmatprep.subr.mxu0 0.0
    %1527 = vmatpush1.xpose.msra.mxu0 0.0
    %1528 = vmatprep.subr.mxu0 0.0
    %1529 = vmatpush1.xpose.msra.mxu0 0.0
    %1530 = vmatprep.subr.mxu0 0.0
    %1531 = vmatpush1.xpose.msra.mxu0 0.0
    %1532 = vmatprep.subr.mxu0 0.0
    %1533 = vmatpush1.xpose.msra.mxu0 0.0
    %1534 = vmatprep.subr.mxu0 0.0
    %1535 = vmatpush1.xpose.msra.mxu0 0.0
    %1536 = vmatprep.subr.mxu0 0.0
    %1537 = vmatpush1.xpose.msra.mxu0 0.0
    %1538 = vmatprep.subr.mxu0 0.0
    %1539 = vmatpush1.xpose.msra.mxu0 0.0
    %1540 = vmatprep.subr.mxu0 0.0
    %1541 = vmatpush1.xpose.msra.mxu0 0.0
    %1542 = vmatprep.subr.mxu0 0.0
    %1543 = vmatpush1.xpose.msra.mxu0 0.0
    %1544 = vmatprep.subr.mxu0 0.0
    %1545 = vmatpush1.xpose.msra.mxu0 0.0
    %1546 = vmatprep.subr.mxu0 0.0
    %1547 = vmatpush1.xpose.msra.mxu0 0.0
    %1548 = vmatprep.subr.mxu0 0.0
    %1549 = vmatpush1.xpose.msra.mxu0 0.0
    %1550 = vmatprep.subr.mxu0 0.0
    %1551 = vmatpush1.xpose.msra.mxu0 0.0
    %1552 = vmatprep.subr.mxu0 0.0
    %1553 = vmatpush1.xpose.msra.mxu0 0.0
    %1554 = vmatprep.subr.mxu0 0.0
    %1555 = vmatpush1.xpose.msra.mxu0 0.0
    %1556 = vmatprep.subr.mxu0 0.0
    %1557 = vmatpush1.xpose.msra.mxu0 0.0
    %1558 = vmatprep.subr.mxu0 0.0
    %1559 = vmatpush1.xpose.msra.mxu0 0.0
    %1560 = vmatprep.subr.mxu0 0.0
    %1561 = vmatpush1.xpose.msra.mxu0 0.0
    %1562 = vmatprep.subr.mxu0 0.0
    %1563 = vmatpush1.xpose.msra.mxu0 0.0
    %1564 = vmatprep.subr.mxu0 0.0
    %1565 = vmatpush1.xpose.msra.mxu0 0.0
    %1566 = vmatprep.subr.mxu0 0.0
    %1567 = vmatpush1.xpose.msra.mxu0 0.0
    %1568 = vmatprep.subr.mxu0 0.0
    %1569 = vmatpush1.xpose.msra.mxu0 0.0
    %1570 = vmatprep.subr.mxu0 0.0
    %1571 = vmatpush1.xpose.msra.mxu0 0.0
    %1572 = vmatprep.subr.mxu0 0.0
    %1573 = vmatpush1.xpose.msra.mxu0 0.0
    %1574 = vmatprep.mubr.f32.mxu0 %v1328
    %1575 = vmatmul.mubr.f32.gmra.mrb[0].mxu0 %v1327
    %v1576 = vpop.f32.mrb[0].mxu0
    %v1577 = vadd.f32 %v1507, %v1576
    %v1578 = vpop.f32.mrb[0].mxu0
    %1579 = vdwg.mxu0
    %1580 = vmatprep.subr.mxu0 %v1354
    %1581 = vmatpush1.xpose.msra.mxu0 %v1353
    %1582 = vmatprep.subr.mxu0 0.0
    %1583 = vmatpush1.xpose.msra.mxu0 0.0
    %1584 = vmatprep.subr.mxu0 0.0
    %1585 = vmatpush1.xpose.msra.mxu0 0.0
    %1586 = vmatprep.subr.mxu0 0.0
    %1587 = vmatpush1.xpose.msra.mxu0 0.0
    %1588 = vmatprep.subr.mxu0 0.0
    %1589 = vmatpush1.xpose.msra.mxu0 0.0
    %1590 = vmatprep.subr.mxu0 0.0
    %1591 = vmatpush1.xpose.msra.mxu0 0.0
    %1592 = vmatprep.subr.mxu0 0.0
    %1593 = vmatpush1.xpose.msra.mxu0 0.0
    %1594 = vmatprep.subr.mxu0 0.0
    %1595 = vmatpush1.xpose.msra.mxu0 0.0
    %1596 = vmatprep.subr.mxu0 0.0
    %1597 = vmatpush1.xpose.msra.mxu0 0.0
    %1598 = vmatprep.subr.mxu0 0.0
    %1599 = vmatpush1.xpose.msra.mxu0 0.0
    %1600 = vmatprep.subr.mxu0 0.0
    %1601 = vmatpush1.xpose.msra.mxu0 0.0
    %1602 = vmatprep.subr.mxu0 0.0
    %1603 = vmatpush1.xpose.msra.mxu0 0.0
    %1604 = vmatprep.subr.mxu0 0.0
    %1605 = vmatpush1.xpose.msra.mxu0 0.0
    %1606 = vmatprep.subr.mxu0 0.0
    %1607 = vmatpush1.xpose.msra.mxu0 0.0
    %1608 = vmatprep.subr.mxu0 0.0
    %1609 = vmatpush1.xpose.msra.mxu0 0.0
    %1610 = vmatprep.subr.mxu0 0.0
    %1611 = vmatpush1.xpose.msra.mxu0 0.0
    %1612 = vmatprep.subr.mxu0 0.0
    %1613 = vmatpush1.xpose.msra.mxu0 0.0
    %1614 = vmatprep.subr.mxu0 0.0
    %1615 = vmatpush1.xpose.msra.mxu0 0.0
    %1616 = vmatprep.subr.mxu0 0.0
    %1617 = vmatpush1.xpose.msra.mxu0 0.0
    %1618 = vmatprep.subr.mxu0 0.0
    %1619 = vmatpush1.xpose.msra.mxu0 0.0
    %1620 = vmatprep.subr.mxu0 0.0
    %1621 = vmatpush1.xpose.msra.mxu0 0.0
    %1622 = vmatprep.subr.mxu0 0.0
    %1623 = vmatpush1.xpose.msra.mxu0 0.0
    %1624 = vmatprep.subr.mxu0 0.0
    %1625 = vmatpush1.xpose.msra.mxu0 0.0
    %1626 = vmatprep.subr.mxu0 0.0
    %1627 = vmatpush1.xpose.msra.mxu0 0.0
    %1628 = vmatprep.subr.mxu0 0.0
    %1629 = vmatpush1.xpose.msra.mxu0 0.0
    %1630 = vmatprep.subr.mxu0 0.0
    %1631 = vmatpush1.xpose.msra.mxu0 0.0
    %1632 = vmatprep.subr.mxu0 0.0
    %1633 = vmatpush1.xpose.msra.mxu0 0.0
    %1634 = vmatprep.subr.mxu0 0.0
    %1635 = vmatpush1.xpose.msra.mxu0 0.0
    %1636 = vmatprep.subr.mxu0 0.0
    %1637 = vmatpush1.xpose.msra.mxu0 0.0
    %1638 = vmatprep.subr.mxu0 0.0
    %1639 = vmatpush1.xpose.msra.mxu0 0.0
    %1640 = vmatprep.subr.mxu0 0.0
    %1641 = vmatpush1.xpose.msra.mxu0 0.0
    %1642 = vmatprep.subr.mxu0 0.0
    %1643 = vmatpush1.xpose.msra.mxu0 0.0
    %1644 = vmatprep.mubr.f32.mxu0 %v1330
    %1645 = vmatmul.mubr.f32.gmra.mrb[0].mxu0 %v1329
    %v1646 = vpop.f32.mrb[0].mxu0
    %v1647 = vadd.f32 %v1577, %v1646
    %v1648 = vpop.f32.mrb[0].mxu0
    %1649 = vdwg.mxu0
    %1650 = vmatprep.subr.mxu0 %v1356
    %1651 = vmatpush1.xpose.msra.mxu0 %v1355
    %1652 = vmatprep.subr.mxu0 0.0
    %1653 = vmatpush1.xpose.msra.mxu0 0.0
    %1654 = vmatprep.subr.mxu0 0.0
    %1655 = vmatpush1.xpose.msra.mxu0 0.0
    %1656 = vmatprep.subr.mxu0 0.0
    %1657 = vmatpush1.xpose.msra.mxu0 0.0
    %1658 = vmatprep.subr.mxu0 0.0
    %1659 = vmatpush1.xpose.msra.mxu0 0.0
    %1660 = vmatprep.subr.mxu0 0.0
    %1661 = vmatpush1.xpose.msra.mxu0 0.0
    %1662 = vmatprep.subr.mxu0 0.0
    %1663 = vmatpush1.xpose.msra.mxu0 0.0
    %1664 = vmatprep.subr.mxu0 0.0
    %1665 = vmatpush1.xpose.msra.mxu0 0.0
    %1666 = vmatprep.subr.mxu0 0.0
    %1667 = vmatpush1.xpose.msra.mxu0 0.0
    %1668 = vmatprep.subr.mxu0 0.0
    %1669 = vmatpush1.xpose.msra.mxu0 0.0
    %1670 = vmatprep.subr.mxu0 0.0
    %1671 = vmatpush1.xpose.msra.mxu0 0.0
    %1672 = vmatprep.subr.mxu0 0.0
    %1673 = vmatpush1.xpose.msra.mxu0 0.0
    %1674 = vmatprep.subr.mxu0 0.0
    %1675 = vmatpush1.xpose.msra.mxu0 0.0
    %1676 = vmatprep.subr.mxu0 0.0
    %1677 = vmatpush1.xpose.msra.mxu0 0.0
    %1678 = vmatprep.subr.mxu0 0.0
    %1679 = vmatpush1.xpose.msra.mxu0 0.0
    %1680 = vmatprep.subr.mxu0 0.0
    %1681 = vmatpush1.xpose.msra.mxu0 0.0
    %1682 = vmatprep.subr.mxu0 0.0
    %1683 = vmatpush1.xpose.msra.mxu0 0.0
    %1684 = vmatprep.subr.mxu0 0.0
    %1685 = vmatpush1.xpose.msra.mxu0 0.0
    %1686 = vmatprep.subr.mxu0 0.0
    %1687 = vmatpush1.xpose.msra.mxu0 0.0
    %1688 = vmatprep.subr.mxu0 0.0
    %1689 = vmatpush1.xpose.msra.mxu0 0.0
    %1690 = vmatprep.subr.mxu0 0.0
    %1691 = vmatpush1.xpose.msra.mxu0 0.0
    %1692 = vmatprep.subr.mxu0 0.0
    %1693 = vmatpush1.xpose.msra.mxu0 0.0
    %1694 = vmatprep.subr.mxu0 0.0
    %1695 = vmatpush1.xpose.msra.mxu0 0.0
    %1696 = vmatprep.subr.mxu0 0.0
    %1697 = vmatpush1.xpose.msra.mxu0 0.0
    %1698 = vmatprep.subr.mxu0 0.0
    %1699 = vmatpush1.xpose.msra.mxu0 0.0
    %1700 = vmatprep.subr.mxu0 0.0
    %1701 = vmatpush1.xpose.msra.mxu0 0.0
    %1702 = vmatprep.subr.mxu0 0.0
    %1703 = vmatpush1.xpose.msra.mxu0 0.0
    %1704 = vmatprep.subr.mxu0 0.0
    %1705 = vmatpush1.xpose.msra.mxu0 0.0
    %1706 = vmatprep.subr.mxu0 0.0
    %1707 = vmatpush1.xpose.msra.mxu0 0.0
    %1708 = vmatprep.subr.mxu0 0.0
    %1709 = vmatpush1.xpose.msra.mxu0 0.0
    %1710 = vmatprep.subr.mxu0 0.0
    %1711 = vmatpush1.xpose.msra.mxu0 0.0
    %1712 = vmatprep.subr.mxu0 0.0
    %1713 = vmatpush1.xpose.msra.mxu0 0.0
    %1714 = vmatprep.mubr.f32.mxu0 %v1332
    %1715 = vmatmul.mubr.f32.gmra.mrb[0].mxu0 %v1331
    %v1716 = vpop.f32.mrb[0].mxu0
    %v1717 = vadd.f32 %v1647, %v1716
    %v1718 = vpop.f32.mrb[0].mxu0
    %1719 = vdwg.mxu0
    %1720 = vmatprep.subr.mxu0 %v1358
    %1721 = vmatpush1.xpose.msra.mxu0 %v1357
    %1722 = vmatprep.subr.mxu0 0.0
    %1723 = vmatpush1.xpose.msra.mxu0 0.0
    %1724 = vmatprep.subr.mxu0 0.0
    %1725 = vmatpush1.xpose.msra.mxu0 0.0
    %1726 = vmatprep.subr.mxu0 0.0
    %1727 = vmatpush1.xpose.msra.mxu0 0.0
    %1728 = vmatprep.subr.mxu0 0.0
    %1729 = vmatpush1.xpose.msra.mxu0 0.0
    %1730 = vmatprep.subr.mxu0 0.0
    %1731 = vmatpush1.xpose.msra.mxu0 0.0
    %1732 = vmatprep.subr.mxu0 0.0
    %1733 = vmatpush1.xpose.msra.mxu0 0.0
    %1734 = vmatprep.subr.mxu0 0.0
    %1735 = vmatpush1.xpose.msra.mxu0 0.0
    %1736 = vmatprep.subr.mxu0 0.0
    %1737 = vmatpush1.xpose.msra.mxu0 0.0
    %1738 = vmatprep.subr.mxu0 0.0
    %1739 = vmatpush1.xpose.msra.mxu0 0.0
    %1740 = vmatprep.subr.mxu0 0.0
    %1741 = vmatpush1.xpose.msra.mxu0 0.0
    %1742 = vmatprep.subr.mxu0 0.0
    %1743 = vmatpush1.xpose.msra.mxu0 0.0
    %1744 = vmatprep.subr.mxu0 0.0
    %1745 = vmatpush1.xpose.msra.mxu0 0.0
    %1746 = vmatprep.subr.mxu0 0.0
    %1747 = vmatpush1.xpose.msra.mxu0 0.0
    %1748 = vmatprep.subr.mxu0 0.0
    %1749 = vmatpush1.xpose.msra.mxu0 0.0
    %1750 = vmatprep.subr.mxu0 0.0
    %1751 = vmatpush1.xpose.msra.mxu0 0.0
    %1752 = vmatprep.subr.mxu0 0.0
    %1753 = vmatpush1.xpose.msra.mxu0 0.0
    %1754 = vmatprep.subr.mxu0 0.0
    %1755 = vmatpush1.xpose.msra.mxu0 0.0
    %1756 = vmatprep.subr.mxu0 0.0
    %1757 = vmatpush1.xpose.msra.mxu0 0.0
    %1758 = vmatprep.subr.mxu0 0.0
    %1759 = vmatpush1.xpose.msra.mxu0 0.0
    %1760 = vmatprep.subr.mxu0 0.0
    %1761 = vmatpush1.xpose.msra.mxu0 0.0
    %1762 = vmatprep.subr.mxu0 0.0
    %1763 = vmatpush1.xpose.msra.mxu0 0.0
    %1764 = vmatprep.subr.mxu0 0.0
    %1765 = vmatpush1.xpose.msra.mxu0 0.0
    %1766 = vmatprep.subr.mxu0 0.0
    %1767 = vmatpush1.xpose.msra.mxu0 0.0
    %1768 = vmatprep.subr.mxu0 0.0
    %1769 = vmatpush1.xpose.msra.mxu0 0.0
    %1770 = vmatprep.subr.mxu0 0.0
    %1771 = vmatpush1.xpose.msra.mxu0 0.0
    %1772 = vmatprep.subr.mxu0 0.0
    %1773 = vmatpush1.xpose.msra.mxu0 0.0
    %1774 = vmatprep.subr.mxu0 0.0
    %1775 = vmatpush1.xpose.msra.mxu0 0.0
    %1776 = vmatprep.subr.mxu0 0.0
    %1777 = vmatpush1.xpose.msra.mxu0 0.0
    %1778 = vmatprep.subr.mxu0 0.0
    %1779 = vmatpush1.xpose.msra.mxu0 0.0
    %1780 = vmatprep.subr.mxu0 0.0
    %1781 = vmatpush1.xpose.msra.mxu0 0.0
    %1782 = vmatprep.subr.mxu0 0.0
    %1783 = vmatpush1.xpose.msra.mxu0 0.0
    %1784 = vmatprep.mubr.f32.mxu0 %v1334
    %1785 = vmatmul.mubr.f32.gmra.mrb[0].mxu0 %v1333
    %v1786 = vpop.f32.mrb[0].mxu0
    %v1787 = vadd.f32 %v1717, %v1786
    %v1788 = vpop.f32.mrb[0].mxu0
    %1789 = vdwg.mxu0
    %1790 = vmatprep.subr.mxu0 %v1360
    %1791 = vmatpush1.xpose.msra.mxu0 %v1359
    %1792 = vmatprep.subr.mxu0 0.0
    %1793 = vmatpush1.xpose.msra.mxu0 0.0
    %1794 = vmatprep.subr.mxu0 0.0
    %1795 = vmatpush1.xpose.msra.mxu0 0.0
    %1796 = vmatprep.subr.mxu0 0.0
    %1797 = vmatpush1.xpose.msra.mxu0 0.0
    %1798 = vmatprep.subr.mxu0 0.0
    %1799 = vmatpush1.xpose.msra.mxu0 0.0
    %1800 = vmatprep.subr.mxu0 0.0
    %1801 = vmatpush1.xpose.msra.mxu0 0.0
    %1802 = vmatprep.subr.mxu0 0.0
    %1803 = vmatpush1.xpose.msra.mxu0 0.0
    %1804 = vmatprep.subr.mxu0 0.0
    %1805 = vmatpush1.xpose.msra.mxu0 0.0
    %1806 = vmatprep.subr.mxu0 0.0
    %1807 = vmatpush1.xpose.msra.mxu0 0.0
    %1808 = vmatprep.subr.mxu0 0.0
    %1809 = vmatpush1.xpose.msra.mxu0 0.0
    %1810 = vmatprep.subr.mxu0 0.0
    %1811 = vmatpush1.xpose.msra.mxu0 0.0
    %1812 = vmatprep.subr.mxu0 0.0
    %1813 = vmatpush1.xpose.msra.mxu0 0.0
    %1814 = vmatprep.subr.mxu0 0.0
    %1815 = vmatpush1.xpose.msra.mxu0 0.0
    %1816 = vmatprep.subr.mxu0 0.0
    %1817 = vmatpush1.xpose.msra.mxu0 0.0
    %1818 = vmatprep.subr.mxu0 0.0
    %1819 = vmatpush1.xpose.msra.mxu0 0.0
    %1820 = vmatprep.subr.mxu0 0.0
    %1821 = vmatpush1.xpose.msra.mxu0 0.0
    %1822 = vmatprep.subr.mxu0 0.0
    %1823 = vmatpush1.xpose.msra.mxu0 0.0
    %1824 = vmatprep.subr.mxu0 0.0
    %1825 = vmatpush1.xpose.msra.mxu0 0.0
    %1826 = vmatprep.subr.mxu0 0.0
    %1827 = vmatpush1.xpose.msra.mxu0 0.0
    %1828 = vmatprep.subr.mxu0 0.0
    %1829 = vmatpush1.xpose.msra.mxu0 0.0
    %1830 = vmatprep.subr.mxu0 0.0
    %1831 = vmatpush1.xpose.msra.mxu0 0.0
    %1832 = vmatprep.subr.mxu0 0.0
    %1833 = vmatpush1.xpose.msra.mxu0 0.0
    %1834 = vmatprep.subr.mxu0 0.0
    %1835 = vmatpush1.xpose.msra.mxu0 0.0
    %1836 = vmatprep.subr.mxu0 0.0
    %1837 = vmatpush1.xpose.msra.mxu0 0.0
    %1838 = vmatprep.subr.mxu0 0.0
    %1839 = vmatpush1.xpose.msra.mxu0 0.0
    %1840 = vmatprep.subr.mxu0 0.0
    %1841 = vmatpush1.xpose.msra.mxu0 0.0
    %1842 = vmatprep.subr.mxu0 0.0
    %1843 = vmatpush1.xpose.msra.mxu0 0.0
    %1844 = vmatprep.subr.mxu0 0.0
    %1845 = vmatpush1.xpose.msra.mxu0 0.0
    %1846 = vmatprep.subr.mxu0 0.0
    %1847 = vmatpush1.xpose.msra.mxu0 0.0
    %1848 = vmatprep.subr.mxu0 0.0
    %1849 = vmatpush1.xpose.msra.mxu0 0.0
    %1850 = vmatprep.subr.mxu0 0.0
    %1851 = vmatpush1.xpose.msra.mxu0 0.0
    %1852 = vmatprep.subr.mxu0 0.0
    %1853 = vmatpush1.xpose.msra.mxu0 0.0
    %1854 = vmatprep.mubr.f32.mxu0 %v1336
    %1855 = vmatmul.mubr.f32.gmra.mrb[0].mxu0 %v1335
    %v1856 = vpop.f32.mrb[0].mxu0
    %v1857 = vadd.f32 %v1787, %v1856
    %v1858 = vpop.f32.mrb[0].mxu0
    %1859 = vdwg.mxu0
    %1860 = vmatprep.subr.mxu0 %v1362
    %1861 = vmatpush1.xpose.msra.mxu0 %v1361
    %1862 = vmatprep.subr.mxu0 0.0
    %1863 = vmatpush1.xpose.msra.mxu0 0.0
    %1864 = vmatprep.subr.mxu0 0.0
    %1865 = vmatpush1.xpose.msra.mxu0 0.0
    %1866 = vmatprep.subr.mxu0 0.0
    %1867 = vmatpush1.xpose.msra.mxu0 0.0
    %1868 = vmatprep.subr.mxu0 0.0
    %1869 = vmatpush1.xpose.msra.mxu0 0.0
    %1870 = vmatprep.subr.mxu0 0.0
    %1871 = vmatpush1.xpose.msra.mxu0 0.0
    %1872 = vmatprep.subr.mxu0 0.0
    %1873 = vmatpush1.xpose.msra.mxu0 0.0
    %1874 = vmatprep.subr.mxu0 0.0
    %1875 = vmatpush1.xpose.msra.mxu0 0.0
    %1876 = vmatprep.subr.mxu0 0.0
    %1877 = vmatpush1.xpose.msra.mxu0 0.0
    %1878 = vmatprep.subr.mxu0 0.0
    %1879 = vmatpush1.xpose.msra.mxu0 0.0
    %1880 = vmatprep.subr.mxu0 0.0
    %1881 = vmatpush1.xpose.msra.mxu0 0.0
    %1882 = vmatprep.subr.mxu0 0.0
    %1883 = vmatpush1.xpose.msra.mxu0 0.0
    %1884 = vmatprep.subr.mxu0 0.0
    %1885 = vmatpush1.xpose.msra.mxu0 0.0
    %1886 = vmatprep.subr.mxu0 0.0
    %1887 = vmatpush1.xpose.msra.mxu0 0.0
    %1888 = vmatprep.subr.mxu0 0.0
    %1889 = vmatpush1.xpose.msra.mxu0 0.0
    %1890 = vmatprep.subr.mxu0 0.0
    %1891 = vmatpush1.xpose.msra.mxu0 0.0
    %1892 = vmatprep.subr.mxu0 0.0
    %1893 = vmatpush1.xpose.msra.mxu0 0.0
    %1894 = vmatprep.subr.mxu0 0.0
    %1895 = vmatpush1.xpose.msra.mxu0 0.0
    %1896 = vmatprep.subr.mxu0 0.0
    %1897 = vmatpush1.xpose.msra.mxu0 0.0
    %1898 = vmatprep.subr.mxu0 0.0
    %1899 = vmatpush1.xpose.msra.mxu0 0.0
    %1900 = vmatprep.subr.mxu0 0.0
    %1901 = vmatpush1.xpose.msra.mxu0 0.0
    %1902 = vmatprep.subr.mxu0 0.0
    %1903 = vmatpush1.xpose.msra.mxu0 0.0
    %1904 = vmatprep.subr.mxu0 0.0
    %1905 = vmatpush1.xpose.msra.mxu0 0.0
    %1906 = vmatprep.subr.mxu0 0.0
    %1907 = vmatpush1.xpose.msra.mxu0 0.0
    %1908 = vmatprep.subr.mxu0 0.0
    %1909 = vmatpush1.xpose.msra.mxu0 0.0
    %1910 = vmatprep.subr.mxu0 0.0
    %1911 = vmatpush1.xpose.msra.mxu0 0.0
    %1912 = vmatprep.subr.mxu0 0.0
    %1913 = vmatpush1.xpose.msra.mxu0 0.0
    %1914 = vmatprep.subr.mxu0 0.0
    %1915 = vmatpush1.xpose.msra.mxu0 0.0
    %1916 = vmatprep.subr.mxu0 0.0
    %1917 = vmatpush1.xpose.msra.mxu0 0.0
    %1918 = vmatprep.subr.mxu0 0.0
    %1919 = vmatpush1.xpose.msra.mxu0 0.0
    %1920 = vmatprep.subr.mxu0 0.0
    %1921 = vmatpush1.xpose.msra.mxu0 0.0
    %1922 = vmatprep.subr.mxu0 0.0
    %1923 = vmatpush1.xpose.msra.mxu0 0.0
    %1924 = vmatprep.mubr.f32.mxu0 %v1338
    %1925 = vmatmul.mubr.f32.gmra.mrb[0].mxu0 %v1337
    %v1926 = vpop.f32.mrb[0].mxu0
    %v1927 = vadd.f32 %v1857, %v1926
    %v1928 = vpop.f32.mrb[0].mxu0
    %1929 = vdwg.mxu0
    %v1930 = vadd.f32 %v643, %v1927
    %v1931 = vld [vmem:[#allocation17] sm:$0x1]
    %v1932 = vld [vmem:[#allocation19] sm:$0x1]
    %v1933 = vsel %vm615, %v1930, 0.0
    %1934 = vadd.xlane.f32.xlu0 %v1933
    %v1935 = vpop.xlane.xlu0 %1934
    %v1936 = vmul.f32 %v1935, %v619
    %v1937 = vsub.f32 %v1930, %v1936
    %v1938 = vmul.f32 %v1937, %v1937
    %v1939 = vsel %vm615, %v1938, 0.0
    %1940 = vadd.xlane.f32.xlu0 %v1939
    %v1941 = vpop.xlane.xlu0 %1940
    %v1942 = vmul.f32 %v1941, %v619
    %v1943 = vadd.f32 %v1942, 1e-05
    %v1944 = vrsqrt.pop %v1943
    %v1945 = vmul.f32 %v1937, %v1944
    %v1947 = vlaneseq
    %v1948 = vshrl.u32 %v1947, 7
    %v1949 = vsub.s32 0, %v1948
    %v1950 = vrot.slane %v1931, %v1949
    %v1952 = vmul.f32 %v1945, %v1950
    %v1954 = vlaneseq
    %v1955 = vshrl.u32 %v1954, 7
    %v1956 = vsub.s32 0, %v1955
    %v1957 = vrot.slane %v1932, %v1956
    %v1959 = vadd.f32 %v1952, %v1957
    %v1960 = vld [vmem:[#allocation20] sm:$0xf]
    %v1961 = vunpack.c.l.bf16 %v1960
    %v1962 = vld [vmem:[#allocation22] sm:$0x1]
    %v1964 = vlaneseq
    %v1965 = vshrl.u32 %v1964, 7
    %v1966 = vsub.s32 0, %v1965
    %v1967 = vrot.slane %v1962, %v1966
    %v1970 = vsel %vm287, %v1959, 0
    %1972 = vmatprep.subr.mxu0 0.0
    %1973 = vmatpush1.msra.mxu0 %v1961
    %1974 = vmatprep.subr.mxu0 0.0
    %1975 = vmatpush1.msra.mxu0 0.0
    %1976 = vmatprep.subr.mxu0 0.0
    %1977 = vmatpush1.msra.mxu0 0.0
    %1978 = vmatprep.subr.mxu0 0.0
    %1979 = vmatpush1.msra.mxu0 0.0
    %1980 = vmatprep.subr.mxu0 0.0
    %1981 = vmatpush1.msra.mxu0 0.0
    %1982 = vmatprep.subr.mxu0 0.0
    %1983 = vmatpush1.msra.mxu0 0.0
    %1984 = vmatprep.subr.mxu0 0.0
    %1985 = vmatpush1.msra.mxu0 0.0
    %1986 = vmatprep.subr.mxu0 0.0
    %1987 = vmatpush1.msra.mxu0 0.0
    %1988 = vmatprep.subr.mxu0 0.0
    %1989 = vmatpush1.msra.mxu0 0.0
    %1990 = vmatprep.subr.mxu0 0.0
    %1991 = vmatpush1.msra.mxu0 0.0
    %1992 = vmatprep.subr.mxu0 0.0
    %1993 = vmatpush1.msra.mxu0 0.0
    %1994 = vmatprep.subr.mxu0 0.0
    %1995 = vmatpush1.msra.mxu0 0.0
    %1996 = vmatprep.subr.mxu0 0.0
    %1997 = vmatpush1.msra.mxu0 0.0
    %1998 = vmatprep.subr.mxu0 0.0
    %1999 = vmatpush1.msra.mxu0 0.0
    %2000 = vmatprep.subr.mxu0 0.0
    %2001 = vmatpush1.msra.mxu0 0.0
    %2002 = vmatprep.subr.mxu0 0.0
    %2003 = vmatpush1.msra.mxu0 0.0
    %2004 = vmatprep.subr.mxu0 0.0
    %2005 = vmatpush1.msra.mxu0 0.0
    %2006 = vmatprep.subr.mxu0 0.0
    %2007 = vmatpush1.msra.mxu0 0.0
    %2008 = vmatprep.subr.mxu0 0.0
    %2009 = vmatpush1.msra.mxu0 0.0
    %2010 = vmatprep.subr.mxu0 0.0
    %2011 = vmatpush1.msra.mxu0 0.0
    %2012 = vmatprep.subr.mxu0 0.0
    %2013 = vmatpush1.msra.mxu0 0.0
    %2014 = vmatprep.subr.mxu0 0.0
    %2015 = vmatpush1.msra.mxu0 0.0
    %2016 = vmatprep.subr.mxu0 0.0
    %2017 = vmatpush1.msra.mxu0 0.0
    %2018 = vmatprep.subr.mxu0 0.0
    %2019 = vmatpush1.msra.mxu0 0.0
    %2020 = vmatprep.subr.mxu0 0.0
    %2021 = vmatpush1.msra.mxu0 0.0
    %2022 = vmatprep.subr.mxu0 0.0
    %2023 = vmatpush1.msra.mxu0 0.0
    %2024 = vmatprep.subr.mxu0 0.0
    %2025 = vmatpush1.msra.mxu0 0.0
    %2026 = vmatprep.subr.mxu0 0.0
    %2027 = vmatpush1.msra.mxu0 0.0
    %2028 = vmatprep.subr.mxu0 0.0
    %2029 = vmatpush1.msra.mxu0 0.0
    %2030 = vmatprep.subr.mxu0 0.0
    %2031 = vmatpush1.msra.mxu0 0.0
    %2032 = vmatprep.subr.mxu0 0.0
    %2033 = vmatpush1.msra.mxu0 0.0
    %2034 = vmatprep.subr.mxu0 0.0
    %2035 = vmatpush1.msra.mxu0 0.0
    %2036 = vmatprep.mubr.f32.mxu0 0.0
    %2037 = vmatmul.mubr.f32.gmra.mrb[0].mxu0 %v1970
    %v2038 = vpop.f32.mrb[0].mxu0
    %v2039 = vadd.f32 %v1967, %v2038
    %v2040 = vpop.f32.mrb[0].mxu0
    %2041 = vdwg.mxu0
    %v2042 = vmax.f32 %v2039, 0.0
    %v2043 = vld [vmem:[%s15] sm:$0xff]
    %v2044 = vld [vmem:[%s15 + $0x8] sm:$0xff]
    %v2045 = vld [vmem:[%s15 + $0x10] sm:$0xff]
    %v2046 = vld [vmem:[%s15 + $0x18] sm:$0xff]
    %v2047 = vld [vmem:[%s15 + $0x20] sm:$0xff]
    %v2048 = vld [vmem:[%s15 + $0x28] sm:$0xff]
    %v2049 = vld [vmem:[%s15 + $0x30] sm:$0xff]
    %v2050 = vld [vmem:[%s15 + $0x38] sm:$0xff]
    %v2051 = vld [vmem:[%s15 + $0x40] sm:$0xff]
    %v2052 = vld [vmem:[%s15 + $0x48] sm:$0xff]
    %v2053 = vld [vmem:[%s15 + $0x50] sm:$0xff]
    %v2054 = vld [vmem:[%s15 + $0x58] sm:$0xff]
    %v2055 = vld [vmem:[%s15 + $0x60] sm:$0xff]
    %v2056 = vld [vmem:[%s15 + $0x68] sm:$0xff]
    %v2057 = vld [vmem:[%s15 + $0x70] sm:$0xff]
    %v2058 = vld [vmem:[%s15 + $0x78] sm:$0xff]
    %v2059 = vunpack.c.l.bf16 %v2043
    %v2060 = vunpack.c.h.bf16 %v2043
    %v2061 = vunpack.c.l.bf16 %v2044
    %v2062 = vunpack.c.h.bf16 %v2044
    %v2063 = vunpack.c.l.bf16 %v2045
    %v2064 = vunpack.c.h.bf16 %v2045
    %v2065 = vunpack.c.l.bf16 %v2046
    %v2066 = vunpack.c.h.bf16 %v2046
    %v2067 = vunpack.c.l.bf16 %v2047
    %v2068 = vunpack.c.h.bf16 %v2047
    %v2069 = vunpack.c.l.bf16 %v2048
    %v2070 = vunpack.c.h.bf16 %v2048
    %v2071 = vunpack.c.l.bf16 %v2049
    %v2072 = vunpack.c.h.bf16 %v2049
    %v2073 = vunpack.c.l.bf16 %v2050
    %v2074 = vunpack.c.h.bf16 %v2050
    %v2075 = vunpack.c.l.bf16 %v2051
    %v2076 = vunpack.c.h.bf16 %v2051
    %v2077 = vunpack.c.l.bf16 %v2052
    %v2078 = vunpack.c.h.bf16 %v2052
    %v2079 = vunpack.c.l.bf16 %v2053
    %v2080 = vunpack.c.h.bf16 %v2053
    %v2081 = vunpack.c.l.bf16 %v2054
    %v2082 = vunpack.c.h.bf16 %v2054
    %v2083 = vunpack.c.l.bf16 %v2055
    %v2084 = vunpack.c.h.bf16 %v2055
    %v2085 = vunpack.c.l.bf16 %v2056
    %v2086 = vunpack.c.h.bf16 %v2056
    %v2087 = vunpack.c.l.bf16 %v2057
    %v2088 = vunpack.c.h.bf16 %v2057
    %v2089 = vunpack.c.l.bf16 %v2058
    %v2090 = vunpack.c.h.bf16 %v2058
    %v2091 = vld [vmem:[%s16] sm:$0x3]
    %v2093 = vlaneseq
    %v2094 = vshrl.u32 %v2093, 7
    %v2095 = vsub.s32 0, %v2094
    %v2096 = vrot.slane %v2091, %v2095
    %v2097 = vlaneseq
    %v2098 = vshrl.u32 %v2097, 7
    %v2099 = vsub.s32 1, %v2098
    %v2100 = vrot.slane %v2091, %v2099
    %2103 = vmatprep.subr.mxu0 %v2060
    %2104 = vmatpush1.msra.mxu0 %v2059
    %2105 = vmatprep.subr.mxu0 %v2062
    %2106 = vmatpush1.msra.mxu0 %v2061
    %2107 = vmatprep.subr.mxu0 %v2064
    %2108 = vmatpush1.msra.mxu0 %v2063
    %2109 = vmatprep.subr.mxu0 %v2066
    %2110 = vmatpush1.msra.mxu0 %v2065
    %2111 = vmatprep.subr.mxu0 %v2068
    %2112 = vmatpush1.msra.mxu0 %v2067
    %2113 = vmatprep.subr.mxu0 %v2070
    %2114 = vmatpush1.msra.mxu0 %v2069
    %2115 = vmatprep.subr.mxu0 %v2072
    %2116 = vmatpush1.msra.mxu0 %v2071
    %2117 = vmatprep.subr.mxu0 %v2074
    %2118 = vmatpush1.msra.mxu0 %v2073
    %2119 = vmatprep.subr.mxu0 %v2076
    %2120 = vmatpush1.msra.mxu0 %v2075
    %2121 = vmatprep.subr.mxu0 %v2078
    %2122 = vmatpush1.msra.mxu0 %v2077
    %2123 = vmatprep.subr.mxu0 %v2080
    %2124 = vmatpush1.msra.mxu0 %v2079
    %2125 = vmatprep.subr.mxu0 %v2082
    %2126 = vmatpush1.msra.mxu0 %v2081
    %2127 = vmatprep.subr.mxu0 %v2084
    %2128 = vmatpush1.msra.mxu0 %v2083
    %2129 = vmatprep.subr.mxu0 %v2086
    %2130 = vmatpush1.msra.mxu0 %v2085
    %2131 = vmatprep.subr.mxu0 %v2088
    %2132 = vmatpush1.msra.mxu0 %v2087
    %2133 = vmatprep.subr.mxu0 %v2090
    %2134 = vmatpush1.msra.mxu0 %v2089
    %2135 = vmatprep.subr.mxu0 0.0
    %2136 = vmatpush1.msra.mxu0 0.0
    %2137 = vmatprep.subr.mxu0 0.0
    %2138 = vmatpush1.msra.mxu0 0.0
    %2139 = vmatprep.subr.mxu0 0.0
    %2140 = vmatpush1.msra.mxu0 0.0
    %2141 = vmatprep.subr.mxu0 0.0
    %2142 = vmatpush1.msra.mxu0 0.0
    %2143 = vmatprep.subr.mxu0 0.0
    %2144 = vmatpush1.msra.mxu0 0.0
    %2145 = vmatprep.subr.mxu0 0.0
    %2146 = vmatpush1.msra.mxu0 0.0
    %2147 = vmatprep.subr.mxu0 0.0
    %2148 = vmatpush1.msra.mxu0 0.0
    %2149 = vmatprep.subr.mxu0 0.0
    %2150 = vmatpush1.msra.mxu0 0.0
    %2151 = vmatprep.subr.mxu0 0.0
    %2152 = vmatpush1.msra.mxu0 0.0
    %2153 = vmatprep.subr.mxu0 0.0
    %2154 = vmatpush1.msra.mxu0 0.0
    %2155 = vmatprep.subr.mxu0 0.0
    %2156 = vmatpush1.msra.mxu0 0.0
    %2157 = vmatprep.subr.mxu0 0.0
    %2158 = vmatpush1.msra.mxu0 0.0
    %2159 = vmatprep.subr.mxu0 0.0
    %2160 = vmatpush1.msra.mxu0 0.0
    %2161 = vmatprep.subr.mxu0 0.0
    %2162 = vmatpush1.msra.mxu0 0.0
    %2163 = vmatprep.subr.mxu0 0.0
    %2164 = vmatpush1.msra.mxu0 0.0
    %2165 = vmatprep.subr.mxu0 0.0
    %2166 = vmatpush1.msra.mxu0 0.0
    %2167 = vmatprep.mubr.f32.mxu0 0.0
    %2168 = vmatmul.mubr.f32.gmra.mrb[0].mxu0 %v2042
    %v2169 = vpop.f32.mrb[0].mxu0
    %v2170 = vadd.f32 %v2096, %v2169
    %v2171 = vpop.f32.mrb[0].mxu0
    %v2172 = vadd.f32 %v2100, %v2171
    %2173 = vdwg.mxu0
    %v2174 = vmax.f32 %v2170, 0.0
    %v2175 = vmax.f32 %v2172, 0.0
    %v2176 = vld [vmem:[#allocation23] sm:$0xff]
    %v2177 = vld [vmem:[#allocation23 + $0x8] sm:$0xff]
    %v2178 = vld [vmem:[#allocation23 + $0x10] sm:$0xff]
    %v2179 = vld [vmem:[#allocation23 + $0x18] sm:$0xff]
    %v2180 = vld [vmem:[#allocation23 + $0x20] sm:$0xff]
    %v2181 = vld [vmem:[#allocation23 + $0x28] sm:$0xff]
    %v2182 = vld [vmem:[#allocation23 + $0x30] sm:$0xff]
    %v2183 = vld [vmem:[#allocation23 + $0x38] sm:$0xff]
    %v2184 = vld [vmem:[#allocation23 + $0x40] sm:$0xff]
    %v2185 = vld [vmem:[#allocation23 + $0x48] sm:$0xff]
    %v2186 = vld [vmem:[#allocation23 + $0x50] sm:$0xff]
    %v2187 = vld [vmem:[#allocation23 + $0x58] sm:$0xff]
    %v2188 = vld [vmem:[#allocation23 + $0x60] sm:$0xff]
    %v2189 = vld [vmem:[#allocation23 + $0x68] sm:$0xff]
    %v2190 = vld [vmem:[#allocation23 + $0x70] sm:$0xff]
    %v2191 = vld [vmem:[#allocation23 + $0x78] sm:$0xff]
    %v2192 = vld [vmem:[#allocation23 + $0x80] sm:$0xff]
    %v2193 = vld [vmem:[#allocation23 + $0x88] sm:$0xff]
    %v2194 = vld [vmem:[#allocation23 + $0x90] sm:$0xff]
    %v2195 = vld [vmem:[#allocation23 + $0x98] sm:$0xff]
    %v2196 = vld [vmem:[#allocation23 + $0xa0] sm:$0xff]
    %v2197 = vld [vmem:[#allocation23 + $0xa8] sm:$0xff]
    %v2198 = vld [vmem:[#allocation23 + $0xb0] sm:$0xff]
    %v2199 = vld [vmem:[#allocation23 + $0xb8] sm:$0xff]
    %v2200 = vld [vmem:[#allocation23 + $0xc0] sm:$0xff]
    %v2201 = vld [vmem:[#allocation23 + $0xc8] sm:$0xff]
    %v2202 = vld [vmem:[#allocation23 + $0xd0] sm:$0xff]
    %v2203 = vld [vmem:[#allocation23 + $0xd8] sm:$0xff]
    %v2204 = vld [vmem:[#allocation23 + $0xe0] sm:$0xff]
    %v2205 = vld [vmem:[#allocation23 + $0xe8] sm:$0xff]
    %v2206 = vld [vmem:[#allocation23 + $0xf0] sm:$0xff]
    %v2207 = vld [vmem:[#allocation23 + $0xf8] sm:$0xff]
    %v2208 = vld [vmem:[#allocation23 + $0x100] sm:$0xff]
    %v2209 = vld [vmem:[#allocation23 + $0x108] sm:$0xff]
    %v2210 = vld [vmem:[#allocation23 + $0x110] sm:$0xff]
    %v2211 = vld [vmem:[#allocation23 + $0x118] sm:$0xff]
    %v2212 = vld [vmem:[#allocation23 + $0x120] sm:$0xff]
    %v2213 = vld [vmem:[#allocation23 + $0x128] sm:$0xff]
    %v2214 = vld [vmem:[#allocation23 + $0x130] sm:$0xff]
    %v2215 = vld [vmem:[#allocation23 + $0x138] sm:$0xff]
    %v2216 = vld [vmem:[#allocation23 + $0x140] sm:$0xff]
    %v2217 = vld [vmem:[#allocation23 + $0x148] sm:$0xff]
    %v2218 = vld [vmem:[#allocation23 + $0x150] sm:$0xff]
    %v2219 = vld [vmem:[#allocation23 + $0x158] sm:$0xff]
    %v2220 = vld [vmem:[#allocation23 + $0x160] sm:$0xff]
    %v2221 = vld [vmem:[#allocation23 + $0x168] sm:$0xff]
    %v2222 = vld [vmem:[#allocation23 + $0x170] sm:$0xff]
    %v2223 = vld [vmem:[#allocation23 + $0x178] sm:$0xff]
    %v2224 = vld [vmem:[#allocation23 + $0x180] sm:$0xff]
    %v2225 = vld [vmem:[#allocation23 + $0x188] sm:$0xff]
    %v2226 = vld [vmem:[#allocation23 + $0x190] sm:$0xff]
    %v2227 = vld [vmem:[#allocation23 + $0x198] sm:$0xff]
    %v2228 = vld [vmem:[#allocation23 + $0x1a0] sm:$0xff]
    %v2229 = vld [vmem:[#allocation23 + $0x1a8] sm:$0xff]
    %v2230 = vld [vmem:[#allocation23 + $0x1b0] sm:$0xff]
    %v2231 = vld [vmem:[#allocation23 + $0x1b8] sm:$0xff]
    %v2232 = vld [vmem:[#allocation23 + $0x1c0] sm:$0xff]
    %v2233 = vld [vmem:[#allocation23 + $0x1c8] sm:$0xff]
    %v2234 = vld [vmem:[#allocation23 + $0x1d0] sm:$0xff]
    %v2235 = vld [vmem:[#allocation23 + $0x1d8] sm:$0xff]
    %v2236 = vld [vmem:[#allocation23 + $0x1e0] sm:$0xff]
    %v2237 = vld [vmem:[#allocation23 + $0x1e8] sm:$0xff]
    %v2238 = vld [vmem:[#allocation23 + $0x1f0] sm:$0xff]
    %v2239 = vld [vmem:[#allocation23 + $0x1f8] sm:$0xff]
    %v2240 = vunpack.c.l.bf16 %v2176
    %v2241 = vunpack.c.h.bf16 %v2176
    %v2242 = vunpack.c.l.bf16 %v2177
    %v2243 = vunpack.c.h.bf16 %v2177
    %v2244 = vunpack.c.l.bf16 %v2178
    %v2245 = vunpack.c.h.bf16 %v2178
    %v2246 = vunpack.c.l.bf16 %v2179
    %v2247 = vunpack.c.h.bf16 %v2179
    %v2248 = vunpack.c.l.bf16 %v2180
    %v2249 = vunpack.c.h.bf16 %v2180
    %v2250 = vunpack.c.l.bf16 %v2181
    %v2251 = vunpack.c.h.bf16 %v2181
    %v2252 = vunpack.c.l.bf16 %v2182
    %v2253 = vunpack.c.h.bf16 %v2182
    %v2254 = vunpack.c.l.bf16 %v2183
    %v2255 = vunpack.c.h.bf16 %v2183
    %v2256 = vunpack.c.l.bf16 %v2184
    %v2257 = vunpack.c.h.bf16 %v2184
    %v2258 = vunpack.c.l.bf16 %v2185
    %v2259 = vunpack.c.h.bf16 %v2185
    %v2260 = vunpack.c.l.bf16 %v2186
    %v2261 = vunpack.c.h.bf16 %v2186
    %v2262 = vunpack.c.l.bf16 %v2187
    %v2263 = vunpack.c.h.bf16 %v2187
    %v2264 = vunpack.c.l.bf16 %v2188
    %v2265 = vunpack.c.h.bf16 %v2188
    %v2266 = vunpack.c.l.bf16 %v2189
    %v2267 = vunpack.c.h.bf16 %v2189
    %v2268 = vunpack.c.l.bf16 %v2190
    %v2269 = vunpack.c.h.bf16 %v2190
    %v2270 = vunpack.c.l.bf16 %v2191
    %v2271 = vunpack.c.h.bf16 %v2191
    %v2272 = vunpack.c.l.bf16 %v2192
    %v2273 = vunpack.c.h.bf16 %v2192
    %v2274 = vunpack.c.l.bf16 %v2193
    %v2275 = vunpack.c.h.bf16 %v2193
    %v2276 = vunpack.c.l.bf16 %v2194
    %v2277 = vunpack.c.h.bf16 %v2194
    %v2278 = vunpack.c.l.bf16 %v2195
    %v2279 = vunpack.c.h.bf16 %v2195
    %v2280 = vunpack.c.l.bf16 %v2196
    %v2281 = vunpack.c.h.bf16 %v2196
    %v2282 = vunpack.c.l.bf16 %v2197
    %v2283 = vunpack.c.h.bf16 %v2197
    %v2284 = vunpack.c.l.bf16 %v2198
    %v2285 = vunpack.c.h.bf16 %v2198
    %v2286 = vunpack.c.l.bf16 %v2199
    %v2287 = vunpack.c.h.bf16 %v2199
    %v2288 = vunpack.c.l.bf16 %v2200
    %v2289 = vunpack.c.h.bf16 %v2200
    %v2290 = vunpack.c.l.bf16 %v2201
    %v2291 = vunpack.c.h.bf16 %v2201
    %v2292 = vunpack.c.l.bf16 %v2202
    %v2293 = vunpack.c.h.bf16 %v2202
    %v2294 = vunpack.c.l.bf16 %v2203
    %v2295 = vunpack.c.h.bf16 %v2203
    %v2296 = vunpack.c.l.bf16 %v2204
    %v2297 = vunpack.c.h.bf16 %v2204
    %v2298 = vunpack.c.l.bf16 %v2205
    %v2299 = vunpack.c.h.bf16 %v2205
    %v2300 = vunpack.c.l.bf16 %v2206
    %v2301 = vunpack.c.h.bf16 %v2206
    %v2302 = vunpack.c.l.bf16 %v2207
    %v2303 = vunpack.c.h.bf16 %v2207
    %v2304 = vunpack.c.l.bf16 %v2208
    %v2305 = vunpack.c.h.bf16 %v2208
    %v2306 = vunpack.c.l.bf16 %v2209
    %v2307 = vunpack.c.h.bf16 %v2209
    %v2308 = vunpack.c.l.bf16 %v2210
    %v2309 = vunpack.c.h.bf16 %v2210
    %v2310 = vunpack.c.l.bf16 %v2211
    %v2311 = vunpack.c.h.bf16 %v2211
    %v2312 = vunpack.c.l.bf16 %v2212
    %v2313 = vunpack.c.h.bf16 %v2212
    %v2314 = vunpack.c.l.bf16 %v2213
    %v2315 = vunpack.c.h.bf16 %v2213
    %v2316 = vunpack.c.l.bf16 %v2214
    %v2317 = vunpack.c.h.bf16 %v2214
    %v2318 = vunpack.c.l.bf16 %v2215
    %v2319 = vunpack.c.h.bf16 %v2215
    %v2320 = vunpack.c.l.bf16 %v2216
    %v2321 = vunpack.c.h.bf16 %v2216
    %v2322 = vunpack.c.l.bf16 %v2217
    %v2323 = vunpack.c.h.bf16 %v2217
    %v2324 = vunpack.c.l.bf16 %v2218
    %v2325 = vunpack.c.h.bf16 %v2218
    %v2326 = vunpack.c.l.bf16 %v2219
    %v2327 = vunpack.c.h.bf16 %v2219
    %v2328 = vunpack.c.l.bf16 %v2220
    %v2329 = vunpack.c.h.bf16 %v2220
    %v2330 = vunpack.c.l.bf16 %v2221
    %v2331 = vunpack.c.h.bf16 %v2221
    %v2332 = vunpack.c.l.bf16 %v2222
    %v2333 = vunpack.c.h.bf16 %v2222
    %v2334 = vunpack.c.l.bf16 %v2223
    %v2335 = vunpack.c.h.bf16 %v2223
    %v2336 = vunpack.c.l.bf16 %v2224
    %v2337 = vunpack.c.h.bf16 %v2224
    %v2338 = vunpack.c.l.bf16 %v2225
    %v2339 = vunpack.c.h.bf16 %v2225
    %v2340 = vunpack.c.l.bf16 %v2226
    %v2341 = vunpack.c.h.bf16 %v2226
    %v2342 = vunpack.c.l.bf16 %v2227
    %v2343 = vunpack.c.h.bf16 %v2227
    %v2344 = vunpack.c.l.bf16 %v2228
    %v2345 = vunpack.c.h.bf16 %v2228
    %v2346 = vunpack.c.l.bf16 %v2229
    %v2347 = vunpack.c.h.bf16 %v2229
    %v2348 = vunpack.c.l.bf16 %v2230
    %v2349 = vunpack.c.h.bf16 %v2230
    %v2350 = vunpack.c.l.bf16 %v2231
    %v2351 = vunpack.c.h.bf16 %v2231
    %v2352 = vunpack.c.l.bf16 %v2232
    %v2353 = vunpack.c.h.bf16 %v2232
    %v2354 = vunpack.c.l.bf16 %v2233
    %v2355 = vunpack.c.h.bf16 %v2233
    %v2356 = vunpack.c.l.bf16 %v2234
    %v2357 = vunpack.c.h.bf16 %v2234
    %v2358 = vunpack.c.l.bf16 %v2235
    %v2359 = vunpack.c.h.bf16 %v2235
    %v2360 = vunpack.c.l.bf16 %v2236
    %v2361 = vunpack.c.h.bf16 %v2236
    %v2362 = vunpack.c.l.bf16 %v2237
    %v2363 = vunpack.c.h.bf16 %v2237
    %v2364 = vunpack.c.l.bf16 %v2238
    %v2365 = vunpack.c.h.bf16 %v2238
    %v2366 = vunpack.c.l.bf16 %v2239
    %v2367 = vunpack.c.h.bf16 %v2239
    %v2368 = vld [vmem:[%s18] sm:$0xf]
    %v2370 = vlaneseq
    %v2371 = vshrl.u32 %v2370, 7
    %v2372 = vsub.s32 0, %v2371
    %v2373 = vrot.slane %v2368, %v2372
    %v2374 = vlaneseq
    %v2375 = vshrl.u32 %v2374, 7
    %v2376 = vsub.s32 1, %v2375
    %v2377 = vrot.slane %v2368, %v2376
    %v2378 = vlaneseq
    %v2379 = vshrl.u32 %v2378, 7
    %v2380 = vsub.s32 2, %v2379
    %v2381 = vrot.slane %v2368, %v2380
    %v2382 = vlaneseq
    %v2383 = vshrl.u32 %v2382, 7
    %v2384 = vsub.s32 3, %v2383
    %v2385 = vrot.slane %v2368, %v2384
    %2390 = vmatprep.subr.mxu0 %v2241
    %2391 = vmatpush1.msra.mxu0 %v2240
    %2392 = vmatprep.subr.mxu0 %v2245
    %2393 = vmatpush1.msra.mxu0 %v2244
    %2394 = vmatprep.subr.mxu0 %v2249
    %2395 = vmatpush1.msra.mxu0 %v2248
    %2396 = vmatprep.subr.mxu0 %v2253
    %2397 = vmatpush1.msra.mxu0 %v2252
    %2398 = vmatprep.subr.mxu0 %v2257
    %2399 = vmatpush1.msra.mxu0 %v2256
    %2400 = vmatprep.subr.mxu0 %v2261
    %2401 = vmatpush1.msra.mxu0 %v2260
    %2402 = vmatprep.subr.mxu0 %v2265
    %2403 = vmatpush1.msra.mxu0 %v2264
    %2404 = vmatprep.subr.mxu0 %v2269
    %2405 = vmatpush1.msra.mxu0 %v2268
    %2406 = vmatprep.subr.mxu0 %v2273
    %2407 = vmatpush1.msra.mxu0 %v2272
    %2408 = vmatprep.subr.mxu0 %v2277
    %2409 = vmatpush1.msra.mxu0 %v2276
    %2410 = vmatprep.subr.mxu0 %v2281
    %2411 = vmatpush1.msra.mxu0 %v2280
    %2412 = vmatprep.subr.mxu0 %v2285
    %2413 = vmatpush1.msra.mxu0 %v2284
    %2414 = vmatprep.subr.mxu0 %v2289
    %2415 = vmatpush1.msra.mxu0 %v2288
    %2416 = vmatprep.subr.mxu0 %v2293
    %2417 = vmatpush1.msra.mxu0 %v2292
    %2418 = vmatprep.subr.mxu0 %v2297
    %2419 = vmatpush1.msra.mxu0 %v2296
    %2420 = vmatprep.subr.mxu0 %v2301
    %2421 = vmatpush1.msra.mxu0 %v2300
    %2422 = vmatprep.subr.mxu0 %v2305
    %2423 = vmatpush1.msra.mxu0 %v2304
    %2424 = vmatprep.subr.mxu0 %v2309
    %2425 = vmatpush1.msra.mxu0 %v2308
    %2426 = vmatprep.subr.mxu0 %v2313
    %2427 = vmatpush1.msra.mxu0 %v2312
    %2428 = vmatprep.subr.mxu0 %v2317
    %2429 = vmatpush1.msra.mxu0 %v2316
    %2430 = vmatprep.subr.mxu0 %v2321
    %2431 = vmatpush1.msra.mxu0 %v2320
    %2432 = vmatprep.subr.mxu0 %v2325
    %2433 = vmatpush1.msra.mxu0 %v2324
    %2434 = vmatprep.subr.mxu0 %v2329
    %2435 = vmatpush1.msra.mxu0 %v2328
    %2436 = vmatprep.subr.mxu0 %v2333
    %2437 = vmatpush1.msra.mxu0 %v2332
    %2438 = vmatprep.subr.mxu0 %v2337
    %2439 = vmatpush1.msra.mxu0 %v2336
    %2440 = vmatprep.subr.mxu0 %v2341
    %2441 = vmatpush1.msra.mxu0 %v2340
    %2442 = vmatprep.subr.mxu0 %v2345
    %2443 = vmatpush1.msra.mxu0 %v2344
    %2444 = vmatprep.subr.mxu0 %v2349
    %2445 = vmatpush1.msra.mxu0 %v2348
    %2446 = vmatprep.subr.mxu0 %v2353
    %2447 = vmatpush1.msra.mxu0 %v2352
    %2448 = vmatprep.subr.mxu0 %v2357
    %2449 = vmatpush1.msra.mxu0 %v2356
    %2450 = vmatprep.subr.mxu0 %v2361
    %2451 = vmatpush1.msra.mxu0 %v2360
    %2452 = vmatprep.subr.mxu0 %v2365
    %2453 = vmatpush1.msra.mxu0 %v2364
    %2454 = vmatprep.mubr.f32.mxu0 %v2175
    %2455 = vmatmul.mubr.f32.gmra.mrb[0].mxu0 %v2174
    %v2456 = vpop.f32.mrb[0].mxu0
    %v2457 = vadd.f32 %v2373, %v2456
    %v2458 = vpop.f32.mrb[0].mxu0
    %v2459 = vadd.f32 %v2377, %v2458
    %2460 = vdwg.mxu0
    %2461 = vmatprep.subr.mxu0 %v2243
    %2462 = vmatpush1.msra.mxu0 %v2242
    %2463 = vmatprep.subr.mxu0 %v2247
    %2464 = vmatpush1.msra.mxu0 %v2246
    %2465 = vmatprep.subr.mxu0 %v2251
    %2466 = vmatpush1.msra.mxu0 %v2250
    %2467 = vmatprep.subr.mxu0 %v2255
    %2468 = vmatpush1.msra.mxu0 %v2254
    %2469 = vmatprep.subr.mxu0 %v2259
    %2470 = vmatpush1.msra.mxu0 %v2258
    %2471 = vmatprep.subr.mxu0 %v2263
    %2472 = vmatpush1.msra.mxu0 %v2262
    %2473 = vmatprep.subr.mxu0 %v2267
    %2474 = vmatpush1.msra.mxu0 %v2266
    %2475 = vmatprep.subr.mxu0 %v2271
    %2476 = vmatpush1.msra.mxu0 %v2270
    %2477 = vmatprep.subr.mxu0 %v2275
    %2478 = vmatpush1.msra.mxu0 %v2274
    %2479 = vmatprep.subr.mxu0 %v2279
    %2480 = vmatpush1.msra.mxu0 %v2278
    %2481 = vmatprep.subr.mxu0 %v2283
    %2482 = vmatpush1.msra.mxu0 %v2282
    %2483 = vmatprep.subr.mxu0 %v2287
    %2484 = vmatpush1.msra.mxu0 %v2286
    %2485 = vmatprep.subr.mxu0 %v2291
    %2486 = vmatpush1.msra.mxu0 %v2290
    %2487 = vmatprep.subr.mxu0 %v2295
    %2488 = vmatpush1.msra.mxu0 %v2294
    %2489 = vmatprep.subr.mxu0 %v2299
    %2490 = vmatpush1.msra.mxu0 %v2298
    %2491 = vmatprep.subr.mxu0 %v2303
    %2492 = vmatpush1.msra.mxu0 %v2302
    %2493 = vmatprep.subr.mxu0 %v2307
    %2494 = vmatpush1.msra.mxu0 %v2306
    %2495 = vmatprep.subr.mxu0 %v2311
    %2496 = vmatpush1.msra.mxu0 %v2310
    %2497 = vmatprep.subr.mxu0 %v2315
    %2498 = vmatpush1.msra.mxu0 %v2314
    %2499 = vmatprep.subr.mxu0 %v2319
    %2500 = vmatpush1.msra.mxu0 %v2318
    %2501 = vmatprep.subr.mxu0 %v2323
    %2502 = vmatpush1.msra.mxu0 %v2322
    %2503 = vmatprep.subr.mxu0 %v2327
    %2504 = vmatpush1.msra.mxu0 %v2326
    %2505 = vmatprep.subr.mxu0 %v2331
    %2506 = vmatpush1.msra.mxu0 %v2330
    %2507 = vmatprep.subr.mxu0 %v2335
    %2508 = vmatpush1.msra.mxu0 %v2334
    %2509 = vmatprep.subr.mxu0 %v2339
    %2510 = vmatpush1.msra.mxu0 %v2338
    %2511 = vmatprep.subr.mxu0 %v2343
    %2512 = vmatpush1.msra.mxu0 %v2342
    %2513 = vmatprep.subr.mxu0 %v2347
    %2514 = vmatpush1.msra.mxu0 %v2346
    %2515 = vmatprep.subr.mxu0 %v2351
    %2516 = vmatpush1.msra.mxu0 %v2350
    %2517 = vmatprep.subr.mxu0 %v2355
    %2518 = vmatpush1.msra.mxu0 %v2354
    %2519 = vmatprep.subr.mxu0 %v2359
    %2520 = vmatpush1.msra.mxu0 %v2358
    %2521 = vmatprep.subr.mxu0 %v2363
    %2522 = vmatpush1.msra.mxu0 %v2362
    %2523 = vmatprep.subr.mxu0 %v2367
    %2524 = vmatpush1.msra.mxu0 %v2366
    %2525 = vmatprep.mubr.f32.mxu0 %v2175
    %2526 = vmatmul.mubr.f32.gmra.mrb[0].mxu0 %v2174
    %v2527 = vpop.f32.mrb[0].mxu0
    %v2528 = vadd.f32 %v2381, %v2527
    %v2529 = vpop.f32.mrb[0].mxu0
    %v2530 = vadd.f32 %v2385, %v2529
    %2531 = vdwg.mxu0
    %v2532 = vmax.f32 %v2457, 0.0
    %v2533 = vmax.f32 %v2459, 0.0
    %v2534 = vmax.f32 %v2528, 0.0
    %v2535 = vmax.f32 %v2530, 0.0
    %v2536 = vld [vmem:[#allocation25] sm:$0xff]
    %v2537 = vld [vmem:[#allocation25 + $0x8] sm:$0xff]
    %v2538 = vld [vmem:[#allocation25 + $0x10] sm:$0xff]
    %v2539 = vld [vmem:[#allocation25 + $0x18] sm:$0xff]
    %v2540 = vld [vmem:[#allocation25 + $0x20] sm:$0xff]
    %v2541 = vld [vmem:[#allocation25 + $0x28] sm:$0xff]
    %v2542 = vld [vmem:[#allocation25 + $0x30] sm:$0xff]
    %v2543 = vld [vmem:[#allocation25 + $0x38] sm:$0xff]
    %v2544 = vld [vmem:[#allocation25 + $0x40] sm:$0xff]
    %v2545 = vld [vmem:[#allocation25 + $0x48] sm:$0xff]
    %v2546 = vld [vmem:[#allocation25 + $0x50] sm:$0xff]
    %v2547 = vld [vmem:[#allocation25 + $0x58] sm:$0xff]
    %v2548 = vld [vmem:[#allocation25 + $0x60] sm:$0xff]
    %v2549 = vld [vmem:[#allocation25 + $0x68] sm:$0xff]
    %v2550 = vld [vmem:[#allocation25 + $0x70] sm:$0xff]
    %v2551 = vld [vmem:[#allocation25 + $0x78] sm:$0xff]
    %v2552 = vld [vmem:[#allocation25 + $0x80] sm:$0xff]
    %v2553 = vld [vmem:[#allocation25 + $0x88] sm:$0xff]
    %v2554 = vld [vmem:[#allocation25 + $0x90] sm:$0xff]
    %v2555 = vld [vmem:[#allocation25 + $0x98] sm:$0xff]
    %v2556 = vld [vmem:[#allocation25 + $0xa0] sm:$0xff]
    %v2557 = vld [vmem:[#allocation25 + $0xa8] sm:$0xff]
    %v2558 = vld [vmem:[#allocation25 + $0xb0] sm:$0xff]
    %v2559 = vld [vmem:[#allocation25 + $0xb8] sm:$0xff]
    %v2560 = vld [vmem:[#allocation25 + $0xc0] sm:$0xff]
    %v2561 = vld [vmem:[#allocation25 + $0xc8] sm:$0xff]
    %v2562 = vld [vmem:[#allocation25 + $0xd0] sm:$0xff]
    %v2563 = vld [vmem:[#allocation25 + $0xd8] sm:$0xff]
    %v2564 = vld [vmem:[#allocation25 + $0xe0] sm:$0xff]
    %v2565 = vld [vmem:[#allocation25 + $0xe8] sm:$0xff]
    %v2566 = vld [vmem:[#allocation25 + $0xf0] sm:$0xff]
    %v2567 = vld [vmem:[#allocation25 + $0xf8] sm:$0xff]
    %v2568 = vld [vmem:[#allocation25 + $0x100] sm:$0xff]
    %v2569 = vld [vmem:[#allocation25 + $0x108] sm:$0xff]
    %v2570 = vld [vmem:[#allocation25 + $0x110] sm:$0xff]
    %v2571 = vld [vmem:[#allocation25 + $0x118] sm:$0xff]
    %v2572 = vld [vmem:[#allocation25 + $0x120] sm:$0xff]
    %v2573 = vld [vmem:[#allocation25 + $0x128] sm:$0xff]
    %v2574 = vld [vmem:[#allocation25 + $0x130] sm:$0xff]
    %v2575 = vld [vmem:[#allocation25 + $0x138] sm:$0xff]
    %v2576 = vld [vmem:[#allocation25 + $0x140] sm:$0xff]
    %v2577 = vld [vmem:[#allocation25 + $0x148] sm:$0xff]
    %v2578 = vld [vmem:[#allocation25 + $0x150] sm:$0xff]
    %v2579 = vld [vmem:[#allocation25 + $0x158] sm:$0xff]
    %v2580 = vld [vmem:[#allocation25 + $0x160] sm:$0xff]
    %v2581 = vld [vmem:[#allocation25 + $0x168] sm:$0xff]
    %v2582 = vld [vmem:[#allocation25 + $0x170] sm:$0xff]
    %v2583 = vld [vmem:[#allocation25 + $0x178] sm:$0xff]
    %v2584 = vld [vmem:[#allocation25 + $0x180] sm:$0xff]
    %v2585 = vld [vmem:[#allocation25 + $0x188] sm:$0xff]
    %v2586 = vld [vmem:[#allocation25 + $0x190] sm:$0xff]
    %v2587 = vld [vmem:[#allocation25 + $0x198] sm:$0xff]
    %v2588 = vld [vmem:[#allocation25 + $0x1a0] sm:$0xff]
    %v2589 = vld [vmem:[#allocation25 + $0x1a8] sm:$0xff]
    %v2590 = vld [vmem:[#allocation25 + $0x1b0] sm:$0xff]
    %v2591 = vld [vmem:[#allocation25 + $0x1b8] sm:$0xff]
    %v2592 = vld [vmem:[#allocation25 + $0x1c0] sm:$0xff]
    %v2593 = vld [vmem:[#allocation25 + $0x1c8] sm:$0xff]
    %v2594 = vld [vmem:[#allocation25 + $0x1d0] sm:$0xff]
    %v2595 = vld [vmem:[#allocation25 + $0x1d8] sm:$0xff]
    %v2596 = vld [vmem:[#allocation25 + $0x1e0] sm:$0xff]
    %v2597 = vld [vmem:[#allocation25 + $0x1e8] sm:$0xff]
    %v2598 = vld [vmem:[#allocation25 + $0x1f0] sm:$0xff]
    %v2599 = vld [vmem:[#allocation25 + $0x1f8] sm:$0xff]
    %v2600 = vunpack.c.l.bf16 %v2536
    %v2601 = vunpack.c.h.bf16 %v2536
    %v2602 = vunpack.c.l.bf16 %v2537
    %v2603 = vunpack.c.h.bf16 %v2537
    %v2604 = vunpack.c.l.bf16 %v2538
    %v2605 = vunpack.c.h.bf16 %v2538
    %v2606 = vunpack.c.l.bf16 %v2539
    %v2607 = vunpack.c.h.bf16 %v2539
    %v2608 = vunpack.c.l.bf16 %v2540
    %v2609 = vunpack.c.h.bf16 %v2540
    %v2610 = vunpack.c.l.bf16 %v2541
    %v2611 = vunpack.c.h.bf16 %v2541
    %v2612 = vunpack.c.l.bf16 %v2542
    %v2613 = vunpack.c.h.bf16 %v2542
    %v2614 = vunpack.c.l.bf16 %v2543
    %v2615 = vunpack.c.h.bf16 %v2543
    %v2616 = vunpack.c.l.bf16 %v2544
    %v2617 = vunpack.c.h.bf16 %v2544
    %v2618 = vunpack.c.l.bf16 %v2545
    %v2619 = vunpack.c.h.bf16 %v2545
    %v2620 = vunpack.c.l.bf16 %v2546
    %v2621 = vunpack.c.h.bf16 %v2546
    %v2622 = vunpack.c.l.bf16 %v2547
    %v2623 = vunpack.c.h.bf16 %v2547
    %v2624 = vunpack.c.l.bf16 %v2548
    %v2625 = vunpack.c.h.bf16 %v2548
    %v2626 = vunpack.c.l.bf16 %v2549
    %v2627 = vunpack.c.h.bf16 %v2549
    %v2628 = vunpack.c.l.bf16 %v2550
    %v2629 = vunpack.c.h.bf16 %v2550
    %v2630 = vunpack.c.l.bf16 %v2551
    %v2631 = vunpack.c.h.bf16 %v2551
    %v2632 = vunpack.c.l.bf16 %v2552
    %v2633 = vunpack.c.h.bf16 %v2552
    %v2634 = vunpack.c.l.bf16 %v2553
    %v2635 = vunpack.c.h.bf16 %v2553
    %v2636 = vunpack.c.l.bf16 %v2554
    %v2637 = vunpack.c.h.bf16 %v2554
    %v2638 = vunpack.c.l.bf16 %v2555
    %v2639 = vunpack.c.h.bf16 %v2555
    %v2640 = vunpack.c.l.bf16 %v2556
    %v2641 = vunpack.c.h.bf16 %v2556
    %v2642 = vunpack.c.l.bf16 %v2557
    %v2643 = vunpack.c.h.bf16 %v2557
    %v2644 = vunpack.c.l.bf16 %v2558
    %v2645 = vunpack.c.h.bf16 %v2558
    %v2646 = vunpack.c.l.bf16 %v2559
    %v2647 = vunpack.c.h.bf16 %v2559
    %v2648 = vunpack.c.l.bf16 %v2560
    %v2649 = vunpack.c.h.bf16 %v2560
    %v2650 = vunpack.c.l.bf16 %v2561
    %v2651 = vunpack.c.h.bf16 %v2561
    %v2652 = vunpack.c.l.bf16 %v2562
    %v2653 = vunpack.c.h.bf16 %v2562
    %v2654 = vunpack.c.l.bf16 %v2563
    %v2655 = vunpack.c.h.bf16 %v2563
    %v2656 = vunpack.c.l.bf16 %v2564
    %v2657 = vunpack.c.h.bf16 %v2564
    %v2658 = vunpack.c.l.bf16 %v2565
    %v2659 = vunpack.c.h.bf16 %v2565
    %v2660 = vunpack.c.l.bf16 %v2566
    %v2661 = vunpack.c.h.bf16 %v2566
    %v2662 = vunpack.c.l.bf16 %v2567
    %v2663 = vunpack.c.h.bf16 %v2567
    %v2664 = vunpack.c.l.bf16 %v2568
    %v2665 = vunpack.c.h.bf16 %v2568
    %v2666 = vunpack.c.l.bf16 %v2569
    %v2667 = vunpack.c.h.bf16 %v2569
    %v2668 = vunpack.c.l.bf16 %v2570
    %v2669 = vunpack.c.h.bf16 %v2570
    %v2670 = vunpack.c.l.bf16 %v2571
    %v2671 = vunpack.c.h.bf16 %v2571
    %v2672 = vunpack.c.l.bf16 %v2572
    %v2673 = vunpack.c.h.bf16 %v2572
    %v2674 = vunpack.c.l.bf16 %v2573
    %v2675 = vunpack.c.h.bf16 %v2573
    %v2676 = vunpack.c.l.bf16 %v2574
    %v2677 = vunpack.c.h.bf16 %v2574
    %v2678 = vunpack.c.l.bf16 %v2575
    %v2679 = vunpack.c.h.bf16 %v2575
    %v2680 = vunpack.c.l.bf16 %v2576
    %v2681 = vunpack.c.h.bf16 %v2576
    %v2682 = vunpack.c.l.bf16 %v2577
    %v2683 = vunpack.c.h.bf16 %v2577
    %v2684 = vunpack.c.l.bf16 %v2578
    %v2685 = vunpack.c.h.bf16 %v2578
    %v2686 = vunpack.c.l.bf16 %v2579
    %v2687 = vunpack.c.h.bf16 %v2579
    %v2688 = vunpack.c.l.bf16 %v2580
    %v2689 = vunpack.c.h.bf16 %v2580
    %v2690 = vunpack.c.l.bf16 %v2581
    %v2691 = vunpack.c.h.bf16 %v2581
    %v2692 = vunpack.c.l.bf16 %v2582
    %v2693 = vunpack.c.h.bf16 %v2582
    %v2694 = vunpack.c.l.bf16 %v2583
    %v2695 = vunpack.c.h.bf16 %v2583
    %v2696 = vunpack.c.l.bf16 %v2584
    %v2697 = vunpack.c.h.bf16 %v2584
    %v2698 = vunpack.c.l.bf16 %v2585
    %v2699 = vunpack.c.h.bf16 %v2585
    %v2700 = vunpack.c.l.bf16 %v2586
    %v2701 = vunpack.c.h.bf16 %v2586
    %v2702 = vunpack.c.l.bf16 %v2587
    %v2703 = vunpack.c.h.bf16 %v2587
    %v2704 = vunpack.c.l.bf16 %v2588
    %v2705 = vunpack.c.h.bf16 %v2588
    %v2706 = vunpack.c.l.bf16 %v2589
    %v2707 = vunpack.c.h.bf16 %v2589
    %v2708 = vunpack.c.l.bf16 %v2590
    %v2709 = vunpack.c.h.bf16 %v2590
    %v2710 = vunpack.c.l.bf16 %v2591
    %v2711 = vunpack.c.h.bf16 %v2591
    %v2712 = vunpack.c.l.bf16 %v2592
    %v2713 = vunpack.c.h.bf16 %v2592
    %v2714 = vunpack.c.l.bf16 %v2593
    %v2715 = vunpack.c.h.bf16 %v2593
    %v2716 = vunpack.c.l.bf16 %v2594
    %v2717 = vunpack.c.h.bf16 %v2594
    %v2718 = vunpack.c.l.bf16 %v2595
    %v2719 = vunpack.c.h.bf16 %v2595
    %v2720 = vunpack.c.l.bf16 %v2596
    %v2721 = vunpack.c.h.bf16 %v2596
    %v2722 = vunpack.c.l.bf16 %v2597
    %v2723 = vunpack.c.h.bf16 %v2597
    %v2724 = vunpack.c.l.bf16 %v2598
    %v2725 = vunpack.c.h.bf16 %v2598
    %v2726 = vunpack.c.l.bf16 %v2599
    %v2727 = vunpack.c.h.bf16 %v2599
    %v2728 = vld [vmem:[%s20] sm:$0x3]
    %v2730 = vlaneseq
    %v2731 = vshrl.u32 %v2730, 7
    %v2732 = vsub.s32 0, %v2731
    %v2733 = vrot.slane %v2728, %v2732
    %v2734 = vlaneseq
    %v2735 = vshrl.u32 %v2734, 7
    %v2736 = vsub.s32 1, %v2735
    %v2737 = vrot.slane %v2728, %v2736
    %2740 = vmatprep.subr.mxu0 %v2601
    %2741 = vmatpush1.msra.mxu0 %v2600
    %2742 = vmatprep.subr.mxu0 %v2603
    %2743 = vmatpush1.msra.mxu0 %v2602
    %2744 = vmatprep.subr.mxu0 %v2605
    %2745 = vmatpush1.msra.mxu0 %v2604
    %2746 = vmatprep.subr.mxu0 %v2607
    %2747 = vmatpush1.msra.mxu0 %v2606
    %2748 = vmatprep.subr.mxu0 %v2609
    %2749 = vmatpush1.msra.mxu0 %v2608
    %2750 = vmatprep.subr.mxu0 %v2611
    %2751 = vmatpush1.msra.mxu0 %v2610
    %2752 = vmatprep.subr.mxu0 %v2613
    %2753 = vmatpush1.msra.mxu0 %v2612
    %2754 = vmatprep.subr.mxu0 %v2615
    %2755 = vmatpush1.msra.mxu0 %v2614
    %2756 = vmatprep.subr.mxu0 %v2617
    %2757 = vmatpush1.msra.mxu0 %v2616
    %2758 = vmatprep.subr.mxu0 %v2619
    %2759 = vmatpush1.msra.mxu0 %v2618
    %2760 = vmatprep.subr.mxu0 %v2621
    %2761 = vmatpush1.msra.mxu0 %v2620
    %2762 = vmatprep.subr.mxu0 %v2623
    %2763 = vmatpush1.msra.mxu0 %v2622
    %2764 = vmatprep.subr.mxu0 %v2625
    %2765 = vmatpush1.msra.mxu0 %v2624
    %2766 = vmatprep.subr.mxu0 %v2627
    %2767 = vmatpush1.msra.mxu0 %v2626
    %2768 = vmatprep.subr.mxu0 %v2629
    %2769 = vmatpush1.msra.mxu0 %v2628
    %2770 = vmatprep.subr.mxu0 %v2631
    %2771 = vmatpush1.msra.mxu0 %v2630
    %2772 = vmatprep.subr.mxu0 %v2633
    %2773 = vmatpush1.msra.mxu0 %v2632
    %2774 = vmatprep.subr.mxu0 %v2635
    %2775 = vmatpush1.msra.mxu0 %v2634
    %2776 = vmatprep.subr.mxu0 %v2637
    %2777 = vmatpush1.msra.mxu0 %v2636
    %2778 = vmatprep.subr.mxu0 %v2639
    %2779 = vmatpush1.msra.mxu0 %v2638
    %2780 = vmatprep.subr.mxu0 %v2641
    %2781 = vmatpush1.msra.mxu0 %v2640
    %2782 = vmatprep.subr.mxu0 %v2643
    %2783 = vmatpush1.msra.mxu0 %v2642
    %2784 = vmatprep.subr.mxu0 %v2645
    %2785 = vmatpush1.msra.mxu0 %v2644
    %2786 = vmatprep.subr.mxu0 %v2647
    %2787 = vmatpush1.msra.mxu0 %v2646
    %2788 = vmatprep.subr.mxu0 %v2649
    %2789 = vmatpush1.msra.mxu0 %v2648
    %2790 = vmatprep.subr.mxu0 %v2651
    %2791 = vmatpush1.msra.mxu0 %v2650
    %2792 = vmatprep.subr.mxu0 %v2653
    %2793 = vmatpush1.msra.mxu0 %v2652
    %2794 = vmatprep.subr.mxu0 %v2655
    %2795 = vmatpush1.msra.mxu0 %v2654
    %2796 = vmatprep.subr.mxu0 %v2657
    %2797 = vmatpush1.msra.mxu0 %v2656
    %2798 = vmatprep.subr.mxu0 %v2659
    %2799 = vmatpush1.msra.mxu0 %v2658
    %2800 = vmatprep.subr.mxu0 %v2661
    %2801 = vmatpush1.msra.mxu0 %v2660
    %2802 = vmatprep.subr.mxu0 %v2663
    %2803 = vmatpush1.msra.mxu0 %v2662
    %2804 = vmatprep.mubr.f32.mxu0 %v2533
    %2805 = vmatmul.mubr.f32.gmra.mrb[0].mxu0 %v2532
    %v2806 = vpop.f32.mrb[0].mxu0
    %v2807 = vadd.f32 %v2733, %v2806
    %v2808 = vpop.f32.mrb[0].mxu0
    %v2809 = vadd.f32 %v2737, %v2808
    %2810 = vdwg.mxu0
    %2811 = vmatprep.subr.mxu0 %v2665
    %2812 = vmatpush1.msra.mxu0 %v2664
    %2813 = vmatprep.subr.mxu0 %v2667
    %2814 = vmatpush1.msra.mxu0 %v2666
    %2815 = vmatprep.subr.mxu0 %v2669
    %2816 = vmatpush1.msra.mxu0 %v2668
    %2817 = vmatprep.subr.mxu0 %v2671
    %2818 = vmatpush1.msra.mxu0 %v2670
    %2819 = vmatprep.subr.mxu0 %v2673
    %2820 = vmatpush1.msra.mxu0 %v2672
    %2821 = vmatprep.subr.mxu0 %v2675
    %2822 = vmatpush1.msra.mxu0 %v2674
    %2823 = vmatprep.subr.mxu0 %v2677
    %2824 = vmatpush1.msra.mxu0 %v2676
    %2825 = vmatprep.subr.mxu0 %v2679
    %2826 = vmatpush1.msra.mxu0 %v2678
    %2827 = vmatprep.subr.mxu0 %v2681
    %2828 = vmatpush1.msra.mxu0 %v2680
    %2829 = vmatprep.subr.mxu0 %v2683
    %2830 = vmatpush1.msra.mxu0 %v2682
    %2831 = vmatprep.subr.mxu0 %v2685
    %2832 = vmatpush1.msra.mxu0 %v2684
    %2833 = vmatprep.subr.mxu0 %v2687
    %2834 = vmatpush1.msra.mxu0 %v2686
    %2835 = vmatprep.subr.mxu0 %v2689
    %2836 = vmatpush1.msra.mxu0 %v2688
    %2837 = vmatprep.subr.mxu0 %v2691
    %2838 = vmatpush1.msra.mxu0 %v2690
    %2839 = vmatprep.subr.mxu0 %v2693
    %2840 = vmatpush1.msra.mxu0 %v2692
    %2841 = vmatprep.subr.mxu0 %v2695
    %2842 = vmatpush1.msra.mxu0 %v2694
    %2843 = vmatprep.subr.mxu0 %v2697
    %2844 = vmatpush1.msra.mxu0 %v2696
    %2845 = vmatprep.subr.mxu0 %v2699
    %2846 = vmatpush1.msra.mxu0 %v2698
    %2847 = vmatprep.subr.mxu0 %v2701
    %2848 = vmatpush1.msra.mxu0 %v2700
    %2849 = vmatprep.subr.mxu0 %v2703
    %2850 = vmatpush1.msra.mxu0 %v2702
    %2851 = vmatprep.subr.mxu0 %v2705
    %2852 = vmatpush1.msra.mxu0 %v2704
    %2853 = vmatprep.subr.mxu0 %v2707
    %2854 = vmatpush1.msra.mxu0 %v2706
    %2855 = vmatprep.subr.mxu0 %v2709
    %2856 = vmatpush1.msra.mxu0 %v2708
    %2857 = vmatprep.subr.mxu0 %v2711
    %2858 = vmatpush1.msra.mxu0 %v2710
    %2859 = vmatprep.subr.mxu0 %v2713
    %2860 = vmatpush1.msra.mxu0 %v2712
    %2861 = vmatprep.subr.mxu0 %v2715
    %2862 = vmatpush1.msra.mxu0 %v2714
    %2863 = vmatprep.subr.mxu0 %v2717
    %2864 = vmatpush1.msra.mxu0 %v2716
    %2865 = vmatprep.subr.mxu0 %v2719
    %2866 = vmatpush1.msra.mxu0 %v2718
    %2867 = vmatprep.subr.mxu0 %v2721
    %2868 = vmatpush1.msra.mxu0 %v2720
    %2869 = vmatprep.subr.mxu0 %v2723
    %2870 = vmatpush1.msra.mxu0 %v2722
    %2871 = vmatprep.subr.mxu0 %v2725
    %2872 = vmatpush1.msra.mxu0 %v2724
    %2873 = vmatprep.subr.mxu0 %v2727
    %2874 = vmatpush1.msra.mxu0 %v2726
    %2875 = vmatprep.mubr.f32.mxu0 %v2535
    %2876 = vmatmul.mubr.f32.gmra.mrb[0].mxu0 %v2534
    %v2877 = vpop.f32.mrb[0].mxu0
    %v2878 = vadd.f32 %v2807, %v2877
    %v2879 = vpop.f32.mrb[0].mxu0
    %v2880 = vadd.f32 %v2809, %v2879
    %2881 = vdwg.mxu0
    %v2882 = vmax.f32 %v2878, 0.0
    %v2883 = vmax.f32 %v2880, 0.0
    %v2884 = vld [vmem:[#allocation26] sm:$0xf]
    %v2885 = vld [vmem:[#allocation26 + $0x4] sm:$0xf]
    %v2886 = vld [vmem:[#allocation26 + $0x8] sm:$0xf]
    %v2887 = vld [vmem:[#allocation26 + $0xc] sm:$0xf]
    %v2888 = vld [vmem:[#allocation26 + $0x10] sm:$0xf]
    %v2889 = vld [vmem:[#allocation26 + $0x14] sm:$0xf]
    %v2890 = vld [vmem:[#allocation26 + $0x18] sm:$0xf]
    %v2891 = vld [vmem:[#allocation26 + $0x1c] sm:$0xf]
    %v2892 = vld [vmem:[#allocation26 + $0x20] sm:$0xf]
    %v2893 = vld [vmem:[#allocation26 + $0x24] sm:$0xf]
    %v2894 = vld [vmem:[#allocation26 + $0x28] sm:$0xf]
    %v2895 = vld [vmem:[#allocation26 + $0x2c] sm:$0xf]
    %v2896 = vld [vmem:[#allocation26 + $0x30] sm:$0xf]
    %v2897 = vld [vmem:[#allocation26 + $0x34] sm:$0xf]
    %v2898 = vld [vmem:[#allocation26 + $0x38] sm:$0xf]
    %v2899 = vld [vmem:[#allocation26 + $0x3c] sm:$0xf]
    %v2900 = vld [vmem:[#allocation26 + $0x40] sm:$0xf]
    %v2901 = vld [vmem:[#allocation26 + $0x44] sm:$0xf]
    %v2902 = vld [vmem:[#allocation26 + $0x48] sm:$0xf]
    %v2903 = vld [vmem:[#allocation26 + $0x4c] sm:$0xf]
    %v2904 = vld [vmem:[#allocation26 + $0x50] sm:$0xf]
    %v2905 = vld [vmem:[#allocation26 + $0x54] sm:$0xf]
    %v2906 = vld [vmem:[#allocation26 + $0x58] sm:$0xf]
    %v2907 = vld [vmem:[#allocation26 + $0x5c] sm:$0xf]
    %v2908 = vld [vmem:[#allocation26 + $0x60] sm:$0xf]
    %v2909 = vld [vmem:[#allocation26 + $0x64] sm:$0xf]
    %v2910 = vld [vmem:[#allocation26 + $0x68] sm:$0xf]
    %v2911 = vld [vmem:[#allocation26 + $0x6c] sm:$0xf]
    %v2912 = vld [vmem:[#allocation26 + $0x70] sm:$0xf]
    %v2913 = vld [vmem:[#allocation26 + $0x74] sm:$0xf]
    %v2914 = vld [vmem:[#allocation26 + $0x78] sm:$0xf]
    %v2915 = vld [vmem:[#allocation26 + $0x7c] sm:$0xf]
    %v2916 = vunpack.c.l.bf16 %v2884
    %v2917 = vunpack.c.l.bf16 %v2885
    %v2918 = vunpack.c.l.bf16 %v2886
    %v2919 = vunpack.c.l.bf16 %v2887
    %v2920 = vunpack.c.l.bf16 %v2888
    %v2921 = vunpack.c.l.bf16 %v2889
    %v2922 = vunpack.c.l.bf16 %v2890
    %v2923 = vunpack.c.l.bf16 %v2891
    %v2924 = vunpack.c.l.bf16 %v2892
    %v2925 = vunpack.c.l.bf16 %v2893
    %v2926 = vunpack.c.l.bf16 %v2894
    %v2927 = vunpack.c.l.bf16 %v2895
    %v2928 = vunpack.c.l.bf16 %v2896
    %v2929 = vunpack.c.l.bf16 %v2897
    %v2930 = vunpack.c.l.bf16 %v2898
    %v2931 = vunpack.c.l.bf16 %v2899
    %v2932 = vunpack.c.l.bf16 %v2900
    %v2933 = vunpack.c.l.bf16 %v2901
    %v2934 = vunpack.c.l.bf16 %v2902
    %v2935 = vunpack.c.l.bf16 %v2903
    %v2936 = vunpack.c.l.bf16 %v2904
    %v2937 = vunpack.c.l.bf16 %v2905
    %v2938 = vunpack.c.l.bf16 %v2906
    %v2939 = vunpack.c.l.bf16 %v2907
    %v2940 = vunpack.c.l.bf16 %v2908
    %v2941 = vunpack.c.l.bf16 %v2909
    %v2942 = vunpack.c.l.bf16 %v2910
    %v2943 = vunpack.c.l.bf16 %v2911
    %v2944 = vunpack.c.l.bf16 %v2912
    %v2945 = vunpack.c.l.bf16 %v2913
    %v2946 = vunpack.c.l.bf16 %v2914
    %v2947 = vunpack.c.l.bf16 %v2915
    %v2948 = vld [vmem:[%s22] sm:$0x1]
    %v2950 = vlaneseq
    %v2951 = vshrl.u32 %v2950, 7
    %v2952 = vsub.s32 0, %v2951
    %v2953 = vrot.slane %v2948, %v2952
    %2955 = vmatprep.subr.mxu0 0.0
    %2956 = vmatpush1.msra.mxu0 %v2916
    %2957 = vmatprep.subr.mxu0 0.0
    %2958 = vmatpush1.msra.mxu0 %v2917
    %2959 = vmatprep.subr.mxu0 0.0
    %2960 = vmatpush1.msra.mxu0 %v2918
    %2961 = vmatprep.subr.mxu0 0.0
    %2962 = vmatpush1.msra.mxu0 %v2919
    %2963 = vmatprep.subr.mxu0 0.0
    %2964 = vmatpush1.msra.mxu0 %v2920
    %2965 = vmatprep.subr.mxu0 0.0
    %2966 = vmatpush1.msra.mxu0 %v2921
    %2967 = vmatprep.subr.mxu0 0.0
    %2968 = vmatpush1.msra.mxu0 %v2922
    %2969 = vmatprep.subr.mxu0 0.0
    %2970 = vmatpush1.msra.mxu0 %v2923
    %2971 = vmatprep.subr.mxu0 0.0
    %2972 = vmatpush1.msra.mxu0 %v2924
    %2973 = vmatprep.subr.mxu0 0.0
    %2974 = vmatpush1.msra.mxu0 %v2925
    %2975 = vmatprep.subr.mxu0 0.0
    %2976 = vmatpush1.msra.mxu0 %v2926
    %2977 = vmatprep.subr.mxu0 0.0
    %2978 = vmatpush1.msra.mxu0 %v2927
    %2979 = vmatprep.subr.mxu0 0.0
    %2980 = vmatpush1.msra.mxu0 %v2928
    %2981 = vmatprep.subr.mxu0 0.0
    %2982 = vmatpush1.msra.mxu0 %v2929
    %2983 = vmatprep.subr.mxu0 0.0
    %2984 = vmatpush1.msra.mxu0 %v2930
    %2985 = vmatprep.subr.mxu0 0.0
    %2986 = vmatpush1.msra.mxu0 %v2931
    %2987 = vmatprep.subr.mxu0 0.0
    %2988 = vmatpush1.msra.mxu0 %v2932
    %2989 = vmatprep.subr.mxu0 0.0
    %2990 = vmatpush1.msra.mxu0 %v2933
    %2991 = vmatprep.subr.mxu0 0.0
    %2992 = vmatpush1.msra.mxu0 %v2934
    %2993 = vmatprep.subr.mxu0 0.0
    %2994 = vmatpush1.msra.mxu0 %v2935
    %2995 = vmatprep.subr.mxu0 0.0
    %2996 = vmatpush1.msra.mxu0 %v2936
    %2997 = vmatprep.subr.mxu0 0.0
    %2998 = vmatpush1.msra.mxu0 %v2937
    %2999 = vmatprep.subr.mxu0 0.0
    %3000 = vmatpush1.msra.mxu0 %v2938
    %3001 = vmatprep.subr.mxu0 0.0
    %3002 = vmatpush1.msra.mxu0 %v2939
    %3003 = vmatprep.subr.mxu0 0.0
    %3004 = vmatpush1.msra.mxu0 %v2940
    %3005 = vmatprep.subr.mxu0 0.0
    %3006 = vmatpush1.msra.mxu0 %v2941
    %3007 = vmatprep.subr.mxu0 0.0
    %3008 = vmatpush1.msra.mxu0 %v2942
    %3009 = vmatprep.subr.mxu0 0.0
    %3010 = vmatpush1.msra.mxu0 %v2943
    %3011 = vmatprep.subr.mxu0 0.0
    %3012 = vmatpush1.msra.mxu0 %v2944
    %3013 = vmatprep.subr.mxu0 0.0
    %3014 = vmatpush1.msra.mxu0 %v2945
    %3015 = vmatprep.subr.mxu0 0.0
    %3016 = vmatpush1.msra.mxu0 %v2946
    %3017 = vmatprep.subr.mxu0 0.0
    %3018 = vmatpush1.msra.mxu0 %v2947
    %3019 = vmatprep.mubr.f32.mxu0 %v2883
    %3020 = vmatmul.mubr.f32.gmra.mrb[0].mxu0 %v2882
    %v3021 = vpop.f32.mrb[0].mxu0
    %v3022 = vadd.f32 %v2953, %v3021
    %v3023 = vpop.f32.mrb[0].mxu0
    %3024 = vdwg.mxu0
    %v3025 = vmax.f32 %v3022, 0.0
    %v3026 = vld [vmem:[%s23] sm:$0xf]
    %v3027 = vld [vmem:[%s23 + $0x4] sm:$0xf]
    %v3028 = vld [vmem:[%s23 + $0x8] sm:$0xf]
    %v3029 = vld [vmem:[%s23 + $0xc] sm:$0xf]
    %v3030 = vld [vmem:[%s23 + $0x10] sm:$0xf]
    %v3031 = vld [vmem:[%s23 + $0x14] sm:$0xf]
    %v3032 = vld [vmem:[%s23 + $0x18] sm:$0xf]
    %v3033 = vld [vmem:[%s23 + $0x1c] sm:$0xf]
    %v3034 = vld [vmem:[%s23 + $0x20] sm:$0xf]
    %v3035 = vld [vmem:[%s23 + $0x24] sm:$0xf]
    %v3036 = vld [vmem:[%s23 + $0x28] sm:$0xf]
    %v3037 = vld [vmem:[%s23 + $0x2c] sm:$0xf]
    %v3038 = vld [vmem:[%s23 + $0x30] sm:$0xf]
    %v3039 = vld [vmem:[%s23 + $0x34] sm:$0xf]
    %v3040 = vld [vmem:[%s23 + $0x38] sm:$0xf]
    %v3041 = vld [vmem:[%s23 + $0x3c] sm:$0xf]
    %v3042 = vunpack.c.l.bf16 %v3026
    %v3043 = vunpack.c.l.bf16 %v3027
    %v3044 = vunpack.c.l.bf16 %v3028
    %v3045 = vunpack.c.l.bf16 %v3029
    %v3046 = vunpack.c.l.bf16 %v3030
    %v3047 = vunpack.c.l.bf16 %v3031
    %v3048 = vunpack.c.l.bf16 %v3032
    %v3049 = vunpack.c.l.bf16 %v3033
    %v3050 = vunpack.c.l.bf16 %v3034
    %v3051 = vunpack.c.l.bf16 %v3035
    %v3052 = vunpack.c.l.bf16 %v3036
    %v3053 = vunpack.c.l.bf16 %v3037
    %v3054 = vunpack.c.l.bf16 %v3038
    %v3055 = vunpack.c.l.bf16 %v3039
    %v3056 = vunpack.c.l.bf16 %v3040
    %v3057 = vunpack.c.l.bf16 %v3041
    %v3058 = vld [vmem:[%s24] sm:$0x1]
    %v3060 = vlaneseq
    %v3061 = vshrl.u32 %v3060, 7
    %v3062 = vsub.s32 0, %v3061
    %v3063 = vrot.slane %v3058, %v3062
    %3065 = vmatprep.subr.mxu0 0.0
    %3066 = vmatpush1.msra.mxu0 %v3042
    %3067 = vmatprep.subr.mxu0 0.0
    %3068 = vmatpush1.msra.mxu0 %v3043
    %3069 = vmatprep.subr.mxu0 0.0
    %3070 = vmatpush1.msra.mxu0 %v3044
    %3071 = vmatprep.subr.mxu0 0.0
    %3072 = vmatpush1.msra.mxu0 %v3045
    %3073 = vmatprep.subr.mxu0 0.0
    %3074 = vmatpush1.msra.mxu0 %v3046
    %3075 = vmatprep.subr.mxu0 0.0
    %3076 = vmatpush1.msra.mxu0 %v3047
    %3077 = vmatprep.subr.mxu0 0.0
    %3078 = vmatpush1.msra.mxu0 %v3048
    %3079 = vmatprep.subr.mxu0 0.0
    %3080 = vmatpush1.msra.mxu0 %v3049
    %3081 = vmatprep.subr.mxu0 0.0
    %3082 = vmatpush1.msra.mxu0 %v3050
    %3083 = vmatprep.subr.mxu0 0.0
    %3084 = vmatpush1.msra.mxu0 %v3051
    %3085 = vmatprep.subr.mxu0 0.0
    %3086 = vmatpush1.msra.mxu0 %v3052
    %3087 = vmatprep.subr.mxu0 0.0
    %3088 = vmatpush1.msra.mxu0 %v3053
    %3089 = vmatprep.subr.mxu0 0.0
    %3090 = vmatpush1.msra.mxu0 %v3054
    %3091 = vmatprep.subr.mxu0 0.0
    %3092 = vmatpush1.msra.mxu0 %v3055
    %3093 = vmatprep.subr.mxu0 0.0
    %3094 = vmatpush1.msra.mxu0 %v3056
    %3095 = vmatprep.subr.mxu0 0.0
    %3096 = vmatpush1.msra.mxu0 %v3057
    %3097 = vmatprep.subr.mxu0 0.0
    %3098 = vmatpush1.msra.mxu0 0.0
    %3099 = vmatprep.subr.mxu0 0.0
    %3100 = vmatpush1.msra.mxu0 0.0
    %3101 = vmatprep.subr.mxu0 0.0
    %3102 = vmatpush1.msra.mxu0 0.0
    %3103 = vmatprep.subr.mxu0 0.0
    %3104 = vmatpush1.msra.mxu0 0.0
    %3105 = vmatprep.subr.mxu0 0.0
    %3106 = vmatpush1.msra.mxu0 0.0
    %3107 = vmatprep.subr.mxu0 0.0
    %3108 = vmatpush1.msra.mxu0 0.0
    %3109 = vmatprep.subr.mxu0 0.0
    %3110 = vmatpush1.msra.mxu0 0.0
    %3111 = vmatprep.subr.mxu0 0.0
    %3112 = vmatpush1.msra.mxu0 0.0
    %3113 = vmatprep.subr.mxu0 0.0
    %3114 = vmatpush1.msra.mxu0 0.0
    %3115 = vmatprep.subr.mxu0 0.0
    %3116 = vmatpush1.msra.mxu0 0.0
    %3117 = vmatprep.subr.mxu0 0.0
    %3118 = vmatpush1.msra.mxu0 0.0
    %3119 = vmatprep.subr.mxu0 0.0
    %3120 = vmatpush1.msra.mxu0 0.0
    %3121 = vmatprep.subr.mxu0 0.0
    %3122 = vmatpush1.msra.mxu0 0.0
    %3123 = vmatprep.subr.mxu0 0.0
    %3124 = vmatpush1.msra.mxu0 0.0
    %3125 = vmatprep.subr.mxu0 0.0
    %3126 = vmatpush1.msra.mxu0 0.0
    %3127 = vmatprep.subr.mxu0 0.0
    %3128 = vmatpush1.msra.mxu0 0.0
    %3129 = vmatprep.mubr.f32.mxu0 0.0
    %3130 = vmatmul.mubr.f32.gmra.mrb[0].mxu0 %v3025
    %v3131 = vpop.f32.mrb[0].mxu0
    %v3132 = vadd.f32 %v3063, %v3131
    %v3133 = vpop.f32.mrb[0].mxu0
    %3134 = vdwg.mxu0
    %v3135 = vmax.f32 %v3132, 0.0
    %v3136 = vld [vmem:[%s25] sm:$0xf]
    %v3137 = vld [vmem:[%s25 + $0x4] sm:$0xf]
    %v3138 = vld [vmem:[%s25 + $0x8] sm:$0xf]
    %v3139 = vld [vmem:[%s25 + $0xc] sm:$0xf]
    %v3140 = vld [vmem:[%s25 + $0x10] sm:$0xf]
    %v3141 = vld [vmem:[%s25 + $0x14] sm:$0xf]
    %v3142 = vld [vmem:[%s25 + $0x18] sm:$0xf]
    %v3143 = vld [vmem:[%s25 + $0x1c] sm:$0xf]
    %v3144 = vunpack.c.l.bf16 %v3136
    %v3145 = vunpack.c.l.bf16 %v3137
    %v3146 = vunpack.c.l.bf16 %v3138
    %v3147 = vunpack.c.l.bf16 %v3139
    %v3148 = vunpack.c.l.bf16 %v3140
    %v3149 = vunpack.c.l.bf16 %v3141
    %v3150 = vunpack.c.l.bf16 %v3142
    %v3151 = vunpack.c.l.bf16 %v3143
    %v3152 = vld [vmem:[%s26] sm:$0x1]
    %v3154 = vlaneseq
    %v3155 = vshrl.u32 %v3154, 7
    %v3156 = vsub.s32 0, %v3155
    %v3157 = vrot.slane %v3152, %v3156
    %vm3159 = vcmask 523264
    %v3161 = vsel %vm3159, %v3135, 0
    %3163 = vmatprep.subr.mxu0 0.0
    %3164 = vmatpush1.msra.mxu0 %v3144
    %3165 = vmatprep.subr.mxu0 0.0
    %3166 = vmatpush1.msra.mxu0 %v3145
    %3167 = vmatprep.subr.mxu0 0.0
    %3168 = vmatpush1.msra.mxu0 %v3146
    %3169 = vmatprep.subr.mxu0 0.0
    %3170 = vmatpush1.msra.mxu0 %v3147
    %3171 = vmatprep.subr.mxu0 0.0
    %3172 = vmatpush1.msra.mxu0 %v3148
    %3173 = vmatprep.subr.mxu0 0.0
    %3174 = vmatpush1.msra.mxu0 %v3149
    %3175 = vmatprep.subr.mxu0 0.0
    %3176 = vmatpush1.msra.mxu0 %v3150
    %3177 = vmatprep.subr.mxu0 0.0
    %3178 = vmatpush1.msra.mxu0 %v3151
    %3179 = vmatprep.subr.mxu0 0.0
    %3180 = vmatpush1.msra.mxu0 0.0
    %3181 = vmatprep.subr.mxu0 0.0
    %3182 = vmatpush1.msra.mxu0 0.0
    %3183 = vmatprep.subr.mxu0 0.0
    %3184 = vmatpush1.msra.mxu0 0.0
    %3185 = vmatprep.subr.mxu0 0.0
    %3186 = vmatpush1.msra.mxu0 0.0
    %3187 = vmatprep.subr.mxu0 0.0
    %3188 = vmatpush1.msra.mxu0 0.0
    %3189 = vmatprep.subr.mxu0 0.0
    %3190 = vmatpush1.msra.mxu0 0.0
    %3191 = vmatprep.subr.mxu0 0.0
    %3192 = vmatpush1.msra.mxu0 0.0
    %3193 = vmatprep.subr.mxu0 0.0
    %3194 = vmatpush1.msra.mxu0 0.0
    %3195 = vmatprep.subr.mxu0 0.0
    %3196 = vmatpush1.msra.mxu0 0.0
    %3197 = vmatprep.subr.mxu0 0.0
    %3198 = vmatpush1.msra.mxu0 0.0
    %3199 = vmatprep.subr.mxu0 0.0
    %3200 = vmatpush1.msra.mxu0 0.0
    %3201 = vmatprep.subr.mxu0 0.0
    %3202 = vmatpush1.msra.mxu0 0.0
    %3203 = vmatprep.subr.mxu0 0.0
    %3204 = vmatpush1.msra.mxu0 0.0
    %3205 = vmatprep.subr.mxu0 0.0
    %3206 = vmatpush1.msra.mxu0 0.0
    %3207 = vmatprep.subr.mxu0 0.0
    %3208 = vmatpush1.msra.mxu0 0.0
    %3209 = vmatprep.subr.mxu0 0.0
    %3210 = vmatpush1.msra.mxu0 0.0
    %3211 = vmatprep.subr.mxu0 0.0
    %3212 = vmatpush1.msra.mxu0 0.0
    %3213 = vmatprep.subr.mxu0 0.0
    %3214 = vmatpush1.msra.mxu0 0.0
    %3215 = vmatprep.subr.mxu0 0.0
    %3216 = vmatpush1.msra.mxu0 0.0
    %3217 = vmatprep.subr.mxu0 0.0
    %3218 = vmatpush1.msra.mxu0 0.0
    %3219 = vmatprep.subr.mxu0 0.0
    %3220 = vmatpush1.msra.mxu0 0.0
    %3221 = vmatprep.subr.mxu0 0.0
    %3222 = vmatpush1.msra.mxu0 0.0
    %3223 = vmatprep.subr.mxu0 0.0
    %3224 = vmatpush1.msra.mxu0 0.0
    %3225 = vmatprep.subr.mxu0 0.0
    %3226 = vmatpush1.msra.mxu0 0.0
    %3227 = vmatprep.mubr.f32.mxu0 0.0
    %3228 = vmatmul.mubr.f32.gmra.mrb[0].mxu0 %v3161
    %v3229 = vpop.f32.mrb[0].mxu0
    %v3230 = vadd.f32 %v3157, %v3229
    %v3231 = vpop.f32.mrb[0].mxu0
    %3232 = vdwg.mxu0
    %3233 = vst.msk [vmem:[#allocation28] sm:$0x3] %vm615, %v3230
    // Predicated region
    $region174: #{linear_network_forward.1} parent=1 // pred_check
      _
    $region175: #{linear_network_forward.1} parent=1 // pred_check_branch
      %3235 = sbr.rel (0) target = $region177
    $region176: #{linear_network_forward.1} parent=1 // pred_region
      %s3237 = ssub.s32 32, 32
      %3238 = vsyncadd [#allocation4], %s3237
      %s3240 = sshll.u32 [#allocation28], 4
      %s3241 = int_to_ptr.vmem [resolvable:$true] %s3240
      %3243 = dma.vmem_to_hbm [thread:$0]  %s3241, 32, %s27, [#allocation4]
    $region177: #{linear_network_forward.1} parent=1 // pred_fallthru
      _
    // Predicated region
    $region178: #{linear_network_forward.1} parent=1 // pred_check
      _
    $region179: #{linear_network_forward.1} parent=1 // pred_check_branch
      %3245 = sbr.rel (0) target = $region181
    $region180: #{linear_network_forward.1} parent=1 // pred_region
      %3246 = dma.done [#allocation4], 32
    $region181: #{linear_network_forward.1} parent=1 // pred_fallthru
      _
    %3247 = vsyncpa [#allocation3], 1
    %3248 = vsyncpa [#allocation6], 1
    %3249 = vsyncpa [#allocation9], 1
    %3250 = vsyncpa [#allocation12], 1
    %3251 = vsyncpa [#allocation15], 1
    %3252 = vsyncpa [#allocation18], 1
    %3253 = vsyncpa [#allocation21], 1
    %3254 = vsyncpa [#allocation24], 1
    %3255 = vsyncpa [#allocation27], 1
    %3256 = vsyncpa [#allocation4], 1

</llo_original>
